<compile_context>
chip_gen: v6e
topology: v6e:2x2x1
jax: 0.10.0
libtpu: 0.0.40
codegen_flags: <defaults>
</compile_context>

<pallas_src>
import functools
import math

import jax
import jax.numpy as jnp
from jax import lax
from jax.experimental import pallas as pl
from jax.experimental.pallas import tpu as pltpu

LANE = 128


def _round_up(n, m):
    return ((n + m - 1) // m) * m


# --------------------------------- kernel ------------------------------------

def attention_module_kernel(x_ref, wqkv_ref, bqkv_ref,
                            qg_ref, qb_ref, kg_ref, kb_ref, vg_ref, vb_ref,
                            w1_ref, b1_ref, w2_ref, b2_ref, lng_ref, lnb_ref,
                            o_ref, xpad_ref, acat_ref,
                            *, n_heads, emb_size, elem_size, e_pad, c_pad,
                            block_batch, n_tokens, mm_dtype):
    """Fused AttentionModule forward for `block_batch` batch elements."""
    H, E, C = n_heads, emb_size, elem_size
    Bb, N = block_batch, n_tokens

    # --- zero-extend the unpadded (Bb, N, C) input into a lane-aligned scratch ---
    xpad_ref[...] = jnp.zeros_like(xpad_ref)
    for b in range(Bb):
        xpad_ref[b * N:(b + 1) * N, :C] = x_ref[b]
    x = xpad_ref[...]                                        # (Bb*N, c_pad) f32, pad lanes = 0

    # lane masks for the masked LayerNorms (hoisted out of the head loop)
    e_cols = lax.broadcasted_iota(jnp.int32, (1, e_pad), 1)
    emask = (e_cols < E).astype(jnp.float32)
    c_cols = lax.broadcasted_iota(jnp.int32, (1, c_pad), 1)
    cmask = (c_cols < C).astype(jnp.float32)

    def masked_ln(y, g, b, mask, real_n, eps=1e-5):
        # y must have exactly-zero padded lanes (see module-level invariant).
        inv_n = 1.0 / float(real_n)
        mu = jnp.sum(y, axis=-1, keepdims=True) * inv_n
        cen = (y - mu) * mask
        var = jnp.sum(cen * cen, axis=-1, keepdims=True) * inv_n
        return cen * lax.rsqrt(var + eps) * g + b            # padded lanes stay 0

    # One fused projection matmul for every head's Q, K and V over all Bb*N rows.
    xm = x.astype(mm_dtype)
    qkv = jnp.dot(xm, wqkv_ref[...].astype(mm_dtype),
                  preferred_element_type=jnp.float32) + bqkv_ref[...]

    k_base = H * e_pad
    v_base = 2 * H * e_pad

    for h in range(H):                                       # static unroll (H small)
        # 1/int(sqrt(emb)) is folded into qg/qb by pack_params — no in-kernel scale.
        q = masked_ln(qkv[:, h * e_pad:(h + 1) * e_pad],
                      qg_ref[h], qb_ref[h], emask, E)
        k = masked_ln(qkv[:, k_base + h * e_pad:k_base + (h + 1) * e_pad],
                      kg_ref[h], kb_ref[h], emask, E)
        v = masked_ln(qkv[:, v_base + h * c_pad:v_base + (h + 1) * c_pad],
                      vg_ref[h], vb_ref[h], cmask, C)
        for b in range(Bb):                                  # attention is per batch element
            rows = slice(b * N, (b + 1) * N)
            qb_ = q[rows].astype(mm_dtype)
            kb_ = k[rows].astype(mm_dtype)
            vb_ = v[rows].astype(mm_dtype)
            # contract last dims directly (no K^T / XLU copy)
            s = lax.dot_general(qb_, kb_,
                                dimension_numbers=(((1,), (1,)), ((), ())),
                                preferred_element_type=jnp.float32)   # (N, N)
            m = jnp.max(s, axis=-1, keepdims=True)
            e = jnp.exp(s - m)
            p = e * pl.reciprocal(jnp.sum(e, axis=-1, keepdims=True), approx=True)
            head = jnp.dot(p.astype(mm_dtype), vb_,
                           preferred_element_type=jnp.float32)        # (N, c_pad)
            # lane-aligned "concat": head slab goes into its 128-aligned column band
            acat_ref[rows, h * c_pad:(h + 1) * c_pad] = head

    # concat(heads) @ W1 as ONE (Bb*N, H*c_pad) @ (H*c_pad, c_pad) MXU contraction
    a_cat = acat_ref[...]
    h1 = jnp.maximum(
        jnp.dot(a_cat.astype(mm_dtype), w1_ref[...].astype(mm_dtype),
                preferred_element_type=jnp.float32) + b1_ref[...], 0.0)
    mlp = jnp.maximum(
        jnp.dot(h1.astype(mm_dtype), w2_ref[...].astype(mm_dtype),
                preferred_element_type=jnp.float32) + b2_ref[...], 0.0)

    # residual + final LayerNorm (f32), then write back only the real C channels
    y = masked_ln(x + mlp, lng_ref[...], lnb_ref[...], cmask, C)      # (Bb*N, c_pad)
    for b in range(Bb):
        o_ref[b] = y[b * N:(b + 1) * N, :C]


# -------------------------------- wrapper -------------------------------------

def _pick_block_batch(B, N, max_rows=512):
    """Largest divisor of B with Bb*N <= max_rows, keeping >= 2 grid steps
    (v7x has 2 TensorCores; a grid of 1 would serialize onto one of them)."""
    best = 1
    for d in range(1, B + 1):
        if B % d:
            continue
        if d * N > max_rows:
            break
        if B >= 2 and B // d < 2:
            continue
        best = d
    return best


def attention_module_forward(x, packed, *, elem_size, emb_size, n_heads,
                             use_bf16_matmul=True, block_batch=None):
    """x: (B, N, elem_size) float32 tokens. Returns (B, N, elem_size)."""
    B, N, C = x.shape
    assert C == elem_size
    assert N % 8 == 0, "token count should be a multiple of 8 (sublane width)"
    c_pad = _round_up(C, LANE)
    e_pad = _round_up(emb_size, LANE)

    Bb = block_batch if block_batch is not None else _pick_block_batch(B, N)
    assert B % Bb == 0, "block_batch must divide the batch size"

    weight_args = (packed['wqkv'], packed['bqkv'],
                   packed['qg'], packed['qb'], packed['kg'], packed['kb'],
                   packed['vg'], packed['vb'],
                   packed['w1'], packed['b1'], packed['w2'], packed['b2'],
                   packed['lng'], packed['lnb'])

    def full_spec(a):
        nd = a.ndim
        return pl.BlockSpec(a.shape, lambda g, nd=nd: (0,) * nd)

    kernel = functools.partial(
        attention_module_kernel,
        n_heads=n_heads, emb_size=emb_size, elem_size=elem_size,
        e_pad=e_pad, c_pad=c_pad, block_batch=Bb, n_tokens=N,
        mm_dtype=jnp.bfloat16 if use_bf16_matmul else jnp.float32)

    return pl.pallas_call(
        kernel,
        out_shape=jax.ShapeDtypeStruct((B, N, C), jnp.float32),
        grid=(B // Bb,),
        in_specs=[pl.BlockSpec((Bb, N, C), lambda g: (g, 0, 0))] +
                 [full_spec(a) for a in weight_args],
        out_specs=pl.BlockSpec((Bb, N, C), lambda g: (g, 0, 0)),
        scratch_shapes=[pltpu.VMEM((Bb * N, c_pad), jnp.float32),
                        pltpu.VMEM((Bb * N, n_heads * c_pad), jnp.float32)],
        compiler_params=pltpu.CompilerParams(
            dimension_semantics=("parallel",),          # batch across TCs on v7x
            vmem_limit_bytes=32 * 1024 * 1024),
    )(x, *weight_args)


# ---------------------- parameter init / packing (JAX glue) -------------------

def init_attention_params(key, *, elem_size, emb_size, n_heads):
    """Natural (unpadded) parameters, PyTorch-nn.Linear-like init; LN affine = (1, 0)."""
    ks = iter(jax.random.split(key, 8 * n_heads + 8))

    def lin(k, fan_in, fan_out):
        kw, kb = jax.random.split(k)
        lim = 1.0 / math.sqrt(fan_in)
        w = jax.random.uniform(kw, (fan_in, fan_out), jnp.float32, -lim, lim)
        b = jax.random.uniform(kb, (fan_out,), jnp.float32, -lim, lim)
        return w, b

    P = {'wq': [], 'bq': [], 'wk': [], 'bk': [], 'wv': [], 'bv': []}
    for _ in range(n_heads):
        w, b = lin(next(ks), elem_size, emb_size); P['wq'].append(w); P['bq'].append(b)
        w, b = lin(next(ks), elem_size, emb_size); P['wk'].append(w); P['bk'].append(b)
        w, b = lin(next(ks), elem_size, elem_size); P['wv'].append(w); P['bv'].append(b)
    for name in ('wq', 'bq', 'wk', 'bk', 'wv', 'bv'):
        P[name] = jnp.stack(P[name])
    P['qg'] = jnp.ones((n_heads, emb_size), jnp.float32)
    P['qb'] = jnp.zeros((n_heads, emb_size), jnp.float32)
    P['kg'] = jnp.ones((n_heads, emb_size), jnp.float32)
    P['kb'] = jnp.zeros((n_heads, emb_size), jnp.float32)
    P['vg'] = jnp.ones((n_heads, elem_size), jnp.float32)
    P['vb'] = jnp.zeros((n_heads, elem_size), jnp.float32)
    P['w1'], P['b1'] = lin(next(ks), n_heads * elem_size, elem_size)
    P['w2'], P['b2'] = lin(next(ks), elem_size, elem_size)
    P['lng'] = jnp.ones((elem_size,), jnp.float32)
    P['lnb'] = jnp.zeros((elem_size,), jnp.float32)
    return P


def pack_params(P, *, elem_size, emb_size, n_heads):
    """Pack/pad natural params into the fused, 128-lane-aligned kernel layout.

    All padded lanes are zero (kernel invariant).  The 1/int(sqrt(emb)) score
    scale is folded into the packed Q-LayerNorm gamma/beta here.
    """
    C, E, H = elem_size, emb_size, n_heads
    c_pad = _round_up(C, LANE)
    e_pad = _round_up(E, LANE)
    inv = 1.0 / float(int(math.sqrt(E)))                      # PyTorch int(sqrt()) quirk
    wtot = 2 * H * e_pad + H * c_pad                          # [Q_0..Q_{H-1} | K_0.. | V_0..]

    wqkv = jnp.zeros((c_pad, wtot), jnp.float32)
    bqkv = jnp.zeros((1, wtot), jnp.float32)
    for h in range(H):
        qo = h * e_pad
        ko = H * e_pad + h * e_pad
        vo = 2 * H * e_pad + h * c_pad
        wqkv = wqkv.at[:C, qo:qo + E].set(P['wq'][h])
        wqkv = wqkv.at[:C, ko:ko + E].set(P['wk'][h])
        wqkv = wqkv.at[:C, vo:vo + C].set(P['wv'][h])
        bqkv = bqkv.at[0, qo:qo + E].set(P['bq'][h])
        bqkv = bqkv.at[0, ko:ko + E].set(P['bk'][h])
        bqkv = bqkv.at[0, vo:vo + C].set(P['bv'][h])

    def pad_vec(v, n):
        return jnp.zeros((1, n), jnp.float32).at[0, :v.shape[0]].set(v)

    qg = jnp.stack([pad_vec(P['qg'][h] * inv, e_pad) for h in range(H)])   # scale folded in
    qb = jnp.stack([pad_vec(P['qb'][h] * inv, e_pad) for h in range(H)])
    kg = jnp.stack([pad_vec(P['kg'][h], e_pad) for h in range(H)])
    kb = jnp.stack([pad_vec(P['kb'][h], e_pad) for h in range(H)])
    vg = jnp.stack([pad_vec(P['vg'][h], c_pad) for h in range(H)])
    vb = jnp.stack([pad_vec(P['vb'][h], c_pad) for h in range(H)])

    # W1 as one (H*c_pad, c_pad) slab so concat(heads)@W1 is a single contraction
    w1 = jnp.zeros((H * c_pad, c_pad), jnp.float32)
    for h in range(H):
        w1 = w1.at[h * c_pad:h * c_pad + C, :C].set(P['w1'][h * C:(h + 1) * C, :])
    b1 = pad_vec(P['b1'], c_pad)
    w2 = jnp.zeros((c_pad, c_pad), jnp.float32).at[:C, :C].set(P['w2'])
    b2 = pad_vec(P['b2'], c_pad)
    lng = pad_vec(P['lng'], c_pad)
    lnb = pad_vec(P['lnb'], c_pad)

    return dict(wqkv=wqkv, bqkv=bqkv, qg=qg, qb=qb, kg=kg, kb=kb, vg=vg, vb=vb,
                w1=w1, b1=b1, w2=w2, b2=b2, lng=lng, lnb=lnb)


# ----------------------------- pure-JAX reference ------------------------------

def _ln_ref(y, g, b, eps=1e-5):
    mu = jnp.mean(y, axis=-1, keepdims=True)
    var = jnp.mean(jnp.square(y - mu), axis=-1, keepdims=True)
    return (y - mu) * lax.rsqrt(var + eps) * g + b


def attention_module_ref(x, P, *, emb_size, n_heads, mm_dtype=jnp.float32):
    """Reference with optional bf16 matmul operands (mirrors the kernel's casts)."""
    inv = 1.0 / int(math.sqrt(emb_size))
    md = mm_dtype

    def mm(a, b):
        return jnp.matmul(a.astype(md), b.astype(md),
                          preferred_element_type=jnp.float32)

    heads = []
    for h in range(n_heads):
        q = _ln_ref(mm(x, P['wq'][h]) + P['bq'][h], P['qg'][h], P['qb'][h])
        k = _ln_ref(mm(x, P['wk'][h]) + P['bk'][h], P['kg'][h], P['kb'][h])
        v = _ln_ref(mm(x, P['wv'][h]) + P['bv'][h], P['vg'][h], P['vb'][h])
        s = jnp.einsum('bnd,bmd->bnm', (q * inv).astype(md), k.astype(md),
                       preferred_element_type=jnp.float32)
        p = jax.nn.softmax(s, axis=-1)
        heads.append(jnp.einsum('bnm,bmd->bnd', p.astype(md), v.astype(md),
                                preferred_element_type=jnp.float32))
    a_cat = jnp.concatenate(heads, axis=-1)
    h1 = jax.nn.relu(mm(a_cat, P['w1']) + P['b1'])
    mlp = jax.nn.relu(mm(h1, P['w2']) + P['b2'])
    return _ln_ref(x + mlp, P['lng'], P['lnb'])


# ----------------------------------- main --------------------------------------

if __name__ == "__main__":
    key = jax.random.PRNGKey(0)
    kx, kp = jax.random.split(key)

    # Box-World usage: n_elems = 8*8 tokens, elem_size = 24 conv chans + 2 coords,
    # emb_size = 64, n_heads = 2.  B=4 -> block_batch=2, grid=2 (both v7x TCs busy).
    B, N, C, E, H = 4, 64, 26, 64, 2
    x = jax.random.uniform(kx, (B, N, C), jnp.float32, -1.0, 1.0)

    P = init_attention_params(kp, elem_size=C, emb_size=E, n_heads=H)
    packed = pack_params(P, elem_size=C, emb_size=E, n_heads=H)

    # default path: bf16 MXU operands, f32 accumulation / elementwise
    fwd_bf16 = jax.jit(functools.partial(attention_module_forward,
                                         elem_size=C, emb_size=E, n_heads=H,
                                         use_bf16_matmul=True))
    out_bf16 = jax.block_until_ready(fwd_bf16(x, packed))

    # strict-precision path (exact parity with the PyTorch module in f32)
    fwd_f32 = jax.jit(functools.partial(attention_module_forward,
                                        elem_size=C, emb_size=E, n_heads=H,
                                        use_bf16_matmul=False))
    out_f32 = jax.block_until_ready(fwd_f32(x, packed))

    ref_f32 = attention_module_ref(x, P, emb_size=E, n_heads=H, mm_dtype=jnp.float32)
    ref_bf16 = attention_module_ref(x, P, emb_size=E, n_heads=H, mm_dtype=jnp.bfloat16)

    assert out_bf16.shape == (B, N, C) and out_f32.shape == (B, N, C)
    assert bool(jnp.all(jnp.isfinite(out_bf16))) and bool(jnp.all(jnp.isfinite(out_f32)))
    # f32 kernel vs f32 reference: tight parity with the PyTorch math.
    assert bool(jnp.allclose(out_f32, ref_f32, atol=1e-2, rtol=1e-2)), \
        float(jnp.max(jnp.abs(out_f32 - ref_f32)))
    # bf16 kernel vs precision-matched bf16 reference.
    assert bool(jnp.allclose(out_bf16, ref_bf16, atol=2e-2, rtol=2e-2)), \
        float(jnp.max(jnp.abs(out_bf16 - ref_bf16)))
    print("KERNEL_OK")
</pallas_src>

<mosaic_0001>
module attributes {stable_mosaic.version = 11 : i64} {
  func.func @attention_module_kernel(%arg0: i32, %arg1: memref<2x64x26xf32, #tpu.memory_space<vmem>>, %arg2: memref<128x768xf32, #tpu.memory_space<vmem>>, %arg3: memref<1x768xf32, #tpu.memory_space<vmem>>, %arg4: memref<2x1x128xf32, #tpu.memory_space<vmem>>, %arg5: memref<2x1x128xf32, #tpu.memory_space<vmem>>, %arg6: memref<2x1x128xf32, #tpu.memory_space<vmem>>, %arg7: memref<2x1x128xf32, #tpu.memory_space<vmem>>, %arg8: memref<2x1x128xf32, #tpu.memory_space<vmem>>, %arg9: memref<2x1x128xf32, #tpu.memory_space<vmem>>, %arg10: memref<256x128xf32, #tpu.memory_space<vmem>>, %arg11: memref<1x128xf32, #tpu.memory_space<vmem>>, %arg12: memref<128x128xf32, #tpu.memory_space<vmem>>, %arg13: memref<1x128xf32, #tpu.memory_space<vmem>>, %arg14: memref<1x128xf32, #tpu.memory_space<vmem>>, %arg15: memref<1x128xf32, #tpu.memory_space<vmem>>, %arg16: memref<2x64x26xf32, #tpu.memory_space<vmem>>, %arg17: memref<128x128xf32, #tpu.memory_space<vmem>>, %arg18: memref<128x256xf32, #tpu.memory_space<vmem>>) attributes {dimension_semantics = [#tpu.dimension_semantics<parallel>], iteration_bounds = array<i64: 2>, scalar_prefetch = 0 : i64, scratch_operands = 2 : i64, tpu.core_type = #tpu.core_type<tc>, window_params = [{transform_indices = @transform_0, window_bounds = array<i64: 2, 64, 26>}, {pipeline_mode = #tpu.pipeline_mode<synchronous>, transform_indices = @transform_1, window_bounds = array<i64: 128, 768>}, {pipeline_mode = #tpu.pipeline_mode<synchronous>, transform_indices = @transform_2, window_bounds = array<i64: 1, 768>}, {pipeline_mode = #tpu.pipeline_mode<synchronous>, transform_indices = @transform_3, window_bounds = array<i64: 2, 1, 128>}, {pipeline_mode = #tpu.pipeline_mode<synchronous>, transform_indices = @transform_4, window_bounds = array<i64: 2, 1, 128>}, {pipeline_mode = #tpu.pipeline_mode<synchronous>, transform_indices = @transform_5, window_bounds = array<i64: 2, 1, 128>}, {pipeline_mode = #tpu.pipeline_mode<synchronous>, transform_indices = @transform_6, window_bounds = array<i64: 2, 1, 128>}, {pipeline_mode = #tpu.pipeline_mode<synchronous>, transform_indices = @transform_7, window_bounds = array<i64: 2, 1, 128>}, {pipeline_mode = #tpu.pipeline_mode<synchronous>, transform_indices = @transform_8, window_bounds = array<i64: 2, 1, 128>}, {pipeline_mode = #tpu.pipeline_mode<synchronous>, transform_indices = @transform_9, window_bounds = array<i64: 256, 128>}, {pipeline_mode = #tpu.pipeline_mode<synchronous>, transform_indices = @transform_10, window_bounds = array<i64: 1, 128>}, {pipeline_mode = #tpu.pipeline_mode<synchronous>, transform_indices = @transform_11, window_bounds = array<i64: 128, 128>}, {pipeline_mode = #tpu.pipeline_mode<synchronous>, transform_indices = @transform_12, window_bounds = array<i64: 1, 128>}, {pipeline_mode = #tpu.pipeline_mode<synchronous>, transform_indices = @transform_13, window_bounds = array<i64: 1, 128>}, {pipeline_mode = #tpu.pipeline_mode<synchronous>, transform_indices = @transform_14, window_bounds = array<i64: 1, 128>}, {transform_indices = @transform_15, window_bounds = array<i64: 2, 64, 26>}]} {
    %cst = arith.constant 0.000000e+00 : f32
    %0 = vector.broadcast %cst : f32 to vector<128x128xf32>
    %c0 = arith.constant 0 : index
    %c0_0 = arith.constant 0 : index
    %1 = vector.load %arg17[%c0, %c0_0] : memref<128x128xf32, #tpu.memory_space<vmem>>, vector<128x128xf32>
    tpu.vector_store %arg17[%c0, %c0_0], %0 {strides = array<i32>} : memref<128x128xf32, #tpu.memory_space<vmem>>, vector<128x128xf32>,
    %c0_1 = arith.constant 0 : index
    %c0_2 = arith.constant 0 : index
    %c0_3 = arith.constant 0 : index
    %2 = vector.load %arg1[%c0_1, %c0_2, %c0_3] : memref<2x64x26xf32, #tpu.memory_space<vmem>>, vector<1x64x26xf32>
    %3 = vector.shape_cast %2 : vector<1x64x26xf32> to vector<64x26xf32>
    %c0_4 = arith.constant 0 : index
    %c0_5 = arith.constant 0 : index
    %4 = vector.load %arg17[%c0_4, %c0_5] : memref<128x128xf32, #tpu.memory_space<vmem>>, vector<64x26xf32>
    tpu.vector_store %arg17[%c0_4, %c0_5], %3 {strides = array<i32>} : memref<128x128xf32, #tpu.memory_space<vmem>>, vector<64x26xf32>,
    %c1 = arith.constant 1 : index
    %c0_6 = arith.constant 0 : index
    %c0_7 = arith.constant 0 : index
    %5 = vector.load %arg1[%c1, %c0_6, %c0_7] : memref<2x64x26xf32, #tpu.memory_space<vmem>>, vector<1x64x26xf32>
    %6 = vector.shape_cast %5 : vector<1x64x26xf32> to vector<64x26xf32>
    %c64 = arith.constant 64 : index
    %c0_8 = arith.constant 0 : index
    %7 = vector.load %arg17[%c64, %c0_8] : memref<128x128xf32, #tpu.memory_space<vmem>>, vector<64x26xf32>
    tpu.vector_store %arg17[%c64, %c0_8], %6 {strides = array<i32>} : memref<128x128xf32, #tpu.memory_space<vmem>>, vector<64x26xf32>,
    %c0_9 = arith.constant 0 : index
    %c0_10 = arith.constant 0 : index
    %8 = vector.load %arg17[%c0_9, %c0_10] : memref<128x128xf32, #tpu.memory_space<vmem>>, vector<128x128xf32>
    %9 = tpu.iota {dimensions = array<i32: 1>} : vector<1x128xi32>
    %c64_i32 = arith.constant 64 : i32
    %10 = vector.broadcast %c64_i32 : i32 to vector<1x128xi32>
    %11 = arith.cmpi slt, %9, %10 : vector<1x128xi32>
    %12 = arith.extui %11 : vector<1x128xi1> to vector<1x128xi32>
    %13 = arith.sitofp %12 : vector<1x128xi32> to vector<1x128xf32>
    %14 = tpu.iota {dimensions = array<i32: 1>} : vector<1x128xi32>
    %c26_i32 = arith.constant 26 : i32
    %15 = vector.broadcast %c26_i32 : i32 to vector<1x128xi32>
    %16 = arith.cmpi slt, %14, %15 : vector<1x128xi32>
    %17 = arith.extui %16 : vector<1x128xi1> to vector<1x128xi32>
    %18 = arith.sitofp %17 : vector<1x128xi32> to vector<1x128xf32>
    %19 = arith.truncf %8 : vector<128x128xf32> to vector<128x128xbf16>
    %c0_11 = arith.constant 0 : index
    %c0_12 = arith.constant 0 : index
    %20 = vector.load %arg2[%c0_11, %c0_12] : memref<128x768xf32, #tpu.memory_space<vmem>>, vector<128x768xf32>
    %21 = arith.truncf %20 : vector<128x768xf32> to vector<128x768xbf16>
    %cst_13 = arith.constant dense<0.000000e+00> : vector<128x768xf32>
    %22 = tpu.matmul %19, %21, %cst_13 {dimension_numbers = #tpu.dot_dimension_numbers<[1], [0], [0], [1], [0, 0, 1, 1], [], []>} : vector<128x128xbf16>, vector<128x768xbf16>, vector<128x768xf32> -> vector<128x768xf32>
    %c0_14 = arith.constant 0 : index
    %c0_15 = arith.constant 0 : index
    %23 = vector.load %arg3[%c0_14, %c0_15] : memref<1x768xf32, #tpu.memory_space<vmem>>, vector<1x768xf32>
    %24 = vector.broadcast %23 : vector<1x768xf32> to vector<128x768xf32>
    %25 = arith.addf %22, %24 : vector<128x768xf32>
    %26 = vector.extract_strided_slice %25 {offsets = [0, 0], sizes = [128, 128], strides = [1, 1]} : vector<128x768xf32> to vector<128x128xf32>
    %c0_16 = arith.constant 0 : index
    %c0_17 = arith.constant 0 : index
    %c0_18 = arith.constant 0 : index
    %27 = vector.load %arg4[%c0_16, %c0_17, %c0_18] : memref<2x1x128xf32, #tpu.memory_space<vmem>>, vector<1x1x128xf32>
    %28 = vector.shape_cast %27 : vector<1x1x128xf32> to vector<1x128xf32>
    %c0_19 = arith.constant 0 : index
    %c0_20 = arith.constant 0 : index
    %c0_21 = arith.constant 0 : index
    %29 = vector.load %arg5[%c0_19, %c0_20, %c0_21] : memref<2x1x128xf32, #tpu.memory_space<vmem>>, vector<1x1x128xf32>
    %30 = vector.shape_cast %29 : vector<1x1x128xf32> to vector<1x128xf32>
    %cst_22 = arith.constant dense<0.000000e+00> : vector<128xf32>
    %31 = vector.multi_reduction <add>, %26, %cst_22 [1] : vector<128x128xf32> to vector<128xf32>
    %32 = vector.shape_cast %31 : vector<128xf32> to vector<128x1xf32>
    %cst_23 = arith.constant 1.562500e-02 : f32
    %33 = vector.broadcast %cst_23 : f32 to vector<128x1xf32>
    %34 = arith.mulf %32, %33 : vector<128x1xf32>
    %35 = vector.broadcast %34 : vector<128x1xf32> to vector<128x128xf32>
    %36 = arith.subf %26, %35 : vector<128x128xf32>
    %37 = vector.broadcast %13 : vector<1x128xf32> to vector<128x128xf32>
    %38 = arith.mulf %36, %37 : vector<128x128xf32>
    %39 = arith.mulf %38, %38 : vector<128x128xf32>
    %cst_24 = arith.constant dense<0.000000e+00> : vector<128xf32>
    %40 = vector.multi_reduction <add>, %39, %cst_24 [1] : vector<128x128xf32> to vector<128xf32>
    %41 = vector.shape_cast %40 : vector<128xf32> to vector<128x1xf32>
    %cst_25 = arith.constant 1.562500e-02 : f32
    %42 = vector.broadcast %cst_25 : f32 to vector<128x1xf32>
    %43 = arith.mulf %41, %42 : vector<128x1xf32>
    %cst_26 = arith.constant 9.99999974E-6 : f32
    %44 = vector.broadcast %cst_26 : f32 to vector<128x1xf32>
    %45 = arith.addf %43, %44 : vector<128x1xf32>
    %46 = math.rsqrt %45 : vector<128x1xf32>
    %47 = vector.broadcast %46 : vector<128x1xf32> to vector<128x128xf32>
    %48 = arith.mulf %38, %47 : vector<128x128xf32>
    %49 = vector.broadcast %28 : vector<1x128xf32> to vector<128x128xf32>
    %50 = arith.mulf %48, %49 : vector<128x128xf32>
    %51 = vector.broadcast %30 : vector<1x128xf32> to vector<128x128xf32>
    %52 = arith.addf %50, %51 : vector<128x128xf32>
    %53 = vector.extract_strided_slice %25 {offsets = [0, 256], sizes = [128, 128], strides = [1, 1]} : vector<128x768xf32> to vector<128x128xf32>
    %c0_27 = arith.constant 0 : index
    %c0_28 = arith.constant 0 : index
    %c0_29 = arith.constant 0 : index
    %54 = vector.load %arg6[%c0_27, %c0_28, %c0_29] : memref<2x1x128xf32, #tpu.memory_space<vmem>>, vector<1x1x128xf32>
    %55 = vector.shape_cast %54 : vector<1x1x128xf32> to vector<1x128xf32>
    %c0_30 = arith.constant 0 : index
    %c0_31 = arith.constant 0 : index
    %c0_32 = arith.constant 0 : index
    %56 = vector.load %arg7[%c0_30, %c0_31, %c0_32] : memref<2x1x128xf32, #tpu.memory_space<vmem>>, vector<1x1x128xf32>
    %57 = vector.shape_cast %56 : vector<1x1x128xf32> to vector<1x128xf32>
    %cst_33 = arith.constant dense<0.000000e+00> : vector<128xf32>
    %58 = vector.multi_reduction <add>, %53, %cst_33 [1] : vector<128x128xf32> to vector<128xf32>
    %59 = vector.shape_cast %58 : vector<128xf32> to vector<128x1xf32>
    %cst_34 = arith.constant 1.562500e-02 : f32
    %60 = vector.broadcast %cst_34 : f32 to vector<128x1xf32>
    %61 = arith.mulf %59, %60 : vector<128x1xf32>
    %62 = vector.broadcast %61 : vector<128x1xf32> to vector<128x128xf32>
    %63 = arith.subf %53, %62 : vector<128x128xf32>
    %64 = vector.broadcast %13 : vector<1x128xf32> to vector<128x128xf32>
    %65 = arith.mulf %63, %64 : vector<128x128xf32>
    %66 = arith.mulf %65, %65 : vector<128x128xf32>
    %cst_35 = arith.constant dense<0.000000e+00> : vector<128xf32>
    %67 = vector.multi_reduction <add>, %66, %cst_35 [1] : vector<128x128xf32> to vector<128xf32>
    %68 = vector.shape_cast %67 : vector<128xf32> to vector<128x1xf32>
    %cst_36 = arith.constant 1.562500e-02 : f32
    %69 = vector.broadcast %cst_36 : f32 to vector<128x1xf32>
    %70 = arith.mulf %68, %69 : vector<128x1xf32>
    %cst_37 = arith.constant 9.99999974E-6 : f32
    %71 = vector.broadcast %cst_37 : f32 to vector<128x1xf32>
    %72 = arith.addf %70, %71 : vector<128x1xf32>
    %73 = math.rsqrt %72 : vector<128x1xf32>
    %74 = vector.broadcast %73 : vector<128x1xf32> to vector<128x128xf32>
    %75 = arith.mulf %65, %74 : vector<128x128xf32>
    %76 = vector.broadcast %55 : vector<1x128xf32> to vector<128x128xf32>
    %77 = arith.mulf %75, %76 : vector<128x128xf32>
    %78 = vector.broadcast %57 : vector<1x128xf32> to vector<128x128xf32>
    %79 = arith.addf %77, %78 : vector<128x128xf32>
    %80 = vector.extract_strided_slice %25 {offsets = [0, 512], sizes = [128, 128], strides = [1, 1]} : vector<128x768xf32> to vector<128x128xf32>
    %c0_38 = arith.constant 0 : index
    %c0_39 = arith.constant 0 : index
    %c0_40 = arith.constant 0 : index
    %81 = vector.load %arg8[%c0_38, %c0_39, %c0_40] : memref<2x1x128xf32, #tpu.memory_space<vmem>>, vector<1x1x128xf32>
    %82 = vector.shape_cast %81 : vector<1x1x128xf32> to vector<1x128xf32>
    %c0_41 = arith.constant 0 : index
    %c0_42 = arith.constant 0 : index
    %c0_43 = arith.constant 0 : index
    %83 = vector.load %arg9[%c0_41, %c0_42, %c0_43] : memref<2x1x128xf32, #tpu.memory_space<vmem>>, vector<1x1x128xf32>
    %84 = vector.shape_cast %83 : vector<1x1x128xf32> to vector<1x128xf32>
    %cst_44 = arith.constant dense<0.000000e+00> : vector<128xf32>
    %85 = vector.multi_reduction <add>, %80, %cst_44 [1] : vector<128x128xf32> to vector<128xf32>
    %86 = vector.shape_cast %85 : vector<128xf32> to vector<128x1xf32>
    %cst_45 = arith.constant 0.0384615399 : f32
    %87 = vector.broadcast %cst_45 : f32 to vector<128x1xf32>
    %88 = arith.mulf %86, %87 : vector<128x1xf32>
    %89 = vector.broadcast %88 : vector<128x1xf32> to vector<128x128xf32>
    %90 = arith.subf %80, %89 : vector<128x128xf32>
    %91 = vector.broadcast %18 : vector<1x128xf32> to vector<128x128xf32>
    %92 = arith.mulf %90, %91 : vector<128x128xf32>
    %93 = arith.mulf %92, %92 : vector<128x128xf32>
    %cst_46 = arith.constant dense<0.000000e+00> : vector<128xf32>
    %94 = vector.multi_reduction <add>, %93, %cst_46 [1] : vector<128x128xf32> to vector<128xf32>
    %95 = vector.shape_cast %94 : vector<128xf32> to vector<128x1xf32>
    %cst_47 = arith.constant 0.0384615399 : f32
    %96 = vector.broadcast %cst_47 : f32 to vector<128x1xf32>
    %97 = arith.mulf %95, %96 : vector<128x1xf32>
    %cst_48 = arith.constant 9.99999974E-6 : f32
    %98 = vector.broadcast %cst_48 : f32 to vector<128x1xf32>
    %99 = arith.addf %97, %98 : vector<128x1xf32>
    %100 = math.rsqrt %99 : vector<128x1xf32>
    %101 = vector.broadcast %100 : vector<128x1xf32> to vector<128x128xf32>
    %102 = arith.mulf %92, %101 : vector<128x128xf32>
    %103 = vector.broadcast %82 : vector<1x128xf32> to vector<128x128xf32>
    %104 = arith.mulf %102, %103 : vector<128x128xf32>
    %105 = vector.broadcast %84 : vector<1x128xf32> to vector<128x128xf32>
    %106 = arith.addf %104, %105 : vector<128x128xf32>
    %107 = vector.extract_strided_slice %52 {offsets = [0, 0], sizes = [64, 128], strides = [1, 1]} : vector<128x128xf32> to vector<64x128xf32>
    %108 = arith.truncf %107 : vector<64x128xf32> to vector<64x128xbf16>
    %109 = vector.extract_strided_slice %79 {offsets = [0, 0], sizes = [64, 128], strides = [1, 1]} : vector<128x128xf32> to vector<64x128xf32>
    %110 = arith.truncf %109 : vector<64x128xf32> to vector<64x128xbf16>
    %111 = vector.extract_strided_slice %106 {offsets = [0, 0], sizes = [64, 128], strides = [1, 1]} : vector<128x128xf32> to vector<64x128xf32>
    %112 = arith.truncf %111 : vector<64x128xf32> to vector<64x128xbf16>
    %cst_49 = arith.constant dense<0.000000e+00> : vector<64x64xf32>
    %113 = tpu.matmul %108, %110, %cst_49 {dimension_numbers = #tpu.dot_dimension_numbers<[1], [1], [0], [0], [0, 0, 1, 0], [], []>} : vector<64x128xbf16>, vector<64x128xbf16>, vector<64x64xf32> -> vector<64x64xf32>
    %cst_50 = arith.constant dense<0xFF800000> : vector<64xf32>
    %114 = vector.multi_reduction <maximumf>, %113, %cst_50 [1] : vector<64x64xf32> to vector<64xf32>
    %115 = vector.shape_cast %114 : vector<64xf32> to vector<64x1xf32>
    %116 = vector.broadcast %115 : vector<64x1xf32> to vector<64x64xf32>
    %117 = arith.subf %113, %116 : vector<64x64xf32>
    %118 = math.exp %117 : vector<64x64xf32>
    %cst_51 = arith.constant dense<0.000000e+00> : vector<64xf32>
    %119 = vector.multi_reduction <add>, %118, %cst_51 [1] : vector<64x64xf32> to vector<64xf32>
    %120 = vector.shape_cast %119 : vector<64xf32> to vector<64x1xf32>
    %121 = tpu.reciprocal %120 {approx = true} : vector<64x1xf32> -> vector<64x1xf32>
    %122 = vector.broadcast %121 : vector<64x1xf32> to vector<64x64xf32>
    %123 = arith.mulf %118, %122 : vector<64x64xf32>
    %124 = arith.truncf %123 : vector<64x64xf32> to vector<64x64xbf16>
    %cst_52 = arith.constant dense<0.000000e+00> : vector<64x128xf32>
    %125 = tpu.matmul %124, %112, %cst_52 {dimension_numbers = #tpu.dot_dimension_numbers<[1], [0], [0], [1], [0, 0, 1, 1], [], []>} : vector<64x64xbf16>, vector<64x128xbf16>, vector<64x128xf32> -> vector<64x128xf32>
    %c0_53 = arith.constant 0 : index
    %c0_54 = arith.constant 0 : index
    %126 = vector.load %arg18[%c0_53, %c0_54] : memref<128x256xf32, #tpu.memory_space<vmem>>, vector<64x128xf32>
    tpu.vector_store %arg18[%c0_53, %c0_54], %125 {strides = array<i32>} : memref<128x256xf32, #tpu.memory_space<vmem>>, vector<64x128xf32>,
    %127 = vector.extract_strided_slice %52 {offsets = [64, 0], sizes = [64, 128], strides = [1, 1]} : vector<128x128xf32> to vector<64x128xf32>
    %128 = arith.truncf %127 : vector<64x128xf32> to vector<64x128xbf16>
    %129 = vector.extract_strided_slice %79 {offsets = [64, 0], sizes = [64, 128], strides = [1, 1]} : vector<128x128xf32> to vector<64x128xf32>
    %130 = arith.truncf %129 : vector<64x128xf32> to vector<64x128xbf16>
    %131 = vector.extract_strided_slice %106 {offsets = [64, 0], sizes = [64, 128], strides = [1, 1]} : vector<128x128xf32> to vector<64x128xf32>
    %132 = arith.truncf %131 : vector<64x128xf32> to vector<64x128xbf16>
    %cst_55 = arith.constant dense<0.000000e+00> : vector<64x64xf32>
    %133 = tpu.matmul %128, %130, %cst_55 {dimension_numbers = #tpu.dot_dimension_numbers<[1], [1], [0], [0], [0, 0, 1, 0], [], []>} : vector<64x128xbf16>, vector<64x128xbf16>, vector<64x64xf32> -> vector<64x64xf32>
    %cst_56 = arith.constant dense<0xFF800000> : vector<64xf32>
    %134 = vector.multi_reduction <maximumf>, %133, %cst_56 [1] : vector<64x64xf32> to vector<64xf32>
    %135 = vector.shape_cast %134 : vector<64xf32> to vector<64x1xf32>
    %136 = vector.broadcast %135 : vector<64x1xf32> to vector<64x64xf32>
    %137 = arith.subf %133, %136 : vector<64x64xf32>
    %138 = math.exp %137 : vector<64x64xf32>
    %cst_57 = arith.constant dense<0.000000e+00> : vector<64xf32>
    %139 = vector.multi_reduction <add>, %138, %cst_57 [1] : vector<64x64xf32> to vector<64xf32>
    %140 = vector.shape_cast %139 : vector<64xf32> to vector<64x1xf32>
    %141 = tpu.reciprocal %140 {approx = true} : vector<64x1xf32> -> vector<64x1xf32>
    %142 = vector.broadcast %141 : vector<64x1xf32> to vector<64x64xf32>
    %143 = arith.mulf %138, %142 : vector<64x64xf32>
    %144 = arith.truncf %143 : vector<64x64xf32> to vector<64x64xbf16>
    %cst_58 = arith.constant dense<0.000000e+00> : vector<64x128xf32>
    %145 = tpu.matmul %144, %132, %cst_58 {dimension_numbers = #tpu.dot_dimension_numbers<[1], [0], [0], [1], [0, 0, 1, 1], [], []>} : vector<64x64xbf16>, vector<64x128xbf16>, vector<64x128xf32> -> vector<64x128xf32>
    %c64_59 = arith.constant 64 : index
    %c0_60 = arith.constant 0 : index
    %146 = vector.load %arg18[%c64_59, %c0_60] : memref<128x256xf32, #tpu.memory_space<vmem>>, vector<64x128xf32>
    tpu.vector_store %arg18[%c64_59, %c0_60], %145 {strides = array<i32>} : memref<128x256xf32, #tpu.memory_space<vmem>>, vector<64x128xf32>,
    %147 = vector.extract_strided_slice %25 {offsets = [0, 128], sizes = [128, 128], strides = [1, 1]} : vector<128x768xf32> to vector<128x128xf32>
    %c1_61 = arith.constant 1 : index
    %c0_62 = arith.constant 0 : index
    %c0_63 = arith.constant 0 : index
    %148 = vector.load %arg4[%c1_61, %c0_62, %c0_63] : memref<2x1x128xf32, #tpu.memory_space<vmem>>, vector<1x1x128xf32>
    %149 = vector.shape_cast %148 : vector<1x1x128xf32> to vector<1x128xf32>
    %c1_64 = arith.constant 1 : index
    %c0_65 = arith.constant 0 : index
    %c0_66 = arith.constant 0 : index
    %150 = vector.load %arg5[%c1_64, %c0_65, %c0_66] : memref<2x1x128xf32, #tpu.memory_space<vmem>>, vector<1x1x128xf32>
    %151 = vector.shape_cast %150 : vector<1x1x128xf32> to vector<1x128xf32>
    %cst_67 = arith.constant dense<0.000000e+00> : vector<128xf32>
    %152 = vector.multi_reduction <add>, %147, %cst_67 [1] : vector<128x128xf32> to vector<128xf32>
    %153 = vector.shape_cast %152 : vector<128xf32> to vector<128x1xf32>
    %cst_68 = arith.constant 1.562500e-02 : f32
    %154 = vector.broadcast %cst_68 : f32 to vector<128x1xf32>
    %155 = arith.mulf %153, %154 : vector<128x1xf32>
    %156 = vector.broadcast %155 : vector<128x1xf32> to vector<128x128xf32>
    %157 = arith.subf %147, %156 : vector<128x128xf32>
    %158 = vector.broadcast %13 : vector<1x128xf32> to vector<128x128xf32>
    %159 = arith.mulf %157, %158 : vector<128x128xf32>
    %160 = arith.mulf %159, %159 : vector<128x128xf32>
    %cst_69 = arith.constant dense<0.000000e+00> : vector<128xf32>
    %161 = vector.multi_reduction <add>, %160, %cst_69 [1] : vector<128x128xf32> to vector<128xf32>
    %162 = vector.shape_cast %161 : vector<128xf32> to vector<128x1xf32>
    %cst_70 = arith.constant 1.562500e-02 : f32
    %163 = vector.broadcast %cst_70 : f32 to vector<128x1xf32>
    %164 = arith.mulf %162, %163 : vector<128x1xf32>
    %cst_71 = arith.constant 9.99999974E-6 : f32
    %165 = vector.broadcast %cst_71 : f32 to vector<128x1xf32>
    %166 = arith.addf %164, %165 : vector<128x1xf32>
    %167 = math.rsqrt %166 : vector<128x1xf32>
    %168 = vector.broadcast %167 : vector<128x1xf32> to vector<128x128xf32>
    %169 = arith.mulf %159, %168 : vector<128x128xf32>
    %170 = vector.broadcast %149 : vector<1x128xf32> to vector<128x128xf32>
    %171 = arith.mulf %169, %170 : vector<128x128xf32>
    %172 = vector.broadcast %151 : vector<1x128xf32> to vector<128x128xf32>
    %173 = arith.addf %171, %172 : vector<128x128xf32>
    %174 = vector.extract_strided_slice %25 {offsets = [0, 384], sizes = [128, 128], strides = [1, 1]} : vector<128x768xf32> to vector<128x128xf32>
    %c1_72 = arith.constant 1 : index
    %c0_73 = arith.constant 0 : index
    %c0_74 = arith.constant 0 : index
    %175 = vector.load %arg6[%c1_72, %c0_73, %c0_74] : memref<2x1x128xf32, #tpu.memory_space<vmem>>, vector<1x1x128xf32>
    %176 = vector.shape_cast %175 : vector<1x1x128xf32> to vector<1x128xf32>
    %c1_75 = arith.constant 1 : index
    %c0_76 = arith.constant 0 : index
    %c0_77 = arith.constant 0 : index
    %177 = vector.load %arg7[%c1_75, %c0_76, %c0_77] : memref<2x1x128xf32, #tpu.memory_space<vmem>>, vector<1x1x128xf32>
    %178 = vector.shape_cast %177 : vector<1x1x128xf32> to vector<1x128xf32>
    %cst_78 = arith.constant dense<0.000000e+00> : vector<128xf32>
    %179 = vector.multi_reduction <add>, %174, %cst_78 [1] : vector<128x128xf32> to vector<128xf32>
    %180 = vector.shape_cast %179 : vector<128xf32> to vector<128x1xf32>
    %cst_79 = arith.constant 1.562500e-02 : f32
    %181 = vector.broadcast %cst_79 : f32 to vector<128x1xf32>
    %182 = arith.mulf %180, %181 : vector<128x1xf32>
    %183 = vector.broadcast %182 : vector<128x1xf32> to vector<128x128xf32>
    %184 = arith.subf %174, %183 : vector<128x128xf32>
    %185 = vector.broadcast %13 : vector<1x128xf32> to vector<128x128xf32>
    %186 = arith.mulf %184, %185 : vector<128x128xf32>
    %187 = arith.mulf %186, %186 : vector<128x128xf32>
    %cst_80 = arith.constant dense<0.000000e+00> : vector<128xf32>
    %188 = vector.multi_reduction <add>, %187, %cst_80 [1] : vector<128x128xf32> to vector<128xf32>
    %189 = vector.shape_cast %188 : vector<128xf32> to vector<128x1xf32>
    %cst_81 = arith.constant 1.562500e-02 : f32
    %190 = vector.broadcast %cst_81 : f32 to vector<128x1xf32>
    %191 = arith.mulf %189, %190 : vector<128x1xf32>
    %cst_82 = arith.constant 9.99999974E-6 : f32
    %192 = vector.broadcast %cst_82 : f32 to vector<128x1xf32>
    %193 = arith.addf %191, %192 : vector<128x1xf32>
    %194 = math.rsqrt %193 : vector<128x1xf32>
    %195 = vector.broadcast %194 : vector<128x1xf32> to vector<128x128xf32>
    %196 = arith.mulf %186, %195 : vector<128x128xf32>
    %197 = vector.broadcast %176 : vector<1x128xf32> to vector<128x128xf32>
    %198 = arith.mulf %196, %197 : vector<128x128xf32>
    %199 = vector.broadcast %178 : vector<1x128xf32> to vector<128x128xf32>
    %200 = arith.addf %198, %199 : vector<128x128xf32>
    %201 = vector.extract_strided_slice %25 {offsets = [0, 640], sizes = [128, 128], strides = [1, 1]} : vector<128x768xf32> to vector<128x128xf32>
    %c1_83 = arith.constant 1 : index
    %c0_84 = arith.constant 0 : index
    %c0_85 = arith.constant 0 : index
    %202 = vector.load %arg8[%c1_83, %c0_84, %c0_85] : memref<2x1x128xf32, #tpu.memory_space<vmem>>, vector<1x1x128xf32>
    %203 = vector.shape_cast %202 : vector<1x1x128xf32> to vector<1x128xf32>
    %c1_86 = arith.constant 1 : index
    %c0_87 = arith.constant 0 : index
    %c0_88 = arith.constant 0 : index
    %204 = vector.load %arg9[%c1_86, %c0_87, %c0_88] : memref<2x1x128xf32, #tpu.memory_space<vmem>>, vector<1x1x128xf32>
    %205 = vector.shape_cast %204 : vector<1x1x128xf32> to vector<1x128xf32>
    %cst_89 = arith.constant dense<0.000000e+00> : vector<128xf32>
    %206 = vector.multi_reduction <add>, %201, %cst_89 [1] : vector<128x128xf32> to vector<128xf32>
    %207 = vector.shape_cast %206 : vector<128xf32> to vector<128x1xf32>
    %cst_90 = arith.constant 0.0384615399 : f32
    %208 = vector.broadcast %cst_90 : f32 to vector<128x1xf32>
    %209 = arith.mulf %207, %208 : vector<128x1xf32>
    %210 = vector.broadcast %209 : vector<128x1xf32> to vector<128x128xf32>
    %211 = arith.subf %201, %210 : vector<128x128xf32>
    %212 = vector.broadcast %18 : vector<1x128xf32> to vector<128x128xf32>
    %213 = arith.mulf %211, %212 : vector<128x128xf32>
    %214 = arith.mulf %213, %213 : vector<128x128xf32>
    %cst_91 = arith.constant dense<0.000000e+00> : vector<128xf32>
    %215 = vector.multi_reduction <add>, %214, %cst_91 [1] : vector<128x128xf32> to vector<128xf32>
    %216 = vector.shape_cast %215 : vector<128xf32> to vector<128x1xf32>
    %cst_92 = arith.constant 0.0384615399 : f32
    %217 = vector.broadcast %cst_92 : f32 to vector<128x1xf32>
    %218 = arith.mulf %216, %217 : vector<128x1xf32>
    %cst_93 = arith.constant 9.99999974E-6 : f32
    %219 = vector.broadcast %cst_93 : f32 to vector<128x1xf32>
    %220 = arith.addf %218, %219 : vector<128x1xf32>
    %221 = math.rsqrt %220 : vector<128x1xf32>
    %222 = vector.broadcast %221 : vector<128x1xf32> to vector<128x128xf32>
    %223 = arith.mulf %213, %222 : vector<128x128xf32>
    %224 = vector.broadcast %203 : vector<1x128xf32> to vector<128x128xf32>
    %225 = arith.mulf %223, %224 : vector<128x128xf32>
    %226 = vector.broadcast %205 : vector<1x128xf32> to vector<128x128xf32>
    %227 = arith.addf %225, %226 : vector<128x128xf32>
    %228 = vector.extract_strided_slice %173 {offsets = [0, 0], sizes = [64, 128], strides = [1, 1]} : vector<128x128xf32> to vector<64x128xf32>
    %229 = arith.truncf %228 : vector<64x128xf32> to vector<64x128xbf16>
    %230 = vector.extract_strided_slice %200 {offsets = [0, 0], sizes = [64, 128], strides = [1, 1]} : vector<128x128xf32> to vector<64x128xf32>
    %231 = arith.truncf %230 : vector<64x128xf32> to vector<64x128xbf16>
    %232 = vector.extract_strided_slice %227 {offsets = [0, 0], sizes = [64, 128], strides = [1, 1]} : vector<128x128xf32> to vector<64x128xf32>
    %233 = arith.truncf %232 : vector<64x128xf32> to vector<64x128xbf16>
    %cst_94 = arith.constant dense<0.000000e+00> : vector<64x64xf32>
    %234 = tpu.matmul %229, %231, %cst_94 {dimension_numbers = #tpu.dot_dimension_numbers<[1], [1], [0], [0], [0, 0, 1, 0], [], []>} : vector<64x128xbf16>, vector<64x128xbf16>, vector<64x64xf32> -> vector<64x64xf32>
    %cst_95 = arith.constant dense<0xFF800000> : vector<64xf32>
    %235 = vector.multi_reduction <maximumf>, %234, %cst_95 [1] : vector<64x64xf32> to vector<64xf32>
    %236 = vector.shape_cast %235 : vector<64xf32> to vector<64x1xf32>
    %237 = vector.broadcast %236 : vector<64x1xf32> to vector<64x64xf32>
    %238 = arith.subf %234, %237 : vector<64x64xf32>
    %239 = math.exp %238 : vector<64x64xf32>
    %cst_96 = arith.constant dense<0.000000e+00> : vector<64xf32>
    %240 = vector.multi_reduction <add>, %239, %cst_96 [1] : vector<64x64xf32> to vector<64xf32>
    %241 = vector.shape_cast %240 : vector<64xf32> to vector<64x1xf32>
    %242 = tpu.reciprocal %241 {approx = true} : vector<64x1xf32> -> vector<64x1xf32>
    %243 = vector.broadcast %242 : vector<64x1xf32> to vector<64x64xf32>
    %244 = arith.mulf %239, %243 : vector<64x64xf32>
    %245 = arith.truncf %244 : vector<64x64xf32> to vector<64x64xbf16>
    %cst_97 = arith.constant dense<0.000000e+00> : vector<64x128xf32>
    %246 = tpu.matmul %245, %233, %cst_97 {dimension_numbers = #tpu.dot_dimension_numbers<[1], [0], [0], [1], [0, 0, 1, 1], [], []>} : vector<64x64xbf16>, vector<64x128xbf16>, vector<64x128xf32> -> vector<64x128xf32>
    %c0_98 = arith.constant 0 : index
    %c128 = arith.constant 128 : index
    %247 = vector.load %arg18[%c0_98, %c128] : memref<128x256xf32, #tpu.memory_space<vmem>>, vector<64x128xf32>
    tpu.vector_store %arg18[%c0_98, %c128], %246 {strides = array<i32>} : memref<128x256xf32, #tpu.memory_space<vmem>>, vector<64x128xf32>,
    %248 = vector.extract_strided_slice %173 {offsets = [64, 0], sizes = [64, 128], strides = [1, 1]} : vector<128x128xf32> to vector<64x128xf32>
    %249 = arith.truncf %248 : vector<64x128xf32> to vector<64x128xbf16>
    %250 = vector.extract_strided_slice %200 {offsets = [64, 0], sizes = [64, 128], strides = [1, 1]} : vector<128x128xf32> to vector<64x128xf32>
    %251 = arith.truncf %250 : vector<64x128xf32> to vector<64x128xbf16>
    %252 = vector.extract_strided_slice %227 {offsets = [64, 0], sizes = [64, 128], strides = [1, 1]} : vector<128x128xf32> to vector<64x128xf32>
    %253 = arith.truncf %252 : vector<64x128xf32> to vector<64x128xbf16>
    %cst_99 = arith.constant dense<0.000000e+00> : vector<64x64xf32>
    %254 = tpu.matmul %249, %251, %cst_99 {dimension_numbers = #tpu.dot_dimension_numbers<[1], [1], [0], [0], [0, 0, 1, 0], [], []>} : vector<64x128xbf16>, vector<64x128xbf16>, vector<64x64xf32> -> vector<64x64xf32>
    %cst_100 = arith.constant dense<0xFF800000> : vector<64xf32>
    %255 = vector.multi_reduction <maximumf>, %254, %cst_100 [1] : vector<64x64xf32> to vector<64xf32>
    %256 = vector.shape_cast %255 : vector<64xf32> to vector<64x1xf32>
    %257 = vector.broadcast %256 : vector<64x1xf32> to vector<64x64xf32>
    %258 = arith.subf %254, %257 : vector<64x64xf32>
    %259 = math.exp %258 : vector<64x64xf32>
    %cst_101 = arith.constant dense<0.000000e+00> : vector<64xf32>
    %260 = vector.multi_reduction <add>, %259, %cst_101 [1] : vector<64x64xf32> to vector<64xf32>
    %261 = vector.shape_cast %260 : vector<64xf32> to vector<64x1xf32>
    %262 = tpu.reciprocal %261 {approx = true} : vector<64x1xf32> -> vector<64x1xf32>
    %263 = vector.broadcast %262 : vector<64x1xf32> to vector<64x64xf32>
    %264 = arith.mulf %259, %263 : vector<64x64xf32>
    %265 = arith.truncf %264 : vector<64x64xf32> to vector<64x64xbf16>
    %cst_102 = arith.constant dense<0.000000e+00> : vector<64x128xf32>
    %266 = tpu.matmul %265, %253, %cst_102 {dimension_numbers = #tpu.dot_dimension_numbers<[1], [0], [0], [1], [0, 0, 1, 1], [], []>} : vector<64x64xbf16>, vector<64x128xbf16>, vector<64x128xf32> -> vector<64x128xf32>
    %c64_103 = arith.constant 64 : index
    %c128_104 = arith.constant 128 : index
    %267 = vector.load %arg18[%c64_103, %c128_104] : memref<128x256xf32, #tpu.memory_space<vmem>>, vector<64x128xf32>
    tpu.vector_store %arg18[%c64_103, %c128_104], %266 {strides = array<i32>} : memref<128x256xf32, #tpu.memory_space<vmem>>, vector<64x128xf32>,
    %c0_105 = arith.constant 0 : index
    %c0_106 = arith.constant 0 : index
    %268 = vector.load %arg18[%c0_105, %c0_106] : memref<128x256xf32, #tpu.memory_space<vmem>>, vector<128x256xf32>
    %269 = arith.truncf %268 : vector<128x256xf32> to vector<128x256xbf16>
    %c0_107 = arith.constant 0 : index
    %c0_108 = arith.constant 0 : index
    %270 = vector.load %arg10[%c0_107, %c0_108] : memref<256x128xf32, #tpu.memory_space<vmem>>, vector<256x128xf32>
    %271 = arith.truncf %270 : vector<256x128xf32> to vector<256x128xbf16>
    %cst_109 = arith.constant dense<0.000000e+00> : vector<128x128xf32>
    %272 = tpu.matmul %269, %271, %cst_109 {dimension_numbers = #tpu.dot_dimension_numbers<[1], [0], [0], [1], [0, 0, 1, 1], [], []>} : vector<128x256xbf16>, vector<256x128xbf16>, vector<128x128xf32> -> vector<128x128xf32>
    %c0_110 = arith.constant 0 : index
    %c0_111 = arith.constant 0 : index
    %273 = vector.load %arg11[%c0_110, %c0_111] : memref<1x128xf32, #tpu.memory_space<vmem>>, vector<1x128xf32>
    %274 = vector.broadcast %273 : vector<1x128xf32> to vector<128x128xf32>
    %275 = arith.addf %272, %274 : vector<128x128xf32>
    %cst_112 = arith.constant 0.000000e+00 : f32
    %276 = vector.broadcast %cst_112 : f32 to vector<128x128xf32>
    %277 = arith.maximumf %275, %276 : vector<128x128xf32>
    %278 = arith.truncf %277 : vector<128x128xf32> to vector<128x128xbf16>
    %c0_113 = arith.constant 0 : index
    %c0_114 = arith.constant 0 : index
    %279 = vector.load %arg12[%c0_113, %c0_114] : memref<128x128xf32, #tpu.memory_space<vmem>>, vector<128x128xf32>
    %280 = arith.truncf %279 : vector<128x128xf32> to vector<128x128xbf16>
    %cst_115 = arith.constant dense<0.000000e+00> : vector<128x128xf32>
    %281 = tpu.matmul %278, %280, %cst_115 {dimension_numbers = #tpu.dot_dimension_numbers<[1], [0], [0], [1], [0, 0, 1, 1], [], []>} : vector<128x128xbf16>, vector<128x128xbf16>, vector<128x128xf32> -> vector<128x128xf32>
    %c0_116 = arith.constant 0 : index
    %c0_117 = arith.constant 0 : index
    %282 = vector.load %arg13[%c0_116, %c0_117] : memref<1x128xf32, #tpu.memory_space<vmem>>, vector<1x128xf32>
    %283 = vector.broadcast %282 : vector<1x128xf32> to vector<128x128xf32>
    %284 = arith.addf %281, %283 : vector<128x128xf32>
    %cst_118 = arith.constant 0.000000e+00 : f32
    %285 = vector.broadcast %cst_118 : f32 to vector<128x128xf32>
    %286 = arith.maximumf %284, %285 : vector<128x128xf32>
    %287 = arith.addf %8, %286 : vector<128x128xf32>
    %c0_119 = arith.constant 0 : index
    %c0_120 = arith.constant 0 : index
    %288 = vector.load %arg14[%c0_119, %c0_120] : memref<1x128xf32, #tpu.memory_space<vmem>>, vector<1x128xf32>
    %c0_121 = arith.constant 0 : index
    %c0_122 = arith.constant 0 : index
    %289 = vector.load %arg15[%c0_121, %c0_122] : memref<1x128xf32, #tpu.memory_space<vmem>>, vector<1x128xf32>
    %cst_123 = arith.constant dense<0.000000e+00> : vector<128xf32>
    %290 = vector.multi_reduction <add>, %287, %cst_123 [1] : vector<128x128xf32> to vector<128xf32>
    %291 = vector.shape_cast %290 : vector<128xf32> to vector<128x1xf32>
    %cst_124 = arith.constant 0.0384615399 : f32
    %292 = vector.broadcast %cst_124 : f32 to vector<128x1xf32>
    %293 = arith.mulf %291, %292 : vector<128x1xf32>
    %294 = vector.broadcast %293 : vector<128x1xf32> to vector<128x128xf32>
    %295 = arith.subf %287, %294 : vector<128x128xf32>
    %296 = vector.broadcast %18 : vector<1x128xf32> to vector<128x128xf32>
    %297 = arith.mulf %295, %296 : vector<128x128xf32>
    %298 = arith.mulf %297, %297 : vector<128x128xf32>
    %cst_125 = arith.constant dense<0.000000e+00> : vector<128xf32>
    %299 = vector.multi_reduction <add>, %298, %cst_125 [1] : vector<128x128xf32> to vector<128xf32>
    %300 = vector.shape_cast %299 : vector<128xf32> to vector<128x1xf32>
    %cst_126 = arith.constant 0.0384615399 : f32
    %301 = vector.broadcast %cst_126 : f32 to vector<128x1xf32>
    %302 = arith.mulf %300, %301 : vector<128x1xf32>
    %cst_127 = arith.constant 9.99999974E-6 : f32
    %303 = vector.broadcast %cst_127 : f32 to vector<128x1xf32>
    %304 = arith.addf %302, %303 : vector<128x1xf32>
    %305 = math.rsqrt %304 : vector<128x1xf32>
    %306 = vector.broadcast %305 : vector<128x1xf32> to vector<128x128xf32>
    %307 = arith.mulf %297, %306 : vector<128x128xf32>
    %308 = vector.broadcast %288 : vector<1x128xf32> to vector<128x128xf32>
    %309 = arith.mulf %307, %308 : vector<128x128xf32>
    %310 = vector.broadcast %289 : vector<1x128xf32> to vector<128x128xf32>
    %311 = arith.addf %309, %310 : vector<128x128xf32>
    %312 = vector.extract_strided_slice %311 {offsets = [0, 0], sizes = [64, 26], strides = [1, 1]} : vector<128x128xf32> to vector<64x26xf32>
    %c0_128 = arith.constant 0 : index
    %c0_129 = arith.constant 0 : index
    %c0_130 = arith.constant 0 : index
    %313 = vector.load %arg16[%c0_128, %c0_129, %c0_130] : memref<2x64x26xf32, #tpu.memory_space<vmem>>, vector<1x64x26xf32>
    %314 = vector.shape_cast %313 : vector<1x64x26xf32> to vector<64x26xf32>
    %315 = vector.shape_cast %312 : vector<64x26xf32> to vector<1x64x26xf32>
    tpu.vector_store %arg16[%c0_128, %c0_129, %c0_130], %315 {strides = array<i32>} : memref<2x64x26xf32, #tpu.memory_space<vmem>>, vector<1x64x26xf32>,
    %316 = vector.extract_strided_slice %311 {offsets = [64, 0], sizes = [64, 26], strides = [1, 1]} : vector<128x128xf32> to vector<64x26xf32>
    %c1_131 = arith.constant 1 : index
    %c0_132 = arith.constant 0 : index
    %c0_133 = arith.constant 0 : index
    %317 = vector.load %arg16[%c1_131, %c0_132, %c0_133] : memref<2x64x26xf32, #tpu.memory_space<vmem>>, vector<1x64x26xf32>
    %318 = vector.shape_cast %317 : vector<1x64x26xf32> to vector<64x26xf32>
    %319 = vector.shape_cast %316 : vector<64x26xf32> to vector<1x64x26xf32>
    tpu.vector_store %arg16[%c1_131, %c0_132, %c0_133], %319 {strides = array<i32>} : memref<2x64x26xf32, #tpu.memory_space<vmem>>, vector<1x64x26xf32>,
    return
  }
  func.func @transform_0(%arg0: i32) -> (i32, i32, i32) {
    %c0_i32 = arith.constant 0 : i32
    %c0_i32_0 = arith.constant 0 : i32
    %c0_i32_1 = arith.constant 0 : i32
    return %arg0, %c0_i32, %c0_i32_0 : i32, i32, i32
  }
  func.func @transform_1(%arg0: i32) -> (i32, i32) {
    %c0_i32 = arith.constant 0 : i32
    %c0_i32_0 = arith.constant 0 : i32
    %c0_i32_1 = arith.constant 0 : i32
    return %c0_i32, %c0_i32_0 : i32, i32
  }
  func.func @transform_2(%arg0: i32) -> (i32, i32) {
    %c0_i32 = arith.constant 0 : i32
    %c0_i32_0 = arith.constant 0 : i32
    %c0_i32_1 = arith.constant 0 : i32
    return %c0_i32, %c0_i32_0 : i32, i32
  }
  func.func @transform_3(%arg0: i32) -> (i32, i32, i32) {
    %c0_i32 = arith.constant 0 : i32
    %c0_i32_0 = arith.constant 0 : i32
    %c0_i32_1 = arith.constant 0 : i32
    %c0_i32_2 = arith.constant 0 : i32
    return %c0_i32, %c0_i32_0, %c0_i32_1 : i32, i32, i32
  }
  func.func @transform_4(%arg0: i32) -> (i32, i32, i32) {
    %c0_i32 = arith.constant 0 : i32
    %c0_i32_0 = arith.constant 0 : i32
    %c0_i32_1 = arith.constant 0 : i32
    %c0_i32_2 = arith.constant 0 : i32
    return %c0_i32, %c0_i32_0, %c0_i32_1 : i32, i32, i32
  }
  func.func @transform_5(%arg0: i32) -> (i32, i32, i32) {
    %c0_i32 = arith.constant 0 : i32
    %c0_i32_0 = arith.constant 0 : i32
    %c0_i32_1 = arith.constant 0 : i32
    %c0_i32_2 = arith.constant 0 : i32
    return %c0_i32, %c0_i32_0, %c0_i32_1 : i32, i32, i32
  }
  func.func @transform_6(%arg0: i32) -> (i32, i32, i32) {
    %c0_i32 = arith.constant 0 : i32
    %c0_i32_0 = arith.constant 0 : i32
    %c0_i32_1 = arith.constant 0 : i32
    %c0_i32_2 = arith.constant 0 : i32
    return %c0_i32, %c0_i32_0, %c0_i32_1 : i32, i32, i32
  }
  func.func @transform_7(%arg0: i32) -> (i32, i32, i32) {
    %c0_i32 = arith.constant 0 : i32
    %c0_i32_0 = arith.constant 0 : i32
    %c0_i32_1 = arith.constant 0 : i32
    %c0_i32_2 = arith.constant 0 : i32
    return %c0_i32, %c0_i32_0, %c0_i32_1 : i32, i32, i32
  }
  func.func @transform_8(%arg0: i32) -> (i32, i32, i32) {
    %c0_i32 = arith.constant 0 : i32
    %c0_i32_0 = arith.constant 0 : i32
    %c0_i32_1 = arith.constant 0 : i32
    %c0_i32_2 = arith.constant 0 : i32
    return %c0_i32, %c0_i32_0, %c0_i32_1 : i32, i32, i32
  }
  func.func @transform_9(%arg0: i32) -> (i32, i32) {
    %c0_i32 = arith.constant 0 : i32
    %c0_i32_0 = arith.constant 0 : i32
    %c0_i32_1 = arith.constant 0 : i32
    return %c0_i32, %c0_i32_0 : i32, i32
  }
  func.func @transform_10(%arg0: i32) -> (i32, i32) {
    %c0_i32 = arith.constant 0 : i32
    %c0_i32_0 = arith.constant 0 : i32
    %c0_i32_1 = arith.constant 0 : i32
    return %c0_i32, %c0_i32_0 : i32, i32
  }
  func.func @transform_11(%arg0: i32) -> (i32, i32) {
    %c0_i32 = arith.constant 0 : i32
    %c0_i32_0 = arith.constant 0 : i32
    %c0_i32_1 = arith.constant 0 : i32
    return %c0_i32, %c0_i32_0 : i32, i32
  }
  func.func @transform_12(%arg0: i32) -> (i32, i32) {
    %c0_i32 = arith.constant 0 : i32
    %c0_i32_0 = arith.constant 0 : i32
    %c0_i32_1 = arith.constant 0 : i32
    return %c0_i32, %c0_i32_0 : i32, i32
  }
  func.func @transform_13(%arg0: i32) -> (i32, i32) {
    %c0_i32 = arith.constant 0 : i32
    %c0_i32_0 = arith.constant 0 : i32
    %c0_i32_1 = arith.constant 0 : i32
    return %c0_i32, %c0_i32_0 : i32, i32
  }
  func.func @transform_14(%arg0: i32) -> (i32, i32) {
    %c0_i32 = arith.constant 0 : i32
    %c0_i32_0 = arith.constant 0 : i32
    %c0_i32_1 = arith.constant 0 : i32
    return %c0_i32, %c0_i32_0 : i32, i32
  }
  func.func @transform_15(%arg0: i32) -> (i32, i32, i32) {
    %c0_i32 = arith.constant 0 : i32
    %c0_i32_0 = arith.constant 0 : i32
    %c0_i32_1 = arith.constant 0 : i32
    return %arg0, %c0_i32, %c0_i32_0 : i32, i32, i32
  }
}

</mosaic_0001>

<llo_original>
// kernel: attention_module_forward.1
$region0: #{attention_module_forward.1}
  #allocation0 [shape = 'u32[]', space=smem, size = 0x4, offset = 0x4, fixed_abs, tag = 'smem constant byte address 0x4 - core index']
  #allocation1 [shape = 'u32[144,128]{1,0:T(1,128)}', space=vmem, size = 0x12000, scoped, tag = 'internal scratch']
  #allocation2 [shape = 'f32[128,128]{1,0:T(8,128)}', space=vmem, size = 0x10000, scoped, tag = 'scratch operand']
  #allocation3 [shape = 'f32[128,256]{1,0:T(8,128)}', space=vmem, size = 0x20000, scoped, tag = 'scratch operand']
  %s0 = inlined_call_operand.vmem [shape: f32[4,64,26], index: 0, kind: input, shape index: {}]
  %s1 = inlined_call_operand.hbm [shape: f32[128,768], index: 1, kind: input, shape index: {}]
  %s2 = inlined_call_operand.vmem [shape: f32[1,768], index: 2, kind: input, shape index: {}]
  %s3 = inlined_call_operand.vmem [shape: f32[2,1,128], index: 3, kind: input, shape index: {}]
  %s4 = inlined_call_operand.vmem [shape: f32[2,1,128], index: 4, kind: input, shape index: {}]
  %s5 = inlined_call_operand.vmem [shape: f32[2,1,128], index: 5, kind: input, shape index: {}]
  %s6 = inlined_call_operand.vmem [shape: f32[2,1,128], index: 6, kind: input, shape index: {}]
  %s7 = inlined_call_operand.vmem [shape: f32[2,1,128], index: 7, kind: input, shape index: {}]
  %s8 = inlined_call_operand.vmem [shape: f32[2,1,128], index: 8, kind: input, shape index: {}]
  %s9 = inlined_call_operand.vmem [shape: f32[256,128], index: 9, kind: input, shape index: {}]
  %s10 = inlined_call_operand.vmem [shape: f32[1,128], index: 10, kind: input, shape index: {}]
  %s11 = inlined_call_operand.hbm [shape: f32[128,128], index: 11, kind: input, shape index: {}]
  %s12 = inlined_call_operand.vmem [shape: f32[1,128], index: 12, kind: input, shape index: {}]
  %s13 = inlined_call_operand.vmem [shape: f32[1,128], index: 13, kind: input, shape index: {}]
  %s14 = inlined_call_operand.vmem [shape: f32[1,128], index: 14, kind: input, shape index: {}]
  %s15 = inlined_call_operand.vmem [shape: f32[4,64,26], index: 15, kind: output, shape index: {}]
  %s16 = sld [smem:[#allocation0]]
  $region101: #{attention_module_forward.1} parent=0
    _
  %s18 = ssub.s32 1, %s16
  %s19 = scalar_select 0, %s18, %s16
  $region1: #{attention_module_forward.1} parent=0
    #allocation4 [shape = 'u8[393216]{0}', space=vmem, size = 0x60000, scoped, tag = 'input window, operand 1, single buffered']
    #allocation5 [shape = 's32[2]{0}', space=sflag, size = 0x8, scoped, tag = 'scoped memory for attention_module_forward.1']
    #allocation6 [shape = 'u8[65536]{0}', space=vmem, size = 0x10000, scoped, tag = 'input window, operand 11, single buffered']
    #allocation7 [shape = 's32[1]{0}', space=sflag, size = 0x4, scoped, tag = 'scoped memory for attention_module_forward.1']
    %20 = vsyncpa [#allocation5], 0
    %21 = vsyncpa [#allocation7], 0
    loop: start=0, step=1, limit=4
    $region2: #{attention_module_forward.1} parent=1 // loop_pre_header
      _
    $region3: #{attention_module_forward.1} parent=1 // loop_header
      %s23 = sphi 0, %s27
      %p24 = scmp.ge.s32.totalorder %s23, 4
      %s33 = sphi 0, %s35
      %s36 = sphi 0, %s33
      %s37 = sphi 0, %s36
      %s53 = sphi 0, %s37
      %s57 = sphi 0, %s57
      %s59 = sphi 0, %s57
      %s60 = sphi 0, %s59
      %s74 = sphi 0, %s60
      %s78 = sphi 0, %s78
      %s80 = sphi 0, %s78
      %s81 = sphi 0, %s80
      %s95 = sphi 0, %s81
      %s99 = sphi 0, %s99
      %s101 = sphi 0, %s99
      %s102 = sphi 0, %s101
      %s116 = sphi 0, %s102
      %s120 = sphi 0, %s120
      %s122 = sphi 0, %s120
      %s123 = sphi 0, %s122
      %s137 = sphi 0, %s123
      %s141 = sphi 0, %s141
      %s143 = sphi 0, %s141
      %s144 = sphi 0, %s143
      %s158 = sphi 0, %s144
      %s162 = sphi 0, %s162
      %s164 = sphi 0, %s162
      %s165 = sphi 0, %s164
      %s179 = sphi 0, %s165
      %s183 = sphi 0, %s183
      %s185 = sphi 0, %s183
      %s186 = sphi 0, %s185
      %s200 = sphi 0, %s186
      %s204 = sphi 0, %s204
      %s206 = sphi 0, %s204
      %s207 = sphi 0, %s206
      %s221 = sphi 0, %s207
      %s225 = sphi 0, %s225
      %s227 = sphi 0, %s225
      %s228 = sphi 0, %s227
      %s242 = sphi 0, %s228
      %s246 = sphi 0, %s246
      %s248 = sphi 0, %s246
      %s249 = sphi 0, %s248
      %s263 = sphi 0, %s249
      %s267 = sphi 0, %s267
      %s269 = sphi 0, %s267
      %s270 = sphi 0, %s269
      %s284 = sphi 0, %s270
      %s288 = sphi 0, %s288
      %s290 = sphi 0, %s288
      %s291 = sphi 0, %s290
      %s305 = sphi 0, %s291
      %s309 = sphi 0, %s309
      %s311 = sphi 0, %s309
      %s312 = sphi 0, %s311
      %s326 = sphi 0, %s312
      %s330 = sphi 0, %s330
      %s332 = sphi 0, %s330
      %s333 = sphi 0, %s332
      %s347 = sphi 0, %s333
      %s353 = sphi 0, %s355
      %s356 = sphi 0, %s353
      %s357 = sphi 0, %s356
      %s373 = sphi 0, %s357
    $region4: #{attention_module_forward.1} parent=1 // loop_header_branch
      %26 = sbr.rel (%p24) target = $region8
    $region5: #{attention_module_forward.1} parent=1 // loop_body
      %s28 = ssub.s32 %s23, 1
      %s29 = ssub.s32 %s23, 2
      %s30 = sadd.s32 %s23, 1
      %s31 = ssub.s32 %s23, %s30
      %p32 = scmp.eq.s32.totalorder %s31, 0
      %s34 = sadd.s32 %s33, 1
      %s35 = scalar_select %p32, %s33, %s34
      %p38 = pneg %p32
      %p39 = scmp.eq.s32.totalorder %s23, 1
      %p40 = por %p38, %p39
      %p41 = scmp.ne.s32.totalorder %s33, %s36
      %p42 = scmp.eq.s32.totalorder %s23, 0
      %p43 = por %p41, %p42
      %p44 = scmp.ne.s32.totalorder %s33, %s36
      %p45 = scmp.eq.s32.totalorder %s28, 1
      %p46 = por %p44, %p45
      %p47 = scmp.ne.s32.totalorder %s36, %s37
      %p48 = scmp.eq.s32.totalorder %s28, 0
      %p49 = por %p47, %p48
      %p50 = scmp.ne.s32.totalorder %s36, %s37
      %p51 = scmp.eq.s32.totalorder %s29, 1
      %p52 = por %p50, %p51
      %p54 = scmp.ne.s32.totalorder %s37, %s53
      %p55 = scmp.eq.s32.totalorder %s29, 0
      %p56 = por %p54, %p55
      %s58 = sadd.s32 %s57, 1
      %p61 = scmp.eq.s32.totalorder %s23, 1
      %p62 = scmp.ne.s32.totalorder %s57, %s59
      %p63 = scmp.eq.s32.totalorder %s23, 0
      %p64 = por %p62, %p63
      %p65 = scmp.ne.s32.totalorder %s57, %s59
      %p66 = scmp.eq.s32.totalorder %s28, 1
      %p67 = por %p65, %p66
      %p68 = scmp.ne.s32.totalorder %s59, %s60
      %p69 = scmp.eq.s32.totalorder %s28, 0
      %p70 = por %p68, %p69
      %p71 = scmp.ne.s32.totalorder %s59, %s60
      %p72 = scmp.eq.s32.totalorder %s29, 1
      %p73 = por %p71, %p72
      %p75 = scmp.ne.s32.totalorder %s60, %s74
      %p76 = scmp.eq.s32.totalorder %s29, 0
      %p77 = por %p75, %p76
      %s79 = sadd.s32 %s78, 1
      %p82 = scmp.eq.s32.totalorder %s23, 1
      %p83 = scmp.ne.s32.totalorder %s78, %s80
      %p84 = scmp.eq.s32.totalorder %s23, 0
      %p85 = por %p83, %p84
      %p86 = scmp.ne.s32.totalorder %s78, %s80
      %p87 = scmp.eq.s32.totalorder %s28, 1
      %p88 = por %p86, %p87
      %p89 = scmp.ne.s32.totalorder %s80, %s81
      %p90 = scmp.eq.s32.totalorder %s28, 0
      %p91 = por %p89, %p90
      %p92 = scmp.ne.s32.totalorder %s80, %s81
      %p93 = scmp.eq.s32.totalorder %s29, 1
      %p94 = por %p92, %p93
      %p96 = scmp.ne.s32.totalorder %s81, %s95
      %p97 = scmp.eq.s32.totalorder %s29, 0
      %p98 = por %p96, %p97
      %s100 = sadd.s32 %s99, 1
      %p103 = scmp.eq.s32.totalorder %s23, 1
      %p104 = scmp.ne.s32.totalorder %s99, %s101
      %p105 = scmp.eq.s32.totalorder %s23, 0
      %p106 = por %p104, %p105
      %p107 = scmp.ne.s32.totalorder %s99, %s101
      %p108 = scmp.eq.s32.totalorder %s28, 1
      %p109 = por %p107, %p108
      %p110 = scmp.ne.s32.totalorder %s101, %s102
      %p111 = scmp.eq.s32.totalorder %s28, 0
      %p112 = por %p110, %p111
      %p113 = scmp.ne.s32.totalorder %s101, %s102
      %p114 = scmp.eq.s32.totalorder %s29, 1
      %p115 = por %p113, %p114
      %p117 = scmp.ne.s32.totalorder %s102, %s116
      %p118 = scmp.eq.s32.totalorder %s29, 0
      %p119 = por %p117, %p118
      %s121 = sadd.s32 %s120, 1
      %p124 = scmp.eq.s32.totalorder %s23, 1
      %p125 = scmp.ne.s32.totalorder %s120, %s122
      %p126 = scmp.eq.s32.totalorder %s23, 0
      %p127 = por %p125, %p126
      %p128 = scmp.ne.s32.totalorder %s120, %s122
      %p129 = scmp.eq.s32.totalorder %s28, 1
      %p130 = por %p128, %p129
      %p131 = scmp.ne.s32.totalorder %s122, %s123
      %p132 = scmp.eq.s32.totalorder %s28, 0
      %p133 = por %p131, %p132
      %p134 = scmp.ne.s32.totalorder %s122, %s123
      %p135 = scmp.eq.s32.totalorder %s29, 1
      %p136 = por %p134, %p135
      %p138 = scmp.ne.s32.totalorder %s123, %s137
      %p139 = scmp.eq.s32.totalorder %s29, 0
      %p140 = por %p138, %p139
      %s142 = sadd.s32 %s141, 1
      %p145 = scmp.eq.s32.totalorder %s23, 1
      %p146 = scmp.ne.s32.totalorder %s141, %s143
      %p147 = scmp.eq.s32.totalorder %s23, 0
      %p148 = por %p146, %p147
      %p149 = scmp.ne.s32.totalorder %s141, %s143
      %p150 = scmp.eq.s32.totalorder %s28, 1
      %p151 = por %p149, %p150
      %p152 = scmp.ne.s32.totalorder %s143, %s144
      %p153 = scmp.eq.s32.totalorder %s28, 0
      %p154 = por %p152, %p153
      %p155 = scmp.ne.s32.totalorder %s143, %s144
      %p156 = scmp.eq.s32.totalorder %s29, 1
      %p157 = por %p155, %p156
      %p159 = scmp.ne.s32.totalorder %s144, %s158
      %p160 = scmp.eq.s32.totalorder %s29, 0
      %p161 = por %p159, %p160
      %s163 = sadd.s32 %s162, 1
      %p166 = scmp.eq.s32.totalorder %s23, 1
      %p167 = scmp.ne.s32.totalorder %s162, %s164
      %p168 = scmp.eq.s32.totalorder %s23, 0
      %p169 = por %p167, %p168
      %p170 = scmp.ne.s32.totalorder %s162, %s164
      %p171 = scmp.eq.s32.totalorder %s28, 1
      %p172 = por %p170, %p171
      %p173 = scmp.ne.s32.totalorder %s164, %s165
      %p174 = scmp.eq.s32.totalorder %s28, 0
      %p175 = por %p173, %p174
      %p176 = scmp.ne.s32.totalorder %s164, %s165
      %p177 = scmp.eq.s32.totalorder %s29, 1
      %p178 = por %p176, %p177
      %p180 = scmp.ne.s32.totalorder %s165, %s179
      %p181 = scmp.eq.s32.totalorder %s29, 0
      %p182 = por %p180, %p181
      %s184 = sadd.s32 %s183, 1
      %p187 = scmp.eq.s32.totalorder %s23, 1
      %p188 = scmp.ne.s32.totalorder %s183, %s185
      %p189 = scmp.eq.s32.totalorder %s23, 0
      %p190 = por %p188, %p189
      %p191 = scmp.ne.s32.totalorder %s183, %s185
      %p192 = scmp.eq.s32.totalorder %s28, 1
      %p193 = por %p191, %p192
      %p194 = scmp.ne.s32.totalorder %s185, %s186
      %p195 = scmp.eq.s32.totalorder %s28, 0
      %p196 = por %p194, %p195
      %p197 = scmp.ne.s32.totalorder %s185, %s186
      %p198 = scmp.eq.s32.totalorder %s29, 1
      %p199 = por %p197, %p198
      %p201 = scmp.ne.s32.totalorder %s186, %s200
      %p202 = scmp.eq.s32.totalorder %s29, 0
      %p203 = por %p201, %p202
      %s205 = sadd.s32 %s204, 1
      %p208 = scmp.eq.s32.totalorder %s23, 1
      %p209 = scmp.ne.s32.totalorder %s204, %s206
      %p210 = scmp.eq.s32.totalorder %s23, 0
      %p211 = por %p209, %p210
      %p212 = scmp.ne.s32.totalorder %s204, %s206
      %p213 = scmp.eq.s32.totalorder %s28, 1
      %p214 = por %p212, %p213
      %p215 = scmp.ne.s32.totalorder %s206, %s207
      %p216 = scmp.eq.s32.totalorder %s28, 0
      %p217 = por %p215, %p216
      %p218 = scmp.ne.s32.totalorder %s206, %s207
      %p219 = scmp.eq.s32.totalorder %s29, 1
      %p220 = por %p218, %p219
      %p222 = scmp.ne.s32.totalorder %s207, %s221
      %p223 = scmp.eq.s32.totalorder %s29, 0
      %p224 = por %p222, %p223
      %s226 = sadd.s32 %s225, 1
      %p229 = scmp.eq.s32.totalorder %s23, 1
      %p230 = scmp.ne.s32.totalorder %s225, %s227
      %p231 = scmp.eq.s32.totalorder %s23, 0
      %p232 = por %p230, %p231
      %p233 = scmp.ne.s32.totalorder %s225, %s227
      %p234 = scmp.eq.s32.totalorder %s28, 1
      %p235 = por %p233, %p234
      %p236 = scmp.ne.s32.totalorder %s227, %s228
      %p237 = scmp.eq.s32.totalorder %s28, 0
      %p238 = por %p236, %p237
      %p239 = scmp.ne.s32.totalorder %s227, %s228
      %p240 = scmp.eq.s32.totalorder %s29, 1
      %p241 = por %p239, %p240
      %p243 = scmp.ne.s32.totalorder %s228, %s242
      %p244 = scmp.eq.s32.totalorder %s29, 0
      %p245 = por %p243, %p244
      %s247 = sadd.s32 %s246, 1
      %p250 = scmp.eq.s32.totalorder %s23, 1
      %p251 = scmp.ne.s32.totalorder %s246, %s248
      %p252 = scmp.eq.s32.totalorder %s23, 0
      %p253 = por %p251, %p252
      %p254 = scmp.ne.s32.totalorder %s246, %s248
      %p255 = scmp.eq.s32.totalorder %s28, 1
      %p256 = por %p254, %p255
      %p257 = scmp.ne.s32.totalorder %s248, %s249
      %p258 = scmp.eq.s32.totalorder %s28, 0
      %p259 = por %p257, %p258
      %p260 = scmp.ne.s32.totalorder %s248, %s249
      %p261 = scmp.eq.s32.totalorder %s29, 1
      %p262 = por %p260, %p261
      %p264 = scmp.ne.s32.totalorder %s249, %s263
      %p265 = scmp.eq.s32.totalorder %s29, 0
      %p266 = por %p264, %p265
      %s268 = sadd.s32 %s267, 1
      %p271 = scmp.eq.s32.totalorder %s23, 1
      %p272 = scmp.ne.s32.totalorder %s267, %s269
      %p273 = scmp.eq.s32.totalorder %s23, 0
      %p274 = por %p272, %p273
      %p275 = scmp.ne.s32.totalorder %s267, %s269
      %p276 = scmp.eq.s32.totalorder %s28, 1
      %p277 = por %p275, %p276
      %p278 = scmp.ne.s32.totalorder %s269, %s270
      %p279 = scmp.eq.s32.totalorder %s28, 0
      %p280 = por %p278, %p279
      %p281 = scmp.ne.s32.totalorder %s269, %s270
      %p282 = scmp.eq.s32.totalorder %s29, 1
      %p283 = por %p281, %p282
      %p285 = scmp.ne.s32.totalorder %s270, %s284
      %p286 = scmp.eq.s32.totalorder %s29, 0
      %p287 = por %p285, %p286
      %s289 = sadd.s32 %s288, 1
      %p292 = scmp.eq.s32.totalorder %s23, 1
      %p293 = scmp.ne.s32.totalorder %s288, %s290
      %p294 = scmp.eq.s32.totalorder %s23, 0
      %p295 = por %p293, %p294
      %p296 = scmp.ne.s32.totalorder %s288, %s290
      %p297 = scmp.eq.s32.totalorder %s28, 1
      %p298 = por %p296, %p297
      %p299 = scmp.ne.s32.totalorder %s290, %s291
      %p300 = scmp.eq.s32.totalorder %s28, 0
      %p301 = por %p299, %p300
      %p302 = scmp.ne.s32.totalorder %s290, %s291
      %p303 = scmp.eq.s32.totalorder %s29, 1
      %p304 = por %p302, %p303
      %p306 = scmp.ne.s32.totalorder %s291, %s305
      %p307 = scmp.eq.s32.totalorder %s29, 0
      %p308 = por %p306, %p307
      %s310 = sadd.s32 %s309, 1
      %p313 = scmp.eq.s32.totalorder %s23, 1
      %p314 = scmp.ne.s32.totalorder %s309, %s311
      %p315 = scmp.eq.s32.totalorder %s23, 0
      %p316 = por %p314, %p315
      %p317 = scmp.ne.s32.totalorder %s309, %s311
      %p318 = scmp.eq.s32.totalorder %s28, 1
      %p319 = por %p317, %p318
      %p320 = scmp.ne.s32.totalorder %s311, %s312
      %p321 = scmp.eq.s32.totalorder %s28, 0
      %p322 = por %p320, %p321
      %p323 = scmp.ne.s32.totalorder %s311, %s312
      %p324 = scmp.eq.s32.totalorder %s29, 1
      %p325 = por %p323, %p324
      %p327 = scmp.ne.s32.totalorder %s312, %s326
      %p328 = scmp.eq.s32.totalorder %s29, 0
      %p329 = por %p327, %p328
      %s331 = sadd.s32 %s330, 1
      %p334 = scmp.eq.s32.totalorder %s23, 1
      %p335 = scmp.ne.s32.totalorder %s330, %s332
      %p336 = scmp.eq.s32.totalorder %s23, 0
      %p337 = por %p335, %p336
      %p338 = scmp.ne.s32.totalorder %s330, %s332
      %p339 = scmp.eq.s32.totalorder %s28, 1
      %p340 = por %p338, %p339
      %p341 = scmp.ne.s32.totalorder %s332, %s333
      %p342 = scmp.eq.s32.totalorder %s28, 0
      %p343 = por %p341, %p342
      %p344 = scmp.ne.s32.totalorder %s332, %s333
      %p345 = scmp.eq.s32.totalorder %s29, 1
      %p346 = por %p344, %p345
      %p348 = scmp.ne.s32.totalorder %s333, %s347
      %p349 = scmp.eq.s32.totalorder %s29, 0
      %p350 = por %p348, %p349
      %s351 = ssub.s32 %s23, %s30
      %p352 = scmp.eq.s32.totalorder %s351, 0
      %s354 = sadd.s32 %s353, 1
      %s355 = scalar_select %p352, %s353, %s354
      %p358 = pneg %p352
      %p359 = scmp.eq.s32.totalorder %s23, 1
      %p360 = por %p358, %p359
      %p361 = scmp.ne.s32.totalorder %s353, %s356
      %p362 = scmp.eq.s32.totalorder %s23, 0
      %p363 = por %p361, %p362
      %p364 = scmp.ne.s32.totalorder %s353, %s356
      %p365 = scmp.eq.s32.totalorder %s28, 1
      %p366 = por %p364, %p365
      %p367 = scmp.ne.s32.totalorder %s356, %s357
      %p368 = scmp.eq.s32.totalorder %s28, 0
      %p369 = por %p367, %p368
      %p370 = scmp.ne.s32.totalorder %s356, %s357
      %p371 = scmp.eq.s32.totalorder %s29, 1
      %p372 = por %p370, %p371
      %p374 = scmp.ne.s32.totalorder %s357, %s373
      %p375 = scmp.eq.s32.totalorder %s29, 0
      %p376 = por %p374, %p375
      %p377 = scmp.le.s32.totalorder 1, %s23
      %p378 = scmp.lt.s32.totalorder %s23, 3
      %p379 = pnand %p377, %p378
      %p380 = pneg %p379
      // Predicated region
      $region9: #{attention_module_forward.1} parent=5 // pred_check
        _
      $region10: #{attention_module_forward.1} parent=5 // pred_check_branch
        %382 = sbr.rel (%p379) target = $region12
      $region11: #{attention_module_forward.1} parent=5 // pred_region
        %s383 = ssub.s32 %s23, 1
        // Predicated region
        $region13: #{attention_module_forward.1} parent=11 // pred_check
          %p384 = pneg %p70
        $region14: #{attention_module_forward.1} parent=11 // pred_check_branch
          %386 = sbr.rel (%p384) target = $region16
        $region15: #{attention_module_forward.1} parent=11 // pred_region
          %s388 = ssub.s32 12288, 12288
          %389 = vsyncadd [#allocation5], %s388
          %s390 = sshll.u32 [#allocation4], 4
          %s391 = int_to_ptr.vmem [resolvable:$true] %s390
          %396 = dma.hbm_to_vmem [thread:$0]  %s1, 12288, %s391, [#allocation5], 768, 768, 48
        $region16: #{attention_module_forward.1} parent=11 // pred_fallthru
          _
        // Predicated region
        $region17: #{attention_module_forward.1} parent=11 // pred_check
          %p397 = pneg %p91
        $region18: #{attention_module_forward.1} parent=11 // pred_check_branch
          %399 = sbr.rel (%p397) target = $region20
        $region19: #{attention_module_forward.1} parent=11 // pred_region
          _
        $region20: #{attention_module_forward.1} parent=11 // pred_fallthru
          _
        // Predicated region
        $region21: #{attention_module_forward.1} parent=11 // pred_check
          %p400 = pneg %p112
        $region22: #{attention_module_forward.1} parent=11 // pred_check_branch
          %402 = sbr.rel (%p400) target = $region24
        $region23: #{attention_module_forward.1} parent=11 // pred_region
          _
        $region24: #{attention_module_forward.1} parent=11 // pred_fallthru
          _
        // Predicated region
        $region25: #{attention_module_forward.1} parent=11 // pred_check
          %p403 = pneg %p133
        $region26: #{attention_module_forward.1} parent=11 // pred_check_branch
          %405 = sbr.rel (%p403) target = $region28
        $region27: #{attention_module_forward.1} parent=11 // pred_region
          _
        $region28: #{attention_module_forward.1} parent=11 // pred_fallthru
          _
        // Predicated region
        $region29: #{attention_module_forward.1} parent=11 // pred_check
          %p406 = pneg %p154
        $region30: #{attention_module_forward.1} parent=11 // pred_check_branch
          %408 = sbr.rel (%p406) target = $region32
        $region31: #{attention_module_forward.1} parent=11 // pred_region
          _
        $region32: #{attention_module_forward.1} parent=11 // pred_fallthru
          _
        // Predicated region
        $region33: #{attention_module_forward.1} parent=11 // pred_check
          %p409 = pneg %p175
        $region34: #{attention_module_forward.1} parent=11 // pred_check_branch
          %411 = sbr.rel (%p409) target = $region36
        $region35: #{attention_module_forward.1} parent=11 // pred_region
          _
        $region36: #{attention_module_forward.1} parent=11 // pred_fallthru
          _
        // Predicated region
        $region37: #{attention_module_forward.1} parent=11 // pred_check
          %p412 = pneg %p196
        $region38: #{attention_module_forward.1} parent=11 // pred_check_branch
          %414 = sbr.rel (%p412) target = $region40
        $region39: #{attention_module_forward.1} parent=11 // pred_region
          _
        $region40: #{attention_module_forward.1} parent=11 // pred_fallthru
          _
        // Predicated region
        $region41: #{attention_module_forward.1} parent=11 // pred_check
          %p415 = pneg %p217
        $region42: #{attention_module_forward.1} parent=11 // pred_check_branch
          %417 = sbr.rel (%p415) target = $region44
        $region43: #{attention_module_forward.1} parent=11 // pred_region
          _
        $region44: #{attention_module_forward.1} parent=11 // pred_fallthru
          _
        // Predicated region
        $region45: #{attention_module_forward.1} parent=11 // pred_check
          %p418 = pneg %p238
        $region46: #{attention_module_forward.1} parent=11 // pred_check_branch
          %420 = sbr.rel (%p418) target = $region48
        $region47: #{attention_module_forward.1} parent=11 // pred_region
          _
        $region48: #{attention_module_forward.1} parent=11 // pred_fallthru
          _
        // Predicated region
        $region49: #{attention_module_forward.1} parent=11 // pred_check
          %p421 = pneg %p259
        $region50: #{attention_module_forward.1} parent=11 // pred_check_branch
          %423 = sbr.rel (%p421) target = $region52
        $region51: #{attention_module_forward.1} parent=11 // pred_region
          _
        $region52: #{attention_module_forward.1} parent=11 // pred_fallthru
          _
        // Predicated region
        $region53: #{attention_module_forward.1} parent=11 // pred_check
          %p424 = pneg %p280
        $region54: #{attention_module_forward.1} parent=11 // pred_check_branch
          %426 = sbr.rel (%p424) target = $region56
        $region55: #{attention_module_forward.1} parent=11 // pred_region
          %s428 = ssub.s32 2048, 2048
          %429 = vsyncadd [#allocation7], %s428
          %s430 = sshll.u32 [#allocation6], 4
          %s431 = int_to_ptr.vmem [resolvable:$true] %s430
          %436 = dma.hbm_to_vmem [thread:$0]  %s11, 2048, %s431, [#allocation7], 128, 128, 8
        $region56: #{attention_module_forward.1} parent=11 // pred_fallthru
          _
        // Predicated region
        $region57: #{attention_module_forward.1} parent=11 // pred_check
          %p437 = pneg %p301
        $region58: #{attention_module_forward.1} parent=11 // pred_check_branch
          %439 = sbr.rel (%p437) target = $region60
        $region59: #{attention_module_forward.1} parent=11 // pred_region
          _
        $region60: #{attention_module_forward.1} parent=11 // pred_fallthru
          _
        // Predicated region
        $region61: #{attention_module_forward.1} parent=11 // pred_check
          %p440 = pneg %p322
        $region62: #{attention_module_forward.1} parent=11 // pred_check_branch
          %442 = sbr.rel (%p440) target = $region64
        $region63: #{attention_module_forward.1} parent=11 // pred_region
          _
        $region64: #{attention_module_forward.1} parent=11 // pred_fallthru
          _
        // Predicated region
        $region65: #{attention_module_forward.1} parent=11 // pred_check
          %p443 = pneg %p343
        $region66: #{attention_module_forward.1} parent=11 // pred_check_branch
          %445 = sbr.rel (%p443) target = $region68
        $region67: #{attention_module_forward.1} parent=11 // pred_region
          _
        $region68: #{attention_module_forward.1} parent=11 // pred_fallthru
          _
      $region12: #{attention_module_forward.1} parent=5 // pred_fallthru
        _
      %p446 = scmp.lt.s32.totalorder %s23, 2
      // Predicated region
      $region69: #{attention_module_forward.1} parent=5 // pred_check
        %p447 = pneg %p446
      $region70: #{attention_module_forward.1} parent=5 // pred_check_branch
        %449 = sbr.rel (%p447) target = $region72
      $region71: #{attention_module_forward.1} parent=5 // pred_region
        // Predicated region
        $region73: #{attention_module_forward.1} parent=71 // pred_check
          %p450 = pneg %p43
        $region74: #{attention_module_forward.1} parent=71 // pred_check_branch
          %452 = sbr.rel (%p450) target = $region76
        $region75: #{attention_module_forward.1} parent=71 // pred_region
          %s453 = smul.u32 2, %s23
          %p454 = scmp.lt.s32.totalorder %s453, 3
          %s455 = scalar_select %p454, %s453, 3
          %s456 = smul.addr %s455, 8
          %s457 = smul.addr %s456, 8
          %s458 = scalar_lea.vmem %s0, %s457
          %s459 = smul.u32 2, %s23
        $region76: #{attention_module_forward.1} parent=71 // pred_fallthru
          _
      $region72: #{attention_module_forward.1} parent=5 // pred_fallthru
        _
      %p460 = scmp.le.s32.totalorder 1, %s23
      %p461 = scmp.lt.s32.totalorder %s23, 3
      %p462 = pnand %p460, %p461
      %p463 = pneg %p462
      // Predicated region
      $region77: #{attention_module_forward.1} parent=5 // pred_check
        _
      $region78: #{attention_module_forward.1} parent=5 // pred_check_branch
        %465 = sbr.rel (%p462) target = $region80
      $region79: #{attention_module_forward.1} parent=5 // pred_region
        %s466 = ssub.s32 %s23, 1
        // Predicated region
        $region81: #{attention_module_forward.1} parent=79 // pred_check
          %p467 = pneg %p70
        $region82: #{attention_module_forward.1} parent=79 // pred_check_branch
          %469 = sbr.rel (%p467) target = $region84
        $region83: #{attention_module_forward.1} parent=79 // pred_region
          %470 = dma.done [#allocation5], 12288
        $region84: #{attention_module_forward.1} parent=79 // pred_fallthru
          _
        // Predicated region
        $region85: #{attention_module_forward.1} parent=79 // pred_check
          %p471 = pneg %p280
        $region86: #{attention_module_forward.1} parent=79 // pred_check_branch
          %473 = sbr.rel (%p471) target = $region88
        $region87: #{attention_module_forward.1} parent=79 // pred_region
          %474 = dma.done [#allocation7], 2048
        $region88: #{attention_module_forward.1} parent=79 // pred_fallthru
          _
        %s475 = smul.u32 2, %s28
        %p476 = scmp.lt.s32.totalorder %s475, 3
        %s477 = scalar_select %p476, %s475, 3
        %s478 = smul.addr %s477, 8
        %s479 = smul.addr %s478, 8
        %s480 = scalar_lea.vmem %s0, %s479
        %p481 = pneg %p49
        %p482 = pneg %p46
        %p483 = pneg %p70
        %p484 = pneg %p67
        %p485 = pneg %p91
        %p486 = pneg %p88
        %p487 = pneg %p112
        %p488 = pneg %p109
        %p489 = pneg %p133
        %p490 = pneg %p130
        %p491 = pneg %p154
        %p492 = pneg %p151
        %p493 = pneg %p175
        %p494 = pneg %p172
        %p495 = pneg %p196
        %p496 = pneg %p193
        %p497 = pneg %p217
        %p498 = pneg %p214
        %p499 = pneg %p238
        %p500 = pneg %p235
        %p501 = pneg %p259
        %p502 = pneg %p256
        %p503 = pneg %p280
        %p504 = pneg %p277
        %p505 = pneg %p301
        %p506 = pneg %p298
        %p507 = pneg %p322
        %p508 = pneg %p319
        %p509 = pneg %p343
        %p510 = pneg %p340
        %p511 = pneg %p369
        %p512 = pneg %p366
        %s513 = smul.u32 2, %s28
        %p514 = scmp.lt.s32.totalorder %s513, 3
        %s515 = scalar_select %p514, %s513, 3
        %s516 = smul.addr %s515, 8
        %s517 = smul.addr %s516, 8
        %s518 = scalar_lea.vmem %s15, %s517
        %s519 = smul.u32 2, %s28
        %p520 = scmp.lt.s32.totalorder %s519, 3
        %s521 = scalar_select %p520, %s519, 3
        %s522 = smul.addr %s521, 8
        %s523 = smul.addr %s522, 8
        %s524 = scalar_lea.vmem %s0, %s523
        %s525 = smul.u32 2, %s28
        %s526 = smul.u32 2, %s28
        %p527 = scmp.lt.s32.totalorder %s526, 3
        %s528 = scalar_select %p527, %s526, 3
        %s529 = smul.addr %s528, 8
        %s530 = smul.addr %s529, 8
        %s531 = scalar_lea.vmem %s15, %s530
        %s532 = smul.u32 2, %s28
        %534 = vst [vmem:[#allocation2] sm:$0xff] 0.0
        %535 = vst [vmem:[#allocation2 + $0x8] sm:$0xff] 0.0
        %536 = vst [vmem:[#allocation2 + $0x10] sm:$0xff] 0.0
        %537 = vst [vmem:[#allocation2 + $0x18] sm:$0xff] 0.0
        %538 = vst [vmem:[#allocation2 + $0x20] sm:$0xff] 0.0
        %539 = vst [vmem:[#allocation2 + $0x28] sm:$0xff] 0.0
        %540 = vst [vmem:[#allocation2 + $0x30] sm:$0xff] 0.0
        %541 = vst [vmem:[#allocation2 + $0x38] sm:$0xff] 0.0
        %542 = vst [vmem:[#allocation2 + $0x40] sm:$0xff] 0.0
        %543 = vst [vmem:[#allocation2 + $0x48] sm:$0xff] 0.0
        %544 = vst [vmem:[#allocation2 + $0x50] sm:$0xff] 0.0
        %545 = vst [vmem:[#allocation2 + $0x58] sm:$0xff] 0.0
        %546 = vst [vmem:[#allocation2 + $0x60] sm:$0xff] 0.0
        %547 = vst [vmem:[#allocation2 + $0x68] sm:$0xff] 0.0
        %548 = vst [vmem:[#allocation2 + $0x70] sm:$0xff] 0.0
        %549 = vst [vmem:[#allocation2 + $0x78] sm:$0xff] 0.0
        %v550 = vld [vmem:[%s524] sm:$0xff]
        %v551 = vld [vmem:[%s524 + $0x8] sm:$0xff]
        %v552 = vld [vmem:[%s524 + $0x10] sm:$0xff]
        %v553 = vld [vmem:[%s524 + $0x18] sm:$0xff]
        %v554 = vld [vmem:[%s524 + $0x20] sm:$0xff]
        %v555 = vld [vmem:[%s524 + $0x28] sm:$0xff]
        %v556 = vld [vmem:[%s524 + $0x30] sm:$0xff]
        %v557 = vld [vmem:[%s524 + $0x38] sm:$0xff]
        %vm558 = vcmask 211968
        %559 = vst.msk [vmem:[#allocation2] sm:$0xff] %vm558, %v550
        %560 = vst.msk [vmem:[#allocation2 + $0x8] sm:$0xff] %vm558, %v551
        %561 = vst.msk [vmem:[#allocation2 + $0x10] sm:$0xff] %vm558, %v552
        %562 = vst.msk [vmem:[#allocation2 + $0x18] sm:$0xff] %vm558, %v553
        %563 = vst.msk [vmem:[#allocation2 + $0x20] sm:$0xff] %vm558, %v554
        %564 = vst.msk [vmem:[#allocation2 + $0x28] sm:$0xff] %vm558, %v555
        %565 = vst.msk [vmem:[#allocation2 + $0x30] sm:$0xff] %vm558, %v556
        %566 = vst.msk [vmem:[#allocation2 + $0x38] sm:$0xff] %vm558, %v557
        %s567 = scalar_lea.vmem %s524, 64
        %v568 = vld [vmem:[%s567] sm:$0xff]
        %v569 = vld [vmem:[%s567 + $0x8] sm:$0xff]
        %v570 = vld [vmem:[%s567 + $0x10] sm:$0xff]
        %v571 = vld [vmem:[%s567 + $0x18] sm:$0xff]
        %v572 = vld [vmem:[%s567 + $0x20] sm:$0xff]
        %v573 = vld [vmem:[%s567 + $0x28] sm:$0xff]
        %v574 = vld [vmem:[%s567 + $0x30] sm:$0xff]
        %v575 = vld [vmem:[%s567 + $0x38] sm:$0xff]
        %576 = vst.msk [vmem:[#allocation2 + $0x40] sm:$0xff] %vm558, %v568
        %577 = vst.msk [vmem:[#allocation2 + $0x48] sm:$0xff] %vm558, %v569
        %578 = vst.msk [vmem:[#allocation2 + $0x50] sm:$0xff] %vm558, %v570
        %579 = vst.msk [vmem:[#allocation2 + $0x58] sm:$0xff] %vm558, %v571
        %580 = vst.msk [vmem:[#allocation2 + $0x60] sm:$0xff] %vm558, %v572
        %581 = vst.msk [vmem:[#allocation2 + $0x68] sm:$0xff] %vm558, %v573
        %582 = vst.msk [vmem:[#allocation2 + $0x70] sm:$0xff] %vm558, %v574
        %583 = vst.msk [vmem:[#allocation2 + $0x78] sm:$0xff] %vm558, %v575
        %v584 = vld [vmem:[#allocation2] sm:$0xff]
        %v585 = vld [vmem:[#allocation2 + $0x8] sm:$0xff]
        %v586 = vld [vmem:[#allocation2 + $0x10] sm:$0xff]
        %v587 = vld [vmem:[#allocation2 + $0x18] sm:$0xff]
        %v588 = vld [vmem:[#allocation2 + $0x20] sm:$0xff]
        %v589 = vld [vmem:[#allocation2 + $0x28] sm:$0xff]
        %v590 = vld [vmem:[#allocation2 + $0x30] sm:$0xff]
        %v591 = vld [vmem:[#allocation2 + $0x38] sm:$0xff]
        %v592 = vld [vmem:[#allocation2 + $0x40] sm:$0xff]
        %v593 = vld [vmem:[#allocation2 + $0x48] sm:$0xff]
        %v594 = vld [vmem:[#allocation2 + $0x50] sm:$0xff]
        %v595 = vld [vmem:[#allocation2 + $0x58] sm:$0xff]
        %v596 = vld [vmem:[#allocation2 + $0x60] sm:$0xff]
        %v597 = vld [vmem:[#allocation2 + $0x68] sm:$0xff]
        %v598 = vld [vmem:[#allocation2 + $0x70] sm:$0xff]
        %v599 = vld [vmem:[#allocation2 + $0x78] sm:$0xff]
        %v600 = vlaneseq
        %v601 = vand.u32 %v600, 127
        %vm602 = vcmp.lt.s32.totalorder %v601, 64
        %v603 = vsel %vm602, 1, 0
        %v604 = vcvt.s32.f32 %v603
        %vm605 = vcmp.lt.s32.totalorder %v601, 26
        %v606 = vsel %vm605, 1, 0
        %v607 = vcvt.s32.f32 %v606
        %v608 = vpack.c.bf16 %v585, %v584
        %v609 = vpack.c.bf16 %v587, %v586
        %v610 = vpack.c.bf16 %v589, %v588
        %v611 = vpack.c.bf16 %v591, %v590
        %v612 = vpack.c.bf16 %v593, %v592
        %v613 = vpack.c.bf16 %v595, %v594
        %v614 = vpack.c.bf16 %v597, %v596
        %v615 = vpack.c.bf16 %v599, %v598
        %v616 = vld [vmem:[#allocation4] sm:$0xff]
        %v617 = vld [vmem:[#allocation4 + $0x8] sm:$0xff]
        %v618 = vld [vmem:[#allocation4 + $0x10] sm:$0xff]
        %v619 = vld [vmem:[#allocation4 + $0x18] sm:$0xff]
        %v620 = vld [vmem:[#allocation4 + $0x20] sm:$0xff]
        %v621 = vld [vmem:[#allocation4 + $0x28] sm:$0xff]
        %v622 = vld [vmem:[#allocation4 + $0x30] sm:$0xff]
        %v623 = vld [vmem:[#allocation4 + $0x38] sm:$0xff]
        %v624 = vld [vmem:[#allocation4 + $0x40] sm:$0xff]
        %v625 = vld [vmem:[#allocation4 + $0x48] sm:$0xff]
        %v626 = vld [vmem:[#allocation4 + $0x50] sm:$0xff]
        %v627 = vld [vmem:[#allocation4 + $0x58] sm:$0xff]
        %v628 = vld [vmem:[#allocation4 + $0x60] sm:$0xff]
        %v629 = vld [vmem:[#allocation4 + $0x68] sm:$0xff]
        %v630 = vld [vmem:[#allocation4 + $0x70] sm:$0xff]
        %v631 = vld [vmem:[#allocation4 + $0x78] sm:$0xff]
        %v632 = vld [vmem:[#allocation4 + $0x80] sm:$0xff]
        %v633 = vld [vmem:[#allocation4 + $0x88] sm:$0xff]
        %v634 = vld [vmem:[#allocation4 + $0x90] sm:$0xff]
        %v635 = vld [vmem:[#allocation4 + $0x98] sm:$0xff]
        %v636 = vld [vmem:[#allocation4 + $0xa0] sm:$0xff]
        %v637 = vld [vmem:[#allocation4 + $0xa8] sm:$0xff]
        %v638 = vld [vmem:[#allocation4 + $0xb0] sm:$0xff]
        %v639 = vld [vmem:[#allocation4 + $0xb8] sm:$0xff]
        %v640 = vld [vmem:[#allocation4 + $0xc0] sm:$0xff]
        %v641 = vld [vmem:[#allocation4 + $0xc8] sm:$0xff]
        %v642 = vld [vmem:[#allocation4 + $0xd0] sm:$0xff]
        %v643 = vld [vmem:[#allocation4 + $0xd8] sm:$0xff]
        %v644 = vld [vmem:[#allocation4 + $0xe0] sm:$0xff]
        %v645 = vld [vmem:[#allocation4 + $0xe8] sm:$0xff]
        %v646 = vld [vmem:[#allocation4 + $0xf0] sm:$0xff]
        %v647 = vld [vmem:[#allocation4 + $0xf8] sm:$0xff]
        %v648 = vld [vmem:[#allocation4 + $0x100] sm:$0xff]
        %v649 = vld [vmem:[#allocation4 + $0x108] sm:$0xff]
        %v650 = vld [vmem:[#allocation4 + $0x110] sm:$0xff]
        %v651 = vld [vmem:[#allocation4 + $0x118] sm:$0xff]
        %v652 = vld [vmem:[#allocation4 + $0x120] sm:$0xff]
        %v653 = vld [vmem:[#allocation4 + $0x128] sm:$0xff]
        %v654 = vld [vmem:[#allocation4 + $0x130] sm:$0xff]
        %v655 = vld [vmem:[#allocation4 + $0x138] sm:$0xff]
        %v656 = vld [vmem:[#allocation4 + $0x140] sm:$0xff]
        %v657 = vld [vmem:[#allocation4 + $0x148] sm:$0xff]
        %v658 = vld [vmem:[#allocation4 + $0x150] sm:$0xff]
        %v659 = vld [vmem:[#allocation4 + $0x158] sm:$0xff]
        %v660 = vld [vmem:[#allocation4 + $0x160] sm:$0xff]
        %v661 = vld [vmem:[#allocation4 + $0x168] sm:$0xff]
        %v662 = vld [vmem:[#allocation4 + $0x170] sm:$0xff]
        %v663 = vld [vmem:[#allocation4 + $0x178] sm:$0xff]
        %v664 = vld [vmem:[#allocation4 + $0x180] sm:$0xff]
        %v665 = vld [vmem:[#allocation4 + $0x188] sm:$0xff]
        %v666 = vld [vmem:[#allocation4 + $0x190] sm:$0xff]
        %v667 = vld [vmem:[#allocation4 + $0x198] sm:$0xff]
        %v668 = vld [vmem:[#allocation4 + $0x1a0] sm:$0xff]
        %v669 = vld [vmem:[#allocation4 + $0x1a8] sm:$0xff]
        %v670 = vld [vmem:[#allocation4 + $0x1b0] sm:$0xff]
        %v671 = vld [vmem:[#allocation4 + $0x1b8] sm:$0xff]
        %v672 = vld [vmem:[#allocation4 + $0x1c0] sm:$0xff]
        %v673 = vld [vmem:[#allocation4 + $0x1c8] sm:$0xff]
        %v674 = vld [vmem:[#allocation4 + $0x1d0] sm:$0xff]
        %v675 = vld [vmem:[#allocation4 + $0x1d8] sm:$0xff]
        %v676 = vld [vmem:[#allocation4 + $0x1e0] sm:$0xff]
        %v677 = vld [vmem:[#allocation4 + $0x1e8] sm:$0xff]
        %v678 = vld [vmem:[#allocation4 + $0x1f0] sm:$0xff]
        %v679 = vld [vmem:[#allocation4 + $0x1f8] sm:$0xff]
        %v680 = vld [vmem:[#allocation4 + $0x200] sm:$0xff]
        %v681 = vld [vmem:[#allocation4 + $0x208] sm:$0xff]
        %v682 = vld [vmem:[#allocation4 + $0x210] sm:$0xff]
        %v683 = vld [vmem:[#allocation4 + $0x218] sm:$0xff]
        %v684 = vld [vmem:[#allocation4 + $0x220] sm:$0xff]
        %v685 = vld [vmem:[#allocation4 + $0x228] sm:$0xff]
        %v686 = vld [vmem:[#allocation4 + $0x230] sm:$0xff]
        %v687 = vld [vmem:[#allocation4 + $0x238] sm:$0xff]
        %v688 = vld [vmem:[#allocation4 + $0x240] sm:$0xff]
        %v689 = vld [vmem:[#allocation4 + $0x248] sm:$0xff]
        %v690 = vld [vmem:[#allocation4 + $0x250] sm:$0xff]
        %v691 = vld [vmem:[#allocation4 + $0x258] sm:$0xff]
        %v692 = vld [vmem:[#allocation4 + $0x260] sm:$0xff]
        %v693 = vld [vmem:[#allocation4 + $0x268] sm:$0xff]
        %v694 = vld [vmem:[#allocation4 + $0x270] sm:$0xff]
        %v695 = vld [vmem:[#allocation4 + $0x278] sm:$0xff]
        %v696 = vld [vmem:[#allocation4 + $0x280] sm:$0xff]
        %v697 = vld [vmem:[#allocation4 + $0x288] sm:$0xff]
        %v698 = vld [vmem:[#allocation4 + $0x290] sm:$0xff]
        %v699 = vld [vmem:[#allocation4 + $0x298] sm:$0xff]
        %v700 = vld [vmem:[#allocation4 + $0x2a0] sm:$0xff]
        %v701 = vld [vmem:[#allocation4 + $0x2a8] sm:$0xff]
        %v702 = vld [vmem:[#allocation4 + $0x2b0] sm:$0xff]
        %v703 = vld [vmem:[#allocation4 + $0x2b8] sm:$0xff]
        %v704 = vld [vmem:[#allocation4 + $0x2c0] sm:$0xff]
        %v705 = vld [vmem:[#allocation4 + $0x2c8] sm:$0xff]
        %v706 = vld [vmem:[#allocation4 + $0x2d0] sm:$0xff]
        %v707 = vld [vmem:[#allocation4 + $0x2d8] sm:$0xff]
        %v708 = vld [vmem:[#allocation4 + $0x2e0] sm:$0xff]
        %v709 = vld [vmem:[#allocation4 + $0x2e8] sm:$0xff]
        %v710 = vld [vmem:[#allocation4 + $0x2f0] sm:$0xff]
        %v711 = vld [vmem:[#allocation4 + $0x2f8] sm:$0xff]
        %v712 = vpack.c.bf16 %v622, %v616
        %v713 = vpack.c.bf16 %v623, %v617
        %v714 = vpack.c.bf16 %v624, %v618
        %v715 = vpack.c.bf16 %v625, %v619
        %v716 = vpack.c.bf16 %v626, %v620
        %v717 = vpack.c.bf16 %v627, %v621
        %v718 = vpack.c.bf16 %v634, %v628
        %v719 = vpack.c.bf16 %v635, %v629
        %v720 = vpack.c.bf16 %v636, %v630
        %v721 = vpack.c.bf16 %v637, %v631
        %v722 = vpack.c.bf16 %v638, %v632
        %v723 = vpack.c.bf16 %v639, %v633
        %v724 = vpack.c.bf16 %v646, %v640
        %v725 = vpack.c.bf16 %v647, %v641
        %v726 = vpack.c.bf16 %v648, %v642
        %v727 = vpack.c.bf16 %v649, %v643
        %v728 = vpack.c.bf16 %v650, %v644
        %v729 = vpack.c.bf16 %v651, %v645
        %v730 = vpack.c.bf16 %v658, %v652
        %v731 = vpack.c.bf16 %v659, %v653
        %v732 = vpack.c.bf16 %v660, %v654
        %v733 = vpack.c.bf16 %v661, %v655
        %v734 = vpack.c.bf16 %v662, %v656
        %v735 = vpack.c.bf16 %v663, %v657
        %v736 = vpack.c.bf16 %v670, %v664
        %v737 = vpack.c.bf16 %v671, %v665
        %v738 = vpack.c.bf16 %v672, %v666
        %v739 = vpack.c.bf16 %v673, %v667
        %v740 = vpack.c.bf16 %v674, %v668
        %v741 = vpack.c.bf16 %v675, %v669
        %v742 = vpack.c.bf16 %v682, %v676
        %v743 = vpack.c.bf16 %v683, %v677
        %v744 = vpack.c.bf16 %v684, %v678
        %v745 = vpack.c.bf16 %v685, %v679
        %v746 = vpack.c.bf16 %v686, %v680
        %v747 = vpack.c.bf16 %v687, %v681
        %v748 = vpack.c.bf16 %v694, %v688
        %v749 = vpack.c.bf16 %v695, %v689
        %v750 = vpack.c.bf16 %v696, %v690
        %v751 = vpack.c.bf16 %v697, %v691
        %v752 = vpack.c.bf16 %v698, %v692
        %v753 = vpack.c.bf16 %v699, %v693
        %v754 = vpack.c.bf16 %v706, %v700
        %v755 = vpack.c.bf16 %v707, %v701
        %v756 = vpack.c.bf16 %v708, %v702
        %v757 = vpack.c.bf16 %v709, %v703
        %v758 = vpack.c.bf16 %v710, %v704
        %v759 = vpack.c.bf16 %v711, %v705
        %v760 = vld [vmem:[%s2] sm:$0x3f]
        %v762 = vlaneseq
        %v763 = vshrl.u32 %v762, 7
        %v764 = vsub.s32 0, %v763
        %v765 = vrot.slane %v760, %v764
        %v766 = vlaneseq
        %v767 = vshrl.u32 %v766, 7
        %v768 = vsub.s32 1, %v767
        %v769 = vrot.slane %v760, %v768
        %v770 = vlaneseq
        %v771 = vshrl.u32 %v770, 7
        %v772 = vsub.s32 2, %v771
        %v773 = vrot.slane %v760, %v772
        %v774 = vlaneseq
        %v775 = vshrl.u32 %v774, 7
        %v776 = vsub.s32 3, %v775
        %v777 = vrot.slane %v760, %v776
        %v778 = vlaneseq
        %v779 = vshrl.u32 %v778, 7
        %v780 = vsub.s32 4, %v779
        %v781 = vrot.slane %v760, %v780
        %v782 = vlaneseq
        %v783 = vshrl.u32 %v782, 7
        %v784 = vsub.s32 5, %v783
        %v785 = vrot.slane %v760, %v784
        %792 = vmatprep.subr.bf16.mxu0 %v755
        %793 = vmatpush1.bf16.msra.mxu0 %v754
        %794 = vmatprep.subr.bf16.mxu0 %v749
        %795 = vmatpush1.bf16.msra.mxu0 %v748
        %796 = vmatprep.subr.bf16.mxu0 %v743
        %797 = vmatpush1.bf16.msra.mxu0 %v742
        %798 = vmatprep.subr.bf16.mxu0 %v737
        %799 = vmatpush1.bf16.msra.mxu0 %v736
        %800 = vmatprep.subr.bf16.mxu0 %v731
        %801 = vmatpush1.bf16.msra.mxu0 %v730
        %802 = vmatprep.subr.bf16.mxu0 %v725
        %803 = vmatpush1.bf16.msra.mxu0 %v724
        %804 = vmatprep.subr.bf16.mxu0 %v719
        %805 = vmatpush1.bf16.msra.mxu0 %v718
        %806 = vmatprep.subr.bf16.mxu0 %v713
        %807 = vmatpush1.bf16.msra.mxu0 %v712
        %808 = vmatprep.subr.bf16.mxu0 0
        %809 = vmatpush2.bf16.msra.mxu0 0
        %810 = vmatprep.subr.bf16.mxu0 0
        %811 = vmatpush2.bf16.msra.mxu0 0
        %812 = vmatprep.subr.bf16.mxu0 0
        %813 = vmatpush2.bf16.msra.mxu0 0
        %814 = vmatprep.subr.bf16.mxu0 0
        %815 = vmatpush2.bf16.msra.mxu0 0
        %816 = vmatprep.subr.bf16.mxu0 0
        %817 = vmatpush2.bf16.msra.mxu0 0
        %818 = vmatprep.subr.bf16.mxu0 0
        %819 = vmatpush2.bf16.msra.mxu0 0
        %820 = vmatprep.subr.bf16.mxu0 0
        %821 = vmatpush2.bf16.msra.mxu0 0
        %822 = vmatprep.subr.bf16.mxu0 0
        %823 = vmatpush2.bf16.msra.mxu0 0
        %824 = vmatprep.mubr.bf16.mxu0 0
        %825 = vmatmul.mubr.bf16.gmra.mxu0 %v608
        %v826 = vpop.f32.mrf.mxu0
        %v827 = vadd.f32 %v765, %v826
        %v828 = vpop.f32.mrf.mxu0
        %v829 = vadd.f32 %v769, %v828
        %v830 = vpop.f32.mrf.mxu0
        %v831 = vadd.f32 %v765, %v830
        %v832 = vpop.f32.mrf.mxu0
        %v833 = vadd.f32 %v769, %v832
        %834 = vmatprep.mubr.bf16.mxu0 0
        %835 = vmatmul.mubr.bf16.gmra.mxu0 %v609
        %v836 = vpop.f32.mrf.mxu0
        %v837 = vadd.f32 %v765, %v836
        %v838 = vpop.f32.mrf.mxu0
        %v839 = vadd.f32 %v769, %v838
        %v840 = vpop.f32.mrf.mxu0
        %v841 = vadd.f32 %v765, %v840
        %v842 = vpop.f32.mrf.mxu0
        %v843 = vadd.f32 %v769, %v842
        %844 = vmatprep.mubr.bf16.mxu0 0
        %845 = vmatmul.mubr.bf16.gmra.mxu0 %v610
        %v846 = vpop.f32.mrf.mxu0
        %v847 = vadd.f32 %v765, %v846
        %v848 = vpop.f32.mrf.mxu0
        %v849 = vadd.f32 %v769, %v848
        %v850 = vpop.f32.mrf.mxu0
        %v851 = vadd.f32 %v765, %v850
        %v852 = vpop.f32.mrf.mxu0
        %v853 = vadd.f32 %v769, %v852
        %854 = vmatprep.mubr.bf16.mxu0 0
        %855 = vmatmul.mubr.bf16.gmra.mxu0 %v611
        %v856 = vpop.f32.mrf.mxu0
        %v857 = vadd.f32 %v765, %v856
        %v858 = vpop.f32.mrf.mxu0
        %v859 = vadd.f32 %v769, %v858
        %v860 = vpop.f32.mrf.mxu0
        %v861 = vadd.f32 %v765, %v860
        %v862 = vpop.f32.mrf.mxu0
        %v863 = vadd.f32 %v769, %v862
        %864 = vmatprep.mubr.bf16.mxu0 0
        %865 = vmatmul.mubr.bf16.gmra.mxu0 %v612
        %v866 = vpop.f32.mrf.mxu0
        %v867 = vadd.f32 %v765, %v866
        %v868 = vpop.f32.mrf.mxu0
        %v869 = vadd.f32 %v769, %v868
        %v870 = vpop.f32.mrf.mxu0
        %v871 = vadd.f32 %v765, %v870
        %v872 = vpop.f32.mrf.mxu0
        %v873 = vadd.f32 %v769, %v872
        %874 = vmatprep.mubr.bf16.mxu0 0
        %875 = vmatmul.mubr.bf16.gmra.mxu0 %v613
        %v876 = vpop.f32.mrf.mxu0
        %v877 = vadd.f32 %v765, %v876
        %v878 = vpop.f32.mrf.mxu0
        %v879 = vadd.f32 %v769, %v878
        %v880 = vpop.f32.mrf.mxu0
        %v881 = vadd.f32 %v765, %v880
        %v882 = vpop.f32.mrf.mxu0
        %v883 = vadd.f32 %v769, %v882
        %884 = vmatprep.mubr.bf16.mxu0 0
        %885 = vmatmul.mubr.bf16.gmra.mxu0 %v614
        %v886 = vpop.f32.mrf.mxu0
        %v887 = vadd.f32 %v765, %v886
        %v888 = vpop.f32.mrf.mxu0
        %v889 = vadd.f32 %v769, %v888
        %v890 = vpop.f32.mrf.mxu0
        %v891 = vadd.f32 %v765, %v890
        %v892 = vpop.f32.mrf.mxu0
        %v893 = vadd.f32 %v769, %v892
        %894 = vmatprep.mubr.bf16.mxu0 0
        %895 = vmatmul.mubr.bf16.gmra.mxu0 %v615
        %v896 = vpop.f32.mrf.mxu0
        %v897 = vadd.f32 %v765, %v896
        %v898 = vpop.f32.mrf.mxu0
        %v899 = vadd.f32 %v769, %v898
        %v900 = vpop.f32.mrf.mxu0
        %v901 = vadd.f32 %v765, %v900
        %v902 = vpop.f32.mrf.mxu0
        %v903 = vadd.f32 %v769, %v902
        %904 = vdwg.mxu0
        %905 = vmatprep.subr.bf16.mxu0 %v757
        %906 = vmatpush1.bf16.msra.mxu0 %v756
        %907 = vmatprep.subr.bf16.mxu0 %v751
        %908 = vmatpush1.bf16.msra.mxu0 %v750
        %909 = vmatprep.subr.bf16.mxu0 %v745
        %910 = vmatpush1.bf16.msra.mxu0 %v744
        %911 = vmatprep.subr.bf16.mxu0 %v739
        %912 = vmatpush1.bf16.msra.mxu0 %v738
        %913 = vmatprep.subr.bf16.mxu0 %v733
        %914 = vmatpush1.bf16.msra.mxu0 %v732
        %915 = vmatprep.subr.bf16.mxu0 %v727
        %916 = vmatpush1.bf16.msra.mxu0 %v726
        %917 = vmatprep.subr.bf16.mxu0 %v721
        %918 = vmatpush1.bf16.msra.mxu0 %v720
        %919 = vmatprep.subr.bf16.mxu0 %v715
        %920 = vmatpush1.bf16.msra.mxu0 %v714
        %921 = vmatprep.subr.bf16.mxu0 0
        %922 = vmatpush2.bf16.msra.mxu0 0
        %923 = vmatprep.subr.bf16.mxu0 0
        %924 = vmatpush2.bf16.msra.mxu0 0
        %925 = vmatprep.subr.bf16.mxu0 0
        %926 = vmatpush2.bf16.msra.mxu0 0
        %927 = vmatprep.subr.bf16.mxu0 0
        %928 = vmatpush2.bf16.msra.mxu0 0
        %929 = vmatprep.subr.bf16.mxu0 0
        %930 = vmatpush2.bf16.msra.mxu0 0
        %931 = vmatprep.subr.bf16.mxu0 0
        %932 = vmatpush2.bf16.msra.mxu0 0
        %933 = vmatprep.subr.bf16.mxu0 0
        %934 = vmatpush2.bf16.msra.mxu0 0
        %935 = vmatprep.subr.bf16.mxu0 0
        %936 = vmatpush2.bf16.msra.mxu0 0
        %937 = vmatprep.mubr.bf16.mxu0 0
        %938 = vmatmul.mubr.bf16.gmra.mxu0 %v608
        %v939 = vpop.f32.mrf.mxu0
        %v940 = vadd.f32 %v773, %v939
        %v941 = vpop.f32.mrf.mxu0
        %v942 = vadd.f32 %v777, %v941
        %v943 = vpop.f32.mrf.mxu0
        %v944 = vadd.f32 %v773, %v943
        %v945 = vpop.f32.mrf.mxu0
        %v946 = vadd.f32 %v777, %v945
        %947 = vmatprep.mubr.bf16.mxu0 0
        %948 = vmatmul.mubr.bf16.gmra.mxu0 %v609
        %v949 = vpop.f32.mrf.mxu0
        %v950 = vadd.f32 %v773, %v949
        %v951 = vpop.f32.mrf.mxu0
        %v952 = vadd.f32 %v777, %v951
        %v953 = vpop.f32.mrf.mxu0
        %v954 = vadd.f32 %v773, %v953
        %v955 = vpop.f32.mrf.mxu0
        %v956 = vadd.f32 %v777, %v955
        %957 = vmatprep.mubr.bf16.mxu0 0
        %958 = vmatmul.mubr.bf16.gmra.mxu0 %v610
        %v959 = vpop.f32.mrf.mxu0
        %v960 = vadd.f32 %v773, %v959
        %v961 = vpop.f32.mrf.mxu0
        %v962 = vadd.f32 %v777, %v961
        %v963 = vpop.f32.mrf.mxu0
        %v964 = vadd.f32 %v773, %v963
        %v965 = vpop.f32.mrf.mxu0
        %v966 = vadd.f32 %v777, %v965
        %967 = vmatprep.mubr.bf16.mxu0 0
        %968 = vmatmul.mubr.bf16.gmra.mxu0 %v611
        %v969 = vpop.f32.mrf.mxu0
        %v970 = vadd.f32 %v773, %v969
        %v971 = vpop.f32.mrf.mxu0
        %v972 = vadd.f32 %v777, %v971
        %v973 = vpop.f32.mrf.mxu0
        %v974 = vadd.f32 %v773, %v973
        %v975 = vpop.f32.mrf.mxu0
        %v976 = vadd.f32 %v777, %v975
        %977 = vmatprep.mubr.bf16.mxu0 0
        %978 = vmatmul.mubr.bf16.gmra.mxu0 %v612
        %v979 = vpop.f32.mrf.mxu0
        %v980 = vadd.f32 %v773, %v979
        %v981 = vpop.f32.mrf.mxu0
        %v982 = vadd.f32 %v777, %v981
        %v983 = vpop.f32.mrf.mxu0
        %v984 = vadd.f32 %v773, %v983
        %v985 = vpop.f32.mrf.mxu0
        %v986 = vadd.f32 %v777, %v985
        %987 = vmatprep.mubr.bf16.mxu0 0
        %988 = vmatmul.mubr.bf16.gmra.mxu0 %v613
        %v989 = vpop.f32.mrf.mxu0
        %v990 = vadd.f32 %v773, %v989
        %v991 = vpop.f32.mrf.mxu0
        %v992 = vadd.f32 %v777, %v991
        %v993 = vpop.f32.mrf.mxu0
        %v994 = vadd.f32 %v773, %v993
        %v995 = vpop.f32.mrf.mxu0
        %v996 = vadd.f32 %v777, %v995
        %997 = vmatprep.mubr.bf16.mxu0 0
        %998 = vmatmul.mubr.bf16.gmra.mxu0 %v614
        %v999 = vpop.f32.mrf.mxu0
        %v1000 = vadd.f32 %v773, %v999
        %v1001 = vpop.f32.mrf.mxu0
        %v1002 = vadd.f32 %v777, %v1001
        %v1003 = vpop.f32.mrf.mxu0
        %v1004 = vadd.f32 %v773, %v1003
        %v1005 = vpop.f32.mrf.mxu0
        %v1006 = vadd.f32 %v777, %v1005
        %1007 = vmatprep.mubr.bf16.mxu0 0
        %1008 = vmatmul.mubr.bf16.gmra.mxu0 %v615
        %v1009 = vpop.f32.mrf.mxu0
        %v1010 = vadd.f32 %v773, %v1009
        %v1011 = vpop.f32.mrf.mxu0
        %v1012 = vadd.f32 %v777, %v1011
        %v1013 = vpop.f32.mrf.mxu0
        %v1014 = vadd.f32 %v773, %v1013
        %v1015 = vpop.f32.mrf.mxu0
        %v1016 = vadd.f32 %v777, %v1015
        %1017 = vdwg.mxu0
        %1018 = vmatprep.subr.bf16.mxu0 %v759
        %1019 = vmatpush1.bf16.msra.mxu0 %v758
        %1020 = vmatprep.subr.bf16.mxu0 %v753
        %1021 = vmatpush1.bf16.msra.mxu0 %v752
        %1022 = vmatprep.subr.bf16.mxu0 %v747
        %1023 = vmatpush1.bf16.msra.mxu0 %v746
        %1024 = vmatprep.subr.bf16.mxu0 %v741
        %1025 = vmatpush1.bf16.msra.mxu0 %v740
        %1026 = vmatprep.subr.bf16.mxu0 %v735
        %1027 = vmatpush1.bf16.msra.mxu0 %v734
        %1028 = vmatprep.subr.bf16.mxu0 %v729
        %1029 = vmatpush1.bf16.msra.mxu0 %v728
        %1030 = vmatprep.subr.bf16.mxu0 %v723
        %1031 = vmatpush1.bf16.msra.mxu0 %v722
        %1032 = vmatprep.subr.bf16.mxu0 %v717
        %1033 = vmatpush1.bf16.msra.mxu0 %v716
        %1034 = vmatprep.subr.bf16.mxu0 0
        %1035 = vmatpush2.bf16.msra.mxu0 0
        %1036 = vmatprep.subr.bf16.mxu0 0
        %1037 = vmatpush2.bf16.msra.mxu0 0
        %1038 = vmatprep.subr.bf16.mxu0 0
        %1039 = vmatpush2.bf16.msra.mxu0 0
        %1040 = vmatprep.subr.bf16.mxu0 0
        %1041 = vmatpush2.bf16.msra.mxu0 0
        %1042 = vmatprep.subr.bf16.mxu0 0
        %1043 = vmatpush2.bf16.msra.mxu0 0
        %1044 = vmatprep.subr.bf16.mxu0 0
        %1045 = vmatpush2.bf16.msra.mxu0 0
        %1046 = vmatprep.subr.bf16.mxu0 0
        %1047 = vmatpush2.bf16.msra.mxu0 0
        %1048 = vmatprep.subr.bf16.mxu0 0
        %1049 = vmatpush2.bf16.msra.mxu0 0
        %1050 = vmatprep.mubr.bf16.mxu0 0
        %1051 = vmatmul.mubr.bf16.gmra.mxu0 %v608
        %v1052 = vpop.f32.mrf.mxu0
        %v1053 = vadd.f32 %v781, %v1052
        %v1054 = vpop.f32.mrf.mxu0
        %v1055 = vadd.f32 %v785, %v1054
        %v1056 = vpop.f32.mrf.mxu0
        %v1057 = vadd.f32 %v781, %v1056
        %v1058 = vpop.f32.mrf.mxu0
        %v1059 = vadd.f32 %v785, %v1058
        %1060 = vmatprep.mubr.bf16.mxu0 0
        %1061 = vmatmul.mubr.bf16.gmra.mxu0 %v609
        %v1062 = vpop.f32.mrf.mxu0
        %v1063 = vadd.f32 %v781, %v1062
        %v1064 = vpop.f32.mrf.mxu0
        %v1065 = vadd.f32 %v785, %v1064
        %v1066 = vpop.f32.mrf.mxu0
        %v1067 = vadd.f32 %v781, %v1066
        %v1068 = vpop.f32.mrf.mxu0
        %v1069 = vadd.f32 %v785, %v1068
        %1070 = vmatprep.mubr.bf16.mxu0 0
        %1071 = vmatmul.mubr.bf16.gmra.mxu0 %v610
        %v1072 = vpop.f32.mrf.mxu0
        %v1073 = vadd.f32 %v781, %v1072
        %v1074 = vpop.f32.mrf.mxu0
        %v1075 = vadd.f32 %v785, %v1074
        %v1076 = vpop.f32.mrf.mxu0
        %v1077 = vadd.f32 %v781, %v1076
        %v1078 = vpop.f32.mrf.mxu0
        %v1079 = vadd.f32 %v785, %v1078
        %1080 = vmatprep.mubr.bf16.mxu0 0
        %1081 = vmatmul.mubr.bf16.gmra.mxu0 %v611
        %v1082 = vpop.f32.mrf.mxu0
        %v1083 = vadd.f32 %v781, %v1082
        %v1084 = vpop.f32.mrf.mxu0
        %v1085 = vadd.f32 %v785, %v1084
        %v1086 = vpop.f32.mrf.mxu0
        %v1087 = vadd.f32 %v781, %v1086
        %v1088 = vpop.f32.mrf.mxu0
        %v1089 = vadd.f32 %v785, %v1088
        %1090 = vmatprep.mubr.bf16.mxu0 0
        %1091 = vmatmul.mubr.bf16.gmra.mxu0 %v612
        %v1092 = vpop.f32.mrf.mxu0
        %v1093 = vadd.f32 %v781, %v1092
        %v1094 = vpop.f32.mrf.mxu0
        %v1095 = vadd.f32 %v785, %v1094
        %v1096 = vpop.f32.mrf.mxu0
        %v1097 = vadd.f32 %v781, %v1096
        %v1098 = vpop.f32.mrf.mxu0
        %v1099 = vadd.f32 %v785, %v1098
        %1100 = vmatprep.mubr.bf16.mxu0 0
        %1101 = vmatmul.mubr.bf16.gmra.mxu0 %v613
        %v1102 = vpop.f32.mrf.mxu0
        %v1103 = vadd.f32 %v781, %v1102
        %v1104 = vpop.f32.mrf.mxu0
        %v1105 = vadd.f32 %v785, %v1104
        %v1106 = vpop.f32.mrf.mxu0
        %v1107 = vadd.f32 %v781, %v1106
        %v1108 = vpop.f32.mrf.mxu0
        %v1109 = vadd.f32 %v785, %v1108
        %1110 = vmatprep.mubr.bf16.mxu0 0
        %1111 = vmatmul.mubr.bf16.gmra.mxu0 %v614
        %v1112 = vpop.f32.mrf.mxu0
        %v1113 = vadd.f32 %v781, %v1112
        %v1114 = vpop.f32.mrf.mxu0
        %v1115 = vadd.f32 %v785, %v1114
        %v1116 = vpop.f32.mrf.mxu0
        %v1117 = vadd.f32 %v781, %v1116
        %v1118 = vpop.f32.mrf.mxu0
        %v1119 = vadd.f32 %v785, %v1118
        %1120 = vmatprep.mubr.bf16.mxu0 0
        %1121 = vmatmul.mubr.bf16.gmra.mxu0 %v615
        %v1122 = vpop.f32.mrf.mxu0
        %v1123 = vadd.f32 %v781, %v1122
        %v1124 = vpop.f32.mrf.mxu0
        %v1125 = vadd.f32 %v785, %v1124
        %v1126 = vpop.f32.mrf.mxu0
        %v1127 = vadd.f32 %v781, %v1126
        %v1128 = vpop.f32.mrf.mxu0
        %v1129 = vadd.f32 %v785, %v1128
        %1130 = vdwg.mxu0
        %v1131 = vld [vmem:[%s3] sm:$0x1]
        %v1132 = vld [vmem:[%s4] sm:$0x1]
        %1133 = vadd.xlane.f32.xlu0 %v827
        %v1134 = vpop.xlane.xlu0 %1133
        %1135 = vadd.xlane.f32.xlu0 %v831
        %v1136 = vpop.xlane.xlu0 %1135
        %1137 = vadd.xlane.f32.xlu0 %v837
        %v1138 = vpop.xlane.xlu0 %1137
        %1139 = vadd.xlane.f32.xlu0 %v841
        %v1140 = vpop.xlane.xlu0 %1139
        %1141 = vadd.xlane.f32.xlu0 %v847
        %v1142 = vpop.xlane.xlu0 %1141
        %1143 = vadd.xlane.f32.xlu0 %v851
        %v1144 = vpop.xlane.xlu0 %1143
        %1145 = vadd.xlane.f32.xlu0 %v857
        %v1146 = vpop.xlane.xlu0 %1145
        %1147 = vadd.xlane.f32.xlu0 %v861
        %v1148 = vpop.xlane.xlu0 %1147
        %1149 = vadd.xlane.f32.xlu0 %v867
        %v1150 = vpop.xlane.xlu0 %1149
        %1151 = vadd.xlane.f32.xlu0 %v871
        %v1152 = vpop.xlane.xlu0 %1151
        %1153 = vadd.xlane.f32.xlu0 %v877
        %v1154 = vpop.xlane.xlu0 %1153
        %1155 = vadd.xlane.f32.xlu0 %v881
        %v1156 = vpop.xlane.xlu0 %1155
        %1157 = vadd.xlane.f32.xlu0 %v887
        %v1158 = vpop.xlane.xlu0 %1157
        %1159 = vadd.xlane.f32.xlu0 %v891
        %v1160 = vpop.xlane.xlu0 %1159
        %1161 = vadd.xlane.f32.xlu0 %v897
        %v1162 = vpop.xlane.xlu0 %1161
        %1163 = vadd.xlane.f32.xlu0 %v901
        %v1164 = vpop.xlane.xlu0 %1163
        %v1165 = vmul.f32 %v1134, 0.015625
        %v1166 = vmul.f32 %v1136, 0.015625
        %v1167 = vmul.f32 %v1138, 0.015625
        %v1168 = vmul.f32 %v1140, 0.015625
        %v1169 = vmul.f32 %v1142, 0.015625
        %v1170 = vmul.f32 %v1144, 0.015625
        %v1171 = vmul.f32 %v1146, 0.015625
        %v1172 = vmul.f32 %v1148, 0.015625
        %v1173 = vmul.f32 %v1150, 0.015625
        %v1174 = vmul.f32 %v1152, 0.015625
        %v1175 = vmul.f32 %v1154, 0.015625
        %v1176 = vmul.f32 %v1156, 0.015625
        %v1177 = vmul.f32 %v1158, 0.015625
        %v1178 = vmul.f32 %v1160, 0.015625
        %v1179 = vmul.f32 %v1162, 0.015625
        %v1180 = vmul.f32 %v1164, 0.015625
        %v1181 = vsub.f32 %v827, %v1165
        %v1182 = vsub.f32 %v831, %v1166
        %v1183 = vsub.f32 %v837, %v1167
        %v1184 = vsub.f32 %v841, %v1168
        %v1185 = vsub.f32 %v847, %v1169
        %v1186 = vsub.f32 %v851, %v1170
        %v1187 = vsub.f32 %v857, %v1171
        %v1188 = vsub.f32 %v861, %v1172
        %v1189 = vsub.f32 %v867, %v1173
        %v1190 = vsub.f32 %v871, %v1174
        %v1191 = vsub.f32 %v877, %v1175
        %v1192 = vsub.f32 %v881, %v1176
        %v1193 = vsub.f32 %v887, %v1177
        %v1194 = vsub.f32 %v891, %v1178
        %v1195 = vsub.f32 %v897, %v1179
        %v1196 = vsub.f32 %v901, %v1180
        %v1197 = vmul.f32 %v1181, %v604
        %v1198 = vmul.f32 %v1182, %v604
        %v1199 = vmul.f32 %v1183, %v604
        %v1200 = vmul.f32 %v1184, %v604
        %v1201 = vmul.f32 %v1185, %v604
        %v1202 = vmul.f32 %v1186, %v604
        %v1203 = vmul.f32 %v1187, %v604
        %v1204 = vmul.f32 %v1188, %v604
        %v1205 = vmul.f32 %v1189, %v604
        %v1206 = vmul.f32 %v1190, %v604
        %v1207 = vmul.f32 %v1191, %v604
        %v1208 = vmul.f32 %v1192, %v604
        %v1209 = vmul.f32 %v1193, %v604
        %v1210 = vmul.f32 %v1194, %v604
        %v1211 = vmul.f32 %v1195, %v604
        %v1212 = vmul.f32 %v1196, %v604
        %v1213 = vmul.f32 %v1197, %v1197
        %v1214 = vmul.f32 %v1198, %v1198
        %v1215 = vmul.f32 %v1199, %v1199
        %v1216 = vmul.f32 %v1200, %v1200
        %v1217 = vmul.f32 %v1201, %v1201
        %v1218 = vmul.f32 %v1202, %v1202
        %v1219 = vmul.f32 %v1203, %v1203
        %v1220 = vmul.f32 %v1204, %v1204
        %v1221 = vmul.f32 %v1205, %v1205
        %v1222 = vmul.f32 %v1206, %v1206
        %v1223 = vmul.f32 %v1207, %v1207
        %v1224 = vmul.f32 %v1208, %v1208
        %v1225 = vmul.f32 %v1209, %v1209
        %v1226 = vmul.f32 %v1210, %v1210
        %v1227 = vmul.f32 %v1211, %v1211
        %v1228 = vmul.f32 %v1212, %v1212
        %1229 = vadd.xlane.f32.xlu0 %v1213
        %v1230 = vpop.xlane.xlu0 %1229
        %1231 = vadd.xlane.f32.xlu0 %v1214
        %v1232 = vpop.xlane.xlu0 %1231
        %1233 = vadd.xlane.f32.xlu0 %v1215
        %v1234 = vpop.xlane.xlu0 %1233
        %1235 = vadd.xlane.f32.xlu0 %v1216
        %v1236 = vpop.xlane.xlu0 %1235
        %1237 = vadd.xlane.f32.xlu0 %v1217
        %v1238 = vpop.xlane.xlu0 %1237
        %1239 = vadd.xlane.f32.xlu0 %v1218
        %v1240 = vpop.xlane.xlu0 %1239
        %1241 = vadd.xlane.f32.xlu0 %v1219
        %v1242 = vpop.xlane.xlu0 %1241
        %1243 = vadd.xlane.f32.xlu0 %v1220
        %v1244 = vpop.xlane.xlu0 %1243
        %1245 = vadd.xlane.f32.xlu0 %v1221
        %v1246 = vpop.xlane.xlu0 %1245
        %1247 = vadd.xlane.f32.xlu0 %v1222
        %v1248 = vpop.xlane.xlu0 %1247
        %1249 = vadd.xlane.f32.xlu0 %v1223
        %v1250 = vpop.xlane.xlu0 %1249
        %1251 = vadd.xlane.f32.xlu0 %v1224
        %v1252 = vpop.xlane.xlu0 %1251
        %1253 = vadd.xlane.f32.xlu0 %v1225
        %v1254 = vpop.xlane.xlu0 %1253
        %1255 = vadd.xlane.f32.xlu0 %v1226
        %v1256 = vpop.xlane.xlu0 %1255
        %1257 = vadd.xlane.f32.xlu0 %v1227
        %v1258 = vpop.xlane.xlu0 %1257
        %1259 = vadd.xlane.f32.xlu0 %v1228
        %v1260 = vpop.xlane.xlu0 %1259
        %v1261 = vmul.f32 %v1230, 0.015625
        %v1262 = vmul.f32 %v1232, 0.015625
        %v1263 = vmul.f32 %v1234, 0.015625
        %v1264 = vmul.f32 %v1236, 0.015625
        %v1265 = vmul.f32 %v1238, 0.015625
        %v1266 = vmul.f32 %v1240, 0.015625
        %v1267 = vmul.f32 %v1242, 0.015625
        %v1268 = vmul.f32 %v1244, 0.015625
        %v1269 = vmul.f32 %v1246, 0.015625
        %v1270 = vmul.f32 %v1248, 0.015625
        %v1271 = vmul.f32 %v1250, 0.015625
        %v1272 = vmul.f32 %v1252, 0.015625
        %v1273 = vmul.f32 %v1254, 0.015625
        %v1274 = vmul.f32 %v1256, 0.015625
        %v1275 = vmul.f32 %v1258, 0.015625
        %v1276 = vmul.f32 %v1260, 0.015625
        %v1277 = vadd.f32 %v1261, 1e-05
        %v1278 = vadd.f32 %v1262, 1e-05
        %v1279 = vadd.f32 %v1263, 1e-05
        %v1280 = vadd.f32 %v1264, 1e-05
        %v1281 = vadd.f32 %v1265, 1e-05
        %v1282 = vadd.f32 %v1266, 1e-05
        %v1283 = vadd.f32 %v1267, 1e-05
        %v1284 = vadd.f32 %v1268, 1e-05
        %v1285 = vadd.f32 %v1269, 1e-05
        %v1286 = vadd.f32 %v1270, 1e-05
        %v1287 = vadd.f32 %v1271, 1e-05
        %v1288 = vadd.f32 %v1272, 1e-05
        %v1289 = vadd.f32 %v1273, 1e-05
        %v1290 = vadd.f32 %v1274, 1e-05
        %v1291 = vadd.f32 %v1275, 1e-05
        %v1292 = vadd.f32 %v1276, 1e-05
        %v1293 = vrsqrt.pop %v1277
        %v1294 = vrsqrt.pop %v1278
        %v1295 = vrsqrt.pop %v1279
        %v1296 = vrsqrt.pop %v1280
        %v1297 = vrsqrt.pop %v1281
        %v1298 = vrsqrt.pop %v1282
        %v1299 = vrsqrt.pop %v1283
        %v1300 = vrsqrt.pop %v1284
        %v1301 = vrsqrt.pop %v1285
        %v1302 = vrsqrt.pop %v1286
        %v1303 = vrsqrt.pop %v1287
        %v1304 = vrsqrt.pop %v1288
        %v1305 = vrsqrt.pop %v1289
        %v1306 = vrsqrt.pop %v1290
        %v1307 = vrsqrt.pop %v1291
        %v1308 = vrsqrt.pop %v1292
        %v1309 = vmul.f32 %v1197, %v1293
        %v1310 = vmul.f32 %v1198, %v1294
        %v1311 = vmul.f32 %v1199, %v1295
        %v1312 = vmul.f32 %v1200, %v1296
        %v1313 = vmul.f32 %v1201, %v1297
        %v1314 = vmul.f32 %v1202, %v1298
        %v1315 = vmul.f32 %v1203, %v1299
        %v1316 = vmul.f32 %v1204, %v1300
        %v1317 = vmul.f32 %v1205, %v1301
        %v1318 = vmul.f32 %v1206, %v1302
        %v1319 = vmul.f32 %v1207, %v1303
        %v1320 = vmul.f32 %v1208, %v1304
        %v1321 = vmul.f32 %v1209, %v1305
        %v1322 = vmul.f32 %v1210, %v1306
        %v1323 = vmul.f32 %v1211, %v1307
        %v1324 = vmul.f32 %v1212, %v1308
        %v1326 = vlaneseq
        %v1327 = vshrl.u32 %v1326, 7
        %v1328 = vsub.s32 0, %v1327
        %v1329 = vrot.slane %v1131, %v1328
        %v1331 = vmul.f32 %v1309, %v1329
        %v1332 = vmul.f32 %v1310, %v1329
        %v1333 = vmul.f32 %v1311, %v1329
        %v1334 = vmul.f32 %v1312, %v1329
        %v1335 = vmul.f32 %v1313, %v1329
        %v1336 = vmul.f32 %v1314, %v1329
        %v1337 = vmul.f32 %v1315, %v1329
        %v1338 = vmul.f32 %v1316, %v1329
        %v1339 = vmul.f32 %v1317, %v1329
        %v1340 = vmul.f32 %v1318, %v1329
        %v1341 = vmul.f32 %v1319, %v1329
        %v1342 = vmul.f32 %v1320, %v1329
        %v1343 = vmul.f32 %v1321, %v1329
        %v1344 = vmul.f32 %v1322, %v1329
        %v1345 = vmul.f32 %v1323, %v1329
        %v1346 = vmul.f32 %v1324, %v1329
        %v1348 = vlaneseq
        %v1349 = vshrl.u32 %v1348, 7
        %v1350 = vsub.s32 0, %v1349
        %v1351 = vrot.slane %v1132, %v1350
        %v1353 = vadd.f32 %v1331, %v1351
        %v1354 = vadd.f32 %v1332, %v1351
        %v1355 = vadd.f32 %v1333, %v1351
        %v1356 = vadd.f32 %v1334, %v1351
        %v1357 = vadd.f32 %v1335, %v1351
        %v1358 = vadd.f32 %v1336, %v1351
        %v1359 = vadd.f32 %v1337, %v1351
        %v1360 = vadd.f32 %v1338, %v1351
        %v1361 = vadd.f32 %v1339, %v1351
        %v1362 = vadd.f32 %v1340, %v1351
        %v1363 = vadd.f32 %v1341, %v1351
        %v1364 = vadd.f32 %v1342, %v1351
        %v1365 = vadd.f32 %v1343, %v1351
        %v1366 = vadd.f32 %v1344, %v1351
        %v1367 = vadd.f32 %v1345, %v1351
        %v1368 = vadd.f32 %v1346, %v1351
        %v1369 = vld [vmem:[%s5] sm:$0x1]
        %v1370 = vld [vmem:[%s6] sm:$0x1]
        %1371 = vadd.xlane.f32.xlu0 %v940
        %v1372 = vpop.xlane.xlu0 %1371
        %1373 = vadd.xlane.f32.xlu0 %v944
        %v1374 = vpop.xlane.xlu0 %1373
        %1375 = vadd.xlane.f32.xlu0 %v950
        %v1376 = vpop.xlane.xlu0 %1375
        %1377 = vadd.xlane.f32.xlu0 %v954
        %v1378 = vpop.xlane.xlu0 %1377
        %1379 = vadd.xlane.f32.xlu0 %v960
        %v1380 = vpop.xlane.xlu0 %1379
        %1381 = vadd.xlane.f32.xlu0 %v964
        %v1382 = vpop.xlane.xlu0 %1381
        %1383 = vadd.xlane.f32.xlu0 %v970
        %v1384 = vpop.xlane.xlu0 %1383
        %1385 = vadd.xlane.f32.xlu0 %v974
        %v1386 = vpop.xlane.xlu0 %1385
        %1387 = vadd.xlane.f32.xlu0 %v980
        %v1388 = vpop.xlane.xlu0 %1387
        %1389 = vadd.xlane.f32.xlu0 %v984
        %v1390 = vpop.xlane.xlu0 %1389
        %1391 = vadd.xlane.f32.xlu0 %v990
        %v1392 = vpop.xlane.xlu0 %1391
        %1393 = vadd.xlane.f32.xlu0 %v994
        %v1394 = vpop.xlane.xlu0 %1393
        %1395 = vadd.xlane.f32.xlu0 %v1000
        %v1396 = vpop.xlane.xlu0 %1395
        %1397 = vadd.xlane.f32.xlu0 %v1004
        %v1398 = vpop.xlane.xlu0 %1397
        %1399 = vadd.xlane.f32.xlu0 %v1010
        %v1400 = vpop.xlane.xlu0 %1399
        %1401 = vadd.xlane.f32.xlu0 %v1014
        %v1402 = vpop.xlane.xlu0 %1401
        %v1403 = vmul.f32 %v1372, 0.015625
        %v1404 = vmul.f32 %v1374, 0.015625
        %v1405 = vmul.f32 %v1376, 0.015625
        %v1406 = vmul.f32 %v1378, 0.015625
        %v1407 = vmul.f32 %v1380, 0.015625
        %v1408 = vmul.f32 %v1382, 0.015625
        %v1409 = vmul.f32 %v1384, 0.015625
        %v1410 = vmul.f32 %v1386, 0.015625
        %v1411 = vmul.f32 %v1388, 0.015625
        %v1412 = vmul.f32 %v1390, 0.015625
        %v1413 = vmul.f32 %v1392, 0.015625
        %v1414 = vmul.f32 %v1394, 0.015625
        %v1415 = vmul.f32 %v1396, 0.015625
        %v1416 = vmul.f32 %v1398, 0.015625
        %v1417 = vmul.f32 %v1400, 0.015625
        %v1418 = vmul.f32 %v1402, 0.015625
        %v1419 = vsub.f32 %v940, %v1403
        %v1420 = vsub.f32 %v944, %v1404
        %v1421 = vsub.f32 %v950, %v1405
        %v1422 = vsub.f32 %v954, %v1406
        %v1423 = vsub.f32 %v960, %v1407
        %v1424 = vsub.f32 %v964, %v1408
        %v1425 = vsub.f32 %v970, %v1409
        %v1426 = vsub.f32 %v974, %v1410
        %v1427 = vsub.f32 %v980, %v1411
        %v1428 = vsub.f32 %v984, %v1412
        %v1429 = vsub.f32 %v990, %v1413
        %v1430 = vsub.f32 %v994, %v1414
        %v1431 = vsub.f32 %v1000, %v1415
        %v1432 = vsub.f32 %v1004, %v1416
        %v1433 = vsub.f32 %v1010, %v1417
        %v1434 = vsub.f32 %v1014, %v1418
        %v1435 = vmul.f32 %v1419, %v604
        %v1436 = vmul.f32 %v1420, %v604
        %v1437 = vmul.f32 %v1421, %v604
        %v1438 = vmul.f32 %v1422, %v604
        %v1439 = vmul.f32 %v1423, %v604
        %v1440 = vmul.f32 %v1424, %v604
        %v1441 = vmul.f32 %v1425, %v604
        %v1442 = vmul.f32 %v1426, %v604
        %v1443 = vmul.f32 %v1427, %v604
        %v1444 = vmul.f32 %v1428, %v604
        %v1445 = vmul.f32 %v1429, %v604
        %v1446 = vmul.f32 %v1430, %v604
        %v1447 = vmul.f32 %v1431, %v604
        %v1448 = vmul.f32 %v1432, %v604
        %v1449 = vmul.f32 %v1433, %v604
        %v1450 = vmul.f32 %v1434, %v604
        %v1451 = vmul.f32 %v1435, %v1435
        %v1452 = vmul.f32 %v1436, %v1436
        %v1453 = vmul.f32 %v1437, %v1437
        %v1454 = vmul.f32 %v1438, %v1438
        %v1455 = vmul.f32 %v1439, %v1439
        %v1456 = vmul.f32 %v1440, %v1440
        %v1457 = vmul.f32 %v1441, %v1441
        %v1458 = vmul.f32 %v1442, %v1442
        %v1459 = vmul.f32 %v1443, %v1443
        %v1460 = vmul.f32 %v1444, %v1444
        %v1461 = vmul.f32 %v1445, %v1445
        %v1462 = vmul.f32 %v1446, %v1446
        %v1463 = vmul.f32 %v1447, %v1447
        %v1464 = vmul.f32 %v1448, %v1448
        %v1465 = vmul.f32 %v1449, %v1449
        %v1466 = vmul.f32 %v1450, %v1450
        %1467 = vadd.xlane.f32.xlu0 %v1451
        %v1468 = vpop.xlane.xlu0 %1467
        %1469 = vadd.xlane.f32.xlu0 %v1452
        %v1470 = vpop.xlane.xlu0 %1469
        %1471 = vadd.xlane.f32.xlu0 %v1453
        %v1472 = vpop.xlane.xlu0 %1471
        %1473 = vadd.xlane.f32.xlu0 %v1454
        %v1474 = vpop.xlane.xlu0 %1473
        %1475 = vadd.xlane.f32.xlu0 %v1455
        %v1476 = vpop.xlane.xlu0 %1475
        %1477 = vadd.xlane.f32.xlu0 %v1456
        %v1478 = vpop.xlane.xlu0 %1477
        %1479 = vadd.xlane.f32.xlu0 %v1457
        %v1480 = vpop.xlane.xlu0 %1479
        %1481 = vadd.xlane.f32.xlu0 %v1458
        %v1482 = vpop.xlane.xlu0 %1481
        %1483 = vadd.xlane.f32.xlu0 %v1459
        %v1484 = vpop.xlane.xlu0 %1483
        %1485 = vadd.xlane.f32.xlu0 %v1460
        %v1486 = vpop.xlane.xlu0 %1485
        %1487 = vadd.xlane.f32.xlu0 %v1461
        %v1488 = vpop.xlane.xlu0 %1487
        %1489 = vadd.xlane.f32.xlu0 %v1462
        %v1490 = vpop.xlane.xlu0 %1489
        %1491 = vadd.xlane.f32.xlu0 %v1463
        %v1492 = vpop.xlane.xlu0 %1491
        %1493 = vadd.xlane.f32.xlu0 %v1464
        %v1494 = vpop.xlane.xlu0 %1493
        %1495 = vadd.xlane.f32.xlu0 %v1465
        %v1496 = vpop.xlane.xlu0 %1495
        %1497 = vadd.xlane.f32.xlu0 %v1466
        %v1498 = vpop.xlane.xlu0 %1497
        %v1499 = vmul.f32 %v1468, 0.015625
        %v1500 = vmul.f32 %v1470, 0.015625
        %v1501 = vmul.f32 %v1472, 0.015625
        %v1502 = vmul.f32 %v1474, 0.015625
        %v1503 = vmul.f32 %v1476, 0.015625
        %v1504 = vmul.f32 %v1478, 0.015625
        %v1505 = vmul.f32 %v1480, 0.015625
        %v1506 = vmul.f32 %v1482, 0.015625
        %v1507 = vmul.f32 %v1484, 0.015625
        %v1508 = vmul.f32 %v1486, 0.015625
        %v1509 = vmul.f32 %v1488, 0.015625
        %v1510 = vmul.f32 %v1490, 0.015625
        %v1511 = vmul.f32 %v1492, 0.015625
        %v1512 = vmul.f32 %v1494, 0.015625
        %v1513 = vmul.f32 %v1496, 0.015625
        %v1514 = vmul.f32 %v1498, 0.015625
        %v1515 = vadd.f32 %v1499, 1e-05
        %v1516 = vadd.f32 %v1500, 1e-05
        %v1517 = vadd.f32 %v1501, 1e-05
        %v1518 = vadd.f32 %v1502, 1e-05
        %v1519 = vadd.f32 %v1503, 1e-05
        %v1520 = vadd.f32 %v1504, 1e-05
        %v1521 = vadd.f32 %v1505, 1e-05
        %v1522 = vadd.f32 %v1506, 1e-05
        %v1523 = vadd.f32 %v1507, 1e-05
        %v1524 = vadd.f32 %v1508, 1e-05
        %v1525 = vadd.f32 %v1509, 1e-05
        %v1526 = vadd.f32 %v1510, 1e-05
        %v1527 = vadd.f32 %v1511, 1e-05
        %v1528 = vadd.f32 %v1512, 1e-05
        %v1529 = vadd.f32 %v1513, 1e-05
        %v1530 = vadd.f32 %v1514, 1e-05
        %v1531 = vrsqrt.pop %v1515
        %v1532 = vrsqrt.pop %v1516
        %v1533 = vrsqrt.pop %v1517
        %v1534 = vrsqrt.pop %v1518
        %v1535 = vrsqrt.pop %v1519
        %v1536 = vrsqrt.pop %v1520
        %v1537 = vrsqrt.pop %v1521
        %v1538 = vrsqrt.pop %v1522
        %v1539 = vrsqrt.pop %v1523
        %v1540 = vrsqrt.pop %v1524
        %v1541 = vrsqrt.pop %v1525
        %v1542 = vrsqrt.pop %v1526
        %v1543 = vrsqrt.pop %v1527
        %v1544 = vrsqrt.pop %v1528
        %v1545 = vrsqrt.pop %v1529
        %v1546 = vrsqrt.pop %v1530
        %v1547 = vmul.f32 %v1435, %v1531
        %v1548 = vmul.f32 %v1436, %v1532
        %v1549 = vmul.f32 %v1437, %v1533
        %v1550 = vmul.f32 %v1438, %v1534
        %v1551 = vmul.f32 %v1439, %v1535
        %v1552 = vmul.f32 %v1440, %v1536
        %v1553 = vmul.f32 %v1441, %v1537
        %v1554 = vmul.f32 %v1442, %v1538
        %v1555 = vmul.f32 %v1443, %v1539
        %v1556 = vmul.f32 %v1444, %v1540
        %v1557 = vmul.f32 %v1445, %v1541
        %v1558 = vmul.f32 %v1446, %v1542
        %v1559 = vmul.f32 %v1447, %v1543
        %v1560 = vmul.f32 %v1448, %v1544
        %v1561 = vmul.f32 %v1449, %v1545
        %v1562 = vmul.f32 %v1450, %v1546
        %v1564 = vlaneseq
        %v1565 = vshrl.u32 %v1564, 7
        %v1566 = vsub.s32 0, %v1565
        %v1567 = vrot.slane %v1369, %v1566
        %v1569 = vmul.f32 %v1547, %v1567
        %v1570 = vmul.f32 %v1548, %v1567
        %v1571 = vmul.f32 %v1549, %v1567
        %v1572 = vmul.f32 %v1550, %v1567
        %v1573 = vmul.f32 %v1551, %v1567
        %v1574 = vmul.f32 %v1552, %v1567
        %v1575 = vmul.f32 %v1553, %v1567
        %v1576 = vmul.f32 %v1554, %v1567
        %v1577 = vmul.f32 %v1555, %v1567
        %v1578 = vmul.f32 %v1556, %v1567
        %v1579 = vmul.f32 %v1557, %v1567
        %v1580 = vmul.f32 %v1558, %v1567
        %v1581 = vmul.f32 %v1559, %v1567
        %v1582 = vmul.f32 %v1560, %v1567
        %v1583 = vmul.f32 %v1561, %v1567
        %v1584 = vmul.f32 %v1562, %v1567
        %v1586 = vlaneseq
        %v1587 = vshrl.u32 %v1586, 7
        %v1588 = vsub.s32 0, %v1587
        %v1589 = vrot.slane %v1370, %v1588
        %v1591 = vadd.f32 %v1569, %v1589
        %v1592 = vadd.f32 %v1570, %v1589
        %v1593 = vadd.f32 %v1571, %v1589
        %v1594 = vadd.f32 %v1572, %v1589
        %v1595 = vadd.f32 %v1573, %v1589
        %v1596 = vadd.f32 %v1574, %v1589
        %v1597 = vadd.f32 %v1575, %v1589
        %v1598 = vadd.f32 %v1576, %v1589
        %v1599 = vadd.f32 %v1577, %v1589
        %v1600 = vadd.f32 %v1578, %v1589
        %v1601 = vadd.f32 %v1579, %v1589
        %v1602 = vadd.f32 %v1580, %v1589
        %v1603 = vadd.f32 %v1581, %v1589
        %v1604 = vadd.f32 %v1582, %v1589
        %v1605 = vadd.f32 %v1583, %v1589
        %v1606 = vadd.f32 %v1584, %v1589
        %v1607 = vld [vmem:[%s7] sm:$0x1]
        %v1608 = vld [vmem:[%s8] sm:$0x1]
        %1609 = vadd.xlane.f32.xlu0 %v1053
        %v1610 = vpop.xlane.xlu0 %1609
        %1611 = vadd.xlane.f32.xlu0 %v1057
        %v1612 = vpop.xlane.xlu0 %1611
        %1613 = vadd.xlane.f32.xlu0 %v1063
        %v1614 = vpop.xlane.xlu0 %1613
        %1615 = vadd.xlane.f32.xlu0 %v1067
        %v1616 = vpop.xlane.xlu0 %1615
        %1617 = vadd.xlane.f32.xlu0 %v1073
        %v1618 = vpop.xlane.xlu0 %1617
        %1619 = vadd.xlane.f32.xlu0 %v1077
        %v1620 = vpop.xlane.xlu0 %1619
        %1621 = vadd.xlane.f32.xlu0 %v1083
        %v1622 = vpop.xlane.xlu0 %1621
        %1623 = vadd.xlane.f32.xlu0 %v1087
        %v1624 = vpop.xlane.xlu0 %1623
        %1625 = vadd.xlane.f32.xlu0 %v1093
        %v1626 = vpop.xlane.xlu0 %1625
        %1627 = vadd.xlane.f32.xlu0 %v1097
        %v1628 = vpop.xlane.xlu0 %1627
        %1629 = vadd.xlane.f32.xlu0 %v1103
        %v1630 = vpop.xlane.xlu0 %1629
        %1631 = vadd.xlane.f32.xlu0 %v1107
        %v1632 = vpop.xlane.xlu0 %1631
        %1633 = vadd.xlane.f32.xlu0 %v1113
        %v1634 = vpop.xlane.xlu0 %1633
        %1635 = vadd.xlane.f32.xlu0 %v1117
        %v1636 = vpop.xlane.xlu0 %1635
        %1637 = vadd.xlane.f32.xlu0 %v1123
        %v1638 = vpop.xlane.xlu0 %1637
        %1639 = vadd.xlane.f32.xlu0 %v1127
        %v1640 = vpop.xlane.xlu0 %1639
        %v1641 = vmul.f32 %v1610, 0.03846154
        %v1642 = vmul.f32 %v1612, 0.03846154
        %v1643 = vmul.f32 %v1614, 0.03846154
        %v1644 = vmul.f32 %v1616, 0.03846154
        %v1645 = vmul.f32 %v1618, 0.03846154
        %v1646 = vmul.f32 %v1620, 0.03846154
        %v1647 = vmul.f32 %v1622, 0.03846154
        %v1648 = vmul.f32 %v1624, 0.03846154
        %v1649 = vmul.f32 %v1626, 0.03846154
        %v1650 = vmul.f32 %v1628, 0.03846154
        %v1651 = vmul.f32 %v1630, 0.03846154
        %v1652 = vmul.f32 %v1632, 0.03846154
        %v1653 = vmul.f32 %v1634, 0.03846154
        %v1654 = vmul.f32 %v1636, 0.03846154
        %v1655 = vmul.f32 %v1638, 0.03846154
        %v1656 = vmul.f32 %v1640, 0.03846154
        %v1657 = vsub.f32 %v1053, %v1641
        %v1658 = vsub.f32 %v1057, %v1642
        %v1659 = vsub.f32 %v1063, %v1643
        %v1660 = vsub.f32 %v1067, %v1644
        %v1661 = vsub.f32 %v1073, %v1645
        %v1662 = vsub.f32 %v1077, %v1646
        %v1663 = vsub.f32 %v1083, %v1647
        %v1664 = vsub.f32 %v1087, %v1648
        %v1665 = vsub.f32 %v1093, %v1649
        %v1666 = vsub.f32 %v1097, %v1650
        %v1667 = vsub.f32 %v1103, %v1651
        %v1668 = vsub.f32 %v1107, %v1652
        %v1669 = vsub.f32 %v1113, %v1653
        %v1670 = vsub.f32 %v1117, %v1654
        %v1671 = vsub.f32 %v1123, %v1655
        %v1672 = vsub.f32 %v1127, %v1656
        %v1673 = vmul.f32 %v1657, %v607
        %v1674 = vmul.f32 %v1658, %v607
        %v1675 = vmul.f32 %v1659, %v607
        %v1676 = vmul.f32 %v1660, %v607
        %v1677 = vmul.f32 %v1661, %v607
        %v1678 = vmul.f32 %v1662, %v607
        %v1679 = vmul.f32 %v1663, %v607
        %v1680 = vmul.f32 %v1664, %v607
        %v1681 = vmul.f32 %v1665, %v607
        %v1682 = vmul.f32 %v1666, %v607
        %v1683 = vmul.f32 %v1667, %v607
        %v1684 = vmul.f32 %v1668, %v607
        %v1685 = vmul.f32 %v1669, %v607
        %v1686 = vmul.f32 %v1670, %v607
        %v1687 = vmul.f32 %v1671, %v607
        %v1688 = vmul.f32 %v1672, %v607
        %v1689 = vmul.f32 %v1673, %v1673
        %v1690 = vmul.f32 %v1674, %v1674
        %v1691 = vmul.f32 %v1675, %v1675
        %v1692 = vmul.f32 %v1676, %v1676
        %v1693 = vmul.f32 %v1677, %v1677
        %v1694 = vmul.f32 %v1678, %v1678
        %v1695 = vmul.f32 %v1679, %v1679
        %v1696 = vmul.f32 %v1680, %v1680
        %v1697 = vmul.f32 %v1681, %v1681
        %v1698 = vmul.f32 %v1682, %v1682
        %v1699 = vmul.f32 %v1683, %v1683
        %v1700 = vmul.f32 %v1684, %v1684
        %v1701 = vmul.f32 %v1685, %v1685
        %v1702 = vmul.f32 %v1686, %v1686
        %v1703 = vmul.f32 %v1687, %v1687
        %v1704 = vmul.f32 %v1688, %v1688
        %1705 = vadd.xlane.f32.xlu0 %v1689
        %v1706 = vpop.xlane.xlu0 %1705
        %1707 = vadd.xlane.f32.xlu0 %v1690
        %v1708 = vpop.xlane.xlu0 %1707
        %1709 = vadd.xlane.f32.xlu0 %v1691
        %v1710 = vpop.xlane.xlu0 %1709
        %1711 = vadd.xlane.f32.xlu0 %v1692
        %v1712 = vpop.xlane.xlu0 %1711
        %1713 = vadd.xlane.f32.xlu0 %v1693
        %v1714 = vpop.xlane.xlu0 %1713
        %1715 = vadd.xlane.f32.xlu0 %v1694
        %v1716 = vpop.xlane.xlu0 %1715
        %1717 = vadd.xlane.f32.xlu0 %v1695
        %v1718 = vpop.xlane.xlu0 %1717
        %1719 = vadd.xlane.f32.xlu0 %v1696
        %v1720 = vpop.xlane.xlu0 %1719
        %1721 = vadd.xlane.f32.xlu0 %v1697
        %v1722 = vpop.xlane.xlu0 %1721
        %1723 = vadd.xlane.f32.xlu0 %v1698
        %v1724 = vpop.xlane.xlu0 %1723
        %1725 = vadd.xlane.f32.xlu0 %v1699
        %v1726 = vpop.xlane.xlu0 %1725
        %1727 = vadd.xlane.f32.xlu0 %v1700
        %v1728 = vpop.xlane.xlu0 %1727
        %1729 = vadd.xlane.f32.xlu0 %v1701
        %v1730 = vpop.xlane.xlu0 %1729
        %1731 = vadd.xlane.f32.xlu0 %v1702
        %v1732 = vpop.xlane.xlu0 %1731
        %1733 = vadd.xlane.f32.xlu0 %v1703
        %v1734 = vpop.xlane.xlu0 %1733
        %1735 = vadd.xlane.f32.xlu0 %v1704
        %v1736 = vpop.xlane.xlu0 %1735
        %v1737 = vmul.f32 %v1706, 0.03846154
        %v1738 = vmul.f32 %v1708, 0.03846154
        %v1739 = vmul.f32 %v1710, 0.03846154
        %v1740 = vmul.f32 %v1712, 0.03846154
        %v1741 = vmul.f32 %v1714, 0.03846154
        %v1742 = vmul.f32 %v1716, 0.03846154
        %v1743 = vmul.f32 %v1718, 0.03846154
        %v1744 = vmul.f32 %v1720, 0.03846154
        %v1745 = vmul.f32 %v1722, 0.03846154
        %v1746 = vmul.f32 %v1724, 0.03846154
        %v1747 = vmul.f32 %v1726, 0.03846154
        %v1748 = vmul.f32 %v1728, 0.03846154
        %v1749 = vmul.f32 %v1730, 0.03846154
        %v1750 = vmul.f32 %v1732, 0.03846154
        %v1751 = vmul.f32 %v1734, 0.03846154
        %v1752 = vmul.f32 %v1736, 0.03846154
        %v1753 = vadd.f32 %v1737, 1e-05
        %v1754 = vadd.f32 %v1738, 1e-05
        %v1755 = vadd.f32 %v1739, 1e-05
        %v1756 = vadd.f32 %v1740, 1e-05
        %v1757 = vadd.f32 %v1741, 1e-05
        %v1758 = vadd.f32 %v1742, 1e-05
        %v1759 = vadd.f32 %v1743, 1e-05
        %v1760 = vadd.f32 %v1744, 1e-05
        %v1761 = vadd.f32 %v1745, 1e-05
        %v1762 = vadd.f32 %v1746, 1e-05
        %v1763 = vadd.f32 %v1747, 1e-05
        %v1764 = vadd.f32 %v1748, 1e-05
        %v1765 = vadd.f32 %v1749, 1e-05
        %v1766 = vadd.f32 %v1750, 1e-05
        %v1767 = vadd.f32 %v1751, 1e-05
        %v1768 = vadd.f32 %v1752, 1e-05
        %v1769 = vrsqrt.pop %v1753
        %v1770 = vrsqrt.pop %v1754
        %v1771 = vrsqrt.pop %v1755
        %v1772 = vrsqrt.pop %v1756
        %v1773 = vrsqrt.pop %v1757
        %v1774 = vrsqrt.pop %v1758
        %v1775 = vrsqrt.pop %v1759
        %v1776 = vrsqrt.pop %v1760
        %v1777 = vrsqrt.pop %v1761
        %v1778 = vrsqrt.pop %v1762
        %v1779 = vrsqrt.pop %v1763
        %v1780 = vrsqrt.pop %v1764
        %v1781 = vrsqrt.pop %v1765
        %v1782 = vrsqrt.pop %v1766
        %v1783 = vrsqrt.pop %v1767
        %v1784 = vrsqrt.pop %v1768
        %v1785 = vmul.f32 %v1673, %v1769
        %v1786 = vmul.f32 %v1674, %v1770
        %v1787 = vmul.f32 %v1675, %v1771
        %v1788 = vmul.f32 %v1676, %v1772
        %v1789 = vmul.f32 %v1677, %v1773
        %v1790 = vmul.f32 %v1678, %v1774
        %v1791 = vmul.f32 %v1679, %v1775
        %v1792 = vmul.f32 %v1680, %v1776
        %v1793 = vmul.f32 %v1681, %v1777
        %v1794 = vmul.f32 %v1682, %v1778
        %v1795 = vmul.f32 %v1683, %v1779
        %v1796 = vmul.f32 %v1684, %v1780
        %v1797 = vmul.f32 %v1685, %v1781
        %v1798 = vmul.f32 %v1686, %v1782
        %v1799 = vmul.f32 %v1687, %v1783
        %v1800 = vmul.f32 %v1688, %v1784
        %v1802 = vlaneseq
        %v1803 = vshrl.u32 %v1802, 7
        %v1804 = vsub.s32 0, %v1803
        %v1805 = vrot.slane %v1607, %v1804
        %v1807 = vmul.f32 %v1785, %v1805
        %v1808 = vmul.f32 %v1786, %v1805
        %v1809 = vmul.f32 %v1787, %v1805
        %v1810 = vmul.f32 %v1788, %v1805
        %v1811 = vmul.f32 %v1789, %v1805
        %v1812 = vmul.f32 %v1790, %v1805
        %v1813 = vmul.f32 %v1791, %v1805
        %v1814 = vmul.f32 %v1792, %v1805
        %v1815 = vmul.f32 %v1793, %v1805
        %v1816 = vmul.f32 %v1794, %v1805
        %v1817 = vmul.f32 %v1795, %v1805
        %v1818 = vmul.f32 %v1796, %v1805
        %v1819 = vmul.f32 %v1797, %v1805
        %v1820 = vmul.f32 %v1798, %v1805
        %v1821 = vmul.f32 %v1799, %v1805
        %v1822 = vmul.f32 %v1800, %v1805
        %v1824 = vlaneseq
        %v1825 = vshrl.u32 %v1824, 7
        %v1826 = vsub.s32 0, %v1825
        %v1827 = vrot.slane %v1608, %v1826
        %v1829 = vadd.f32 %v1807, %v1827
        %v1830 = vadd.f32 %v1808, %v1827
        %v1831 = vadd.f32 %v1809, %v1827
        %v1832 = vadd.f32 %v1810, %v1827
        %v1833 = vadd.f32 %v1811, %v1827
        %v1834 = vadd.f32 %v1812, %v1827
        %v1835 = vadd.f32 %v1813, %v1827
        %v1836 = vadd.f32 %v1814, %v1827
        %v1837 = vadd.f32 %v1815, %v1827
        %v1838 = vadd.f32 %v1816, %v1827
        %v1839 = vadd.f32 %v1817, %v1827
        %v1840 = vadd.f32 %v1818, %v1827
        %v1841 = vadd.f32 %v1819, %v1827
        %v1842 = vadd.f32 %v1820, %v1827
        %v1843 = vadd.f32 %v1821, %v1827
        %v1844 = vadd.f32 %v1822, %v1827
        %v1845 = vpack.c.bf16 %v1354, %v1353
        %v1846 = vpack.c.bf16 %v1356, %v1355
        %v1847 = vpack.c.bf16 %v1358, %v1357
        %v1848 = vpack.c.bf16 %v1360, %v1359
        %v1849 = vpack.c.bf16 %v1592, %v1591
        %v1850 = vpack.c.bf16 %v1594, %v1593
        %v1851 = vpack.c.bf16 %v1596, %v1595
        %v1852 = vpack.c.bf16 %v1598, %v1597
        %v1853 = vpack.c.bf16 %v1830, %v1829
        %v1854 = vpack.c.bf16 %v1832, %v1831
        %v1855 = vpack.c.bf16 %v1834, %v1833
        %v1856 = vpack.c.bf16 %v1836, %v1835
        %1857 = vmatprep.subr.bf16.mxu0 0
        %1858 = vmatpush1.bf16.xpose.msra.mxu0 0
        %1859 = vmatprep.subr.bf16.mxu0 0
        %1860 = vmatpush1.bf16.xpose.msra.mxu0 0
        %1861 = vmatprep.subr.bf16.mxu0 0
        %1862 = vmatpush1.bf16.xpose.msra.mxu0 0
        %1863 = vmatprep.subr.bf16.mxu0 0
        %1864 = vmatpush1.bf16.xpose.msra.mxu0 0
        %1865 = vmatprep.subr.bf16.mxu0 0
        %1866 = vmatpush1.bf16.xpose.msra.mxu0 %v1852
        %1867 = vmatprep.subr.bf16.mxu0 0
        %1868 = vmatpush1.bf16.xpose.msra.mxu0 %v1851
        %1869 = vmatprep.subr.bf16.mxu0 0
        %1870 = vmatpush1.bf16.xpose.msra.mxu0 %v1850
        %1871 = vmatprep.subr.bf16.mxu0 0
        %1872 = vmatpush1.bf16.xpose.msra.mxu0 %v1849
        %1873 = vmatprep.subr.bf16.mxu0 0
        %1874 = vmatpush2.bf16.xpose.msra.mxu0 0
        %1875 = vmatprep.subr.bf16.mxu0 0
        %1876 = vmatpush2.bf16.xpose.msra.mxu0 0
        %1877 = vmatprep.subr.bf16.mxu0 0
        %1878 = vmatpush2.bf16.xpose.msra.mxu0 0
        %1879 = vmatprep.subr.bf16.mxu0 0
        %1880 = vmatpush2.bf16.xpose.msra.mxu0 0
        %1881 = vmatprep.subr.bf16.mxu0 0
        %1882 = vmatpush2.bf16.xpose.msra.mxu0 0
        %1883 = vmatprep.subr.bf16.mxu0 0
        %1884 = vmatpush2.bf16.xpose.msra.mxu0 0
        %1885 = vmatprep.subr.bf16.mxu0 0
        %1886 = vmatpush2.bf16.xpose.msra.mxu0 0
        %1887 = vmatprep.subr.bf16.mxu0 0
        %1888 = vmatpush2.bf16.xpose.msra.mxu0 0
        %1889 = vmatprep.mubr.bf16.mxu0 0
        %1890 = vmatmul.mubr.bf16.gmra.mxu0 %v1845
        %v1891 = vpop.f32.mrf.mxu0
        %v1892 = vadd.f32 0.0, %v1891
        %v1893 = vpop.f32.mrf.mxu0
        %v1894 = vpop.f32.mrf.mxu0
        %v1895 = vadd.f32 0.0, %v1894
        %v1896 = vpop.f32.mrf.mxu0
        %1897 = vmatprep.mubr.bf16.mxu0 0
        %1898 = vmatmul.mubr.bf16.gmra.mxu0 %v1846
        %v1899 = vpop.f32.mrf.mxu0
        %v1900 = vadd.f32 0.0, %v1899
        %v1901 = vpop.f32.mrf.mxu0
        %v1902 = vpop.f32.mrf.mxu0
        %v1903 = vadd.f32 0.0, %v1902
        %v1904 = vpop.f32.mrf.mxu0
        %1905 = vmatprep.mubr.bf16.mxu0 0
        %1906 = vmatmul.mubr.bf16.gmra.mxu0 %v1847
        %v1907 = vpop.f32.mrf.mxu0
        %v1908 = vadd.f32 0.0, %v1907
        %v1909 = vpop.f32.mrf.mxu0
        %v1910 = vpop.f32.mrf.mxu0
        %v1911 = vadd.f32 0.0, %v1910
        %v1912 = vpop.f32.mrf.mxu0
        %1913 = vmatprep.mubr.bf16.mxu0 0
        %1914 = vmatmul.mubr.bf16.gmra.mxu0 %v1848
        %v1915 = vpop.f32.mrf.mxu0
        %v1916 = vadd.f32 0.0, %v1915
        %v1917 = vpop.f32.mrf.mxu0
        %v1918 = vpop.f32.mrf.mxu0
        %v1919 = vadd.f32 0.0, %v1918
        %v1920 = vpop.f32.mrf.mxu0
        %1921 = vdwg.mxu0
        %vm1922 = vcmask 523264
        %v1923 = vsel %vm1922, %v1892, -inf
        %1924 = vmax.xlane.f32.xlu0 %v1923
        %v1925 = vpop.xlane.xlu0 %1924
        %v1926 = vsel %vm1922, %v1895, -inf
        %1927 = vmax.xlane.f32.xlu0 %v1926
        %v1928 = vpop.xlane.xlu0 %1927
        %v1929 = vsel %vm1922, %v1900, -inf
        %1930 = vmax.xlane.f32.xlu0 %v1929
        %v1931 = vpop.xlane.xlu0 %1930
        %v1932 = vsel %vm1922, %v1903, -inf
        %1933 = vmax.xlane.f32.xlu0 %v1932
        %v1934 = vpop.xlane.xlu0 %1933
        %v1935 = vsel %vm1922, %v1908, -inf
        %1936 = vmax.xlane.f32.xlu0 %v1935
        %v1937 = vpop.xlane.xlu0 %1936
        %v1938 = vsel %vm1922, %v1911, -inf
        %1939 = vmax.xlane.f32.xlu0 %v1938
        %v1940 = vpop.xlane.xlu0 %1939
        %v1941 = vsel %vm1922, %v1916, -inf
        %1942 = vmax.xlane.f32.xlu0 %v1941
        %v1943 = vpop.xlane.xlu0 %1942
        %v1944 = vsel %vm1922, %v1919, -inf
        %1945 = vmax.xlane.f32.xlu0 %v1944
        %v1946 = vpop.xlane.xlu0 %1945
        %v1947 = vsub.f32 %v1892, %v1925
        %v1948 = vsub.f32 %v1895, %v1928
        %v1949 = vsub.f32 %v1900, %v1931
        %v1950 = vsub.f32 %v1903, %v1934
        %v1951 = vsub.f32 %v1908, %v1937
        %v1952 = vsub.f32 %v1911, %v1940
        %v1953 = vsub.f32 %v1916, %v1943
        %v1954 = vsub.f32 %v1919, %v1946
        %v1955 = vmul.f32 %v1947, 1.442695
        %v1956 = vpow.pop %v1955
        %v1957 = vmul.f32 %v1948, 1.442695
        %v1958 = vpow.pop %v1957
        %v1959 = vmul.f32 %v1949, 1.442695
        %v1960 = vpow.pop %v1959
        %v1961 = vmul.f32 %v1950, 1.442695
        %v1962 = vpow.pop %v1961
        %v1963 = vmul.f32 %v1951, 1.442695
        %v1964 = vpow.pop %v1963
        %v1965 = vmul.f32 %v1952, 1.442695
        %v1966 = vpow.pop %v1965
        %v1967 = vmul.f32 %v1953, 1.442695
        %v1968 = vpow.pop %v1967
        %v1969 = vmul.f32 %v1954, 1.442695
        %v1970 = vpow.pop %v1969
        %v1971 = vsel %vm1922, %v1956, 0.0
        %1972 = vadd.xlane.f32.xlu0 %v1971
        %v1973 = vpop.xlane.xlu0 %1972
        %v1974 = vsel %vm1922, %v1958, 0.0
        %1975 = vadd.xlane.f32.xlu0 %v1974
        %v1976 = vpop.xlane.xlu0 %1975
        %v1977 = vsel %vm1922, %v1960, 0.0
        %1978 = vadd.xlane.f32.xlu0 %v1977
        %v1979 = vpop.xlane.xlu0 %1978
        %v1980 = vsel %vm1922, %v1962, 0.0
        %1981 = vadd.xlane.f32.xlu0 %v1980
        %v1982 = vpop.xlane.xlu0 %1981
        %v1983 = vsel %vm1922, %v1964, 0.0
        %1984 = vadd.xlane.f32.xlu0 %v1983
        %v1985 = vpop.xlane.xlu0 %1984
        %v1986 = vsel %vm1922, %v1966, 0.0
        %1987 = vadd.xlane.f32.xlu0 %v1986
        %v1988 = vpop.xlane.xlu0 %1987
        %v1989 = vsel %vm1922, %v1968, 0.0
        %1990 = vadd.xlane.f32.xlu0 %v1989
        %v1991 = vpop.xlane.xlu0 %1990
        %v1992 = vsel %vm1922, %v1970, 0.0
        %1993 = vadd.xlane.f32.xlu0 %v1992
        %v1994 = vpop.xlane.xlu0 %1993
        %v1995 = vrcp.pop %v1973
        %v1996 = vrcp.pop %v1976
        %v1997 = vrcp.pop %v1979
        %v1998 = vrcp.pop %v1982
        %v1999 = vrcp.pop %v1985
        %v2000 = vrcp.pop %v1988
        %v2001 = vrcp.pop %v1991
        %v2002 = vrcp.pop %v1994
        %v2003 = vmul.f32 %v1956, %v1995
        %v2004 = vmul.f32 %v1958, %v1996
        %v2005 = vmul.f32 %v1960, %v1997
        %v2006 = vmul.f32 %v1962, %v1998
        %v2007 = vmul.f32 %v1964, %v1999
        %v2008 = vmul.f32 %v1966, %v2000
        %v2009 = vmul.f32 %v1968, %v2001
        %v2010 = vmul.f32 %v1970, %v2002
        %v2011 = vpack.c.bf16 %v2004, %v2003
        %v2012 = vpack.c.bf16 %v2006, %v2005
        %v2013 = vpack.c.bf16 %v2008, %v2007
        %v2014 = vpack.c.bf16 %v2010, %v2009
        %v2016 = vsel %vm1922, %v2011, 0
        %v2019 = vsel %vm1922, %v2012, 0
        %v2022 = vsel %vm1922, %v2013, 0
        %v2025 = vsel %vm1922, %v2014, 0
        %2027 = vmatprep.subr.bf16.mxu0 0
        %2028 = vmatpush1.bf16.msra.mxu0 0
        %2029 = vmatprep.subr.bf16.mxu0 0
        %2030 = vmatpush1.bf16.msra.mxu0 0
        %2031 = vmatprep.subr.bf16.mxu0 0
        %2032 = vmatpush1.bf16.msra.mxu0 0
        %2033 = vmatprep.subr.bf16.mxu0 0
        %2034 = vmatpush1.bf16.msra.mxu0 0
        %2035 = vmatprep.subr.bf16.mxu0 0
        %2036 = vmatpush1.bf16.msra.mxu0 %v1856
        %2037 = vmatprep.subr.bf16.mxu0 0
        %2038 = vmatpush1.bf16.msra.mxu0 %v1855
        %2039 = vmatprep.subr.bf16.mxu0 0
        %2040 = vmatpush1.bf16.msra.mxu0 %v1854
        %2041 = vmatprep.subr.bf16.mxu0 0
        %2042 = vmatpush1.bf16.msra.mxu0 %v1853
        %2043 = vmatprep.subr.bf16.mxu0 0
        %2044 = vmatpush2.bf16.msra.mxu0 0
        %2045 = vmatprep.subr.bf16.mxu0 0
        %2046 = vmatpush2.bf16.msra.mxu0 0
        %2047 = vmatprep.subr.bf16.mxu0 0
        %2048 = vmatpush2.bf16.msra.mxu0 0
        %2049 = vmatprep.subr.bf16.mxu0 0
        %2050 = vmatpush2.bf16.msra.mxu0 0
        %2051 = vmatprep.subr.bf16.mxu0 0
        %2052 = vmatpush2.bf16.msra.mxu0 0
        %2053 = vmatprep.subr.bf16.mxu0 0
        %2054 = vmatpush2.bf16.msra.mxu0 0
        %2055 = vmatprep.subr.bf16.mxu0 0
        %2056 = vmatpush2.bf16.msra.mxu0 0
        %2057 = vmatprep.subr.bf16.mxu0 0
        %2058 = vmatpush2.bf16.msra.mxu0 0
        %2059 = vmatprep.mubr.bf16.mxu0 0
        %2060 = vmatmul.mubr.bf16.gmra.mxu0 %v2016
        %v2061 = vpop.f32.mrf.mxu0
        %v2062 = vadd.f32 0.0, %v2061
        %v2063 = vpop.f32.mrf.mxu0
        %v2064 = vpop.f32.mrf.mxu0
        %v2065 = vadd.f32 0.0, %v2064
        %v2066 = vpop.f32.mrf.mxu0
        %2067 = vmatprep.mubr.bf16.mxu0 0
        %2068 = vmatmul.mubr.bf16.gmra.mxu0 %v2019
        %v2069 = vpop.f32.mrf.mxu0
        %v2070 = vadd.f32 0.0, %v2069
        %v2071 = vpop.f32.mrf.mxu0
        %v2072 = vpop.f32.mrf.mxu0
        %v2073 = vadd.f32 0.0, %v2072
        %v2074 = vpop.f32.mrf.mxu0
        %2075 = vmatprep.mubr.bf16.mxu0 0
        %2076 = vmatmul.mubr.bf16.gmra.mxu0 %v2022
        %v2077 = vpop.f32.mrf.mxu0
        %v2078 = vadd.f32 0.0, %v2077
        %v2079 = vpop.f32.mrf.mxu0
        %v2080 = vpop.f32.mrf.mxu0
        %v2081 = vadd.f32 0.0, %v2080
        %v2082 = vpop.f32.mrf.mxu0
        %2083 = vmatprep.mubr.bf16.mxu0 0
        %2084 = vmatmul.mubr.bf16.gmra.mxu0 %v2025
        %v2085 = vpop.f32.mrf.mxu0
        %v2086 = vadd.f32 0.0, %v2085
        %v2087 = vpop.f32.mrf.mxu0
        %v2088 = vpop.f32.mrf.mxu0
        %v2089 = vadd.f32 0.0, %v2088
        %v2090 = vpop.f32.mrf.mxu0
        %2091 = vdwg.mxu0
        %2092 = vst [vmem:[#allocation3] sm:$0xff] %v2062
        %2093 = vst [vmem:[#allocation3 + $0x10] sm:$0xff] %v2065
        %2094 = vst [vmem:[#allocation3 + $0x20] sm:$0xff] %v2070
        %2095 = vst [vmem:[#allocation3 + $0x30] sm:$0xff] %v2073
        %2096 = vst [vmem:[#allocation3 + $0x40] sm:$0xff] %v2078
        %2097 = vst [vmem:[#allocation3 + $0x50] sm:$0xff] %v2081
        %2098 = vst [vmem:[#allocation3 + $0x60] sm:$0xff] %v2086
        %2099 = vst [vmem:[#allocation3 + $0x70] sm:$0xff] %v2089
        %v2100 = vpack.c.bf16 %v1362, %v1361
        %v2101 = vpack.c.bf16 %v1364, %v1363
        %v2102 = vpack.c.bf16 %v1366, %v1365
        %v2103 = vpack.c.bf16 %v1368, %v1367
        %v2104 = vpack.c.bf16 %v1600, %v1599
        %v2105 = vpack.c.bf16 %v1602, %v1601
        %v2106 = vpack.c.bf16 %v1604, %v1603
        %v2107 = vpack.c.bf16 %v1606, %v1605
        %v2108 = vpack.c.bf16 %v1838, %v1837
        %v2109 = vpack.c.bf16 %v1840, %v1839
        %v2110 = vpack.c.bf16 %v1842, %v1841
        %v2111 = vpack.c.bf16 %v1844, %v1843
        %2112 = vmatprep.subr.bf16.mxu0 0
        %2113 = vmatpush1.bf16.xpose.msra.mxu0 0
        %2114 = vmatprep.subr.bf16.mxu0 0
        %2115 = vmatpush1.bf16.xpose.msra.mxu0 0
        %2116 = vmatprep.subr.bf16.mxu0 0
        %2117 = vmatpush1.bf16.xpose.msra.mxu0 0
        %2118 = vmatprep.subr.bf16.mxu0 0
        %2119 = vmatpush1.bf16.xpose.msra.mxu0 0
        %2120 = vmatprep.subr.bf16.mxu0 0
        %2121 = vmatpush1.bf16.xpose.msra.mxu0 %v2107
        %2122 = vmatprep.subr.bf16.mxu0 0
        %2123 = vmatpush1.bf16.xpose.msra.mxu0 %v2106
        %2124 = vmatprep.subr.bf16.mxu0 0
        %2125 = vmatpush1.bf16.xpose.msra.mxu0 %v2105
        %2126 = vmatprep.subr.bf16.mxu0 0
        %2127 = vmatpush1.bf16.xpose.msra.mxu0 %v2104
        %2128 = vmatprep.subr.bf16.mxu0 0
        %2129 = vmatpush2.bf16.xpose.msra.mxu0 0
        %2130 = vmatprep.subr.bf16.mxu0 0
        %2131 = vmatpush2.bf16.xpose.msra.mxu0 0
        %2132 = vmatprep.subr.bf16.mxu0 0
        %2133 = vmatpush2.bf16.xpose.msra.mxu0 0
        %2134 = vmatprep.subr.bf16.mxu0 0
        %2135 = vmatpush2.bf16.xpose.msra.mxu0 0
        %2136 = vmatprep.subr.bf16.mxu0 0
        %2137 = vmatpush2.bf16.xpose.msra.mxu0 0
        %2138 = vmatprep.subr.bf16.mxu0 0
        %2139 = vmatpush2.bf16.xpose.msra.mxu0 0
        %2140 = vmatprep.subr.bf16.mxu0 0
        %2141 = vmatpush2.bf16.xpose.msra.mxu0 0
        %2142 = vmatprep.subr.bf16.mxu0 0
        %2143 = vmatpush2.bf16.xpose.msra.mxu0 0
        %2144 = vmatprep.mubr.bf16.mxu0 0
        %2145 = vmatmul.mubr.bf16.gmra.mxu0 %v2100
        %v2146 = vpop.f32.mrf.mxu0
        %v2147 = vadd.f32 0.0, %v2146
        %v2148 = vpop.f32.mrf.mxu0
        %v2149 = vpop.f32.mrf.mxu0
        %v2150 = vadd.f32 0.0, %v2149
        %v2151 = vpop.f32.mrf.mxu0
        %2152 = vmatprep.mubr.bf16.mxu0 0
        %2153 = vmatmul.mubr.bf16.gmra.mxu0 %v2101
        %v2154 = vpop.f32.mrf.mxu0
        %v2155 = vadd.f32 0.0, %v2154
        %v2156 = vpop.f32.mrf.mxu0
        %v2157 = vpop.f32.mrf.mxu0
        %v2158 = vadd.f32 0.0, %v2157
        %v2159 = vpop.f32.mrf.mxu0
        %2160 = vmatprep.mubr.bf16.mxu0 0
        %2161 = vmatmul.mubr.bf16.gmra.mxu0 %v2102
        %v2162 = vpop.f32.mrf.mxu0
        %v2163 = vadd.f32 0.0, %v2162
        %v2164 = vpop.f32.mrf.mxu0
        %v2165 = vpop.f32.mrf.mxu0
        %v2166 = vadd.f32 0.0, %v2165
        %v2167 = vpop.f32.mrf.mxu0
        %2168 = vmatprep.mubr.bf16.mxu0 0
        %2169 = vmatmul.mubr.bf16.gmra.mxu0 %v2103
        %v2170 = vpop.f32.mrf.mxu0
        %v2171 = vadd.f32 0.0, %v2170
        %v2172 = vpop.f32.mrf.mxu0
        %v2173 = vpop.f32.mrf.mxu0
        %v2174 = vadd.f32 0.0, %v2173
        %v2175 = vpop.f32.mrf.mxu0
        %2176 = vdwg.mxu0
        %v2177 = vsel %vm1922, %v2147, -inf
        %2178 = vmax.xlane.f32.xlu0 %v2177
        %v2179 = vpop.xlane.xlu0 %2178
        %v2180 = vsel %vm1922, %v2150, -inf
        %2181 = vmax.xlane.f32.xlu0 %v2180
        %v2182 = vpop.xlane.xlu0 %2181
        %v2183 = vsel %vm1922, %v2155, -inf
        %2184 = vmax.xlane.f32.xlu0 %v2183
        %v2185 = vpop.xlane.xlu0 %2184
        %v2186 = vsel %vm1922, %v2158, -inf
        %2187 = vmax.xlane.f32.xlu0 %v2186
        %v2188 = vpop.xlane.xlu0 %2187
        %v2189 = vsel %vm1922, %v2163, -inf
        %2190 = vmax.xlane.f32.xlu0 %v2189
        %v2191 = vpop.xlane.xlu0 %2190
        %v2192 = vsel %vm1922, %v2166, -inf
        %2193 = vmax.xlane.f32.xlu0 %v2192
        %v2194 = vpop.xlane.xlu0 %2193
        %v2195 = vsel %vm1922, %v2171, -inf
        %2196 = vmax.xlane.f32.xlu0 %v2195
        %v2197 = vpop.xlane.xlu0 %2196
        %v2198 = vsel %vm1922, %v2174, -inf
        %2199 = vmax.xlane.f32.xlu0 %v2198
        %v2200 = vpop.xlane.xlu0 %2199
        %v2201 = vsub.f32 %v2147, %v2179
        %v2202 = vsub.f32 %v2150, %v2182
        %v2203 = vsub.f32 %v2155, %v2185
        %v2204 = vsub.f32 %v2158, %v2188
        %v2205 = vsub.f32 %v2163, %v2191
        %v2206 = vsub.f32 %v2166, %v2194
        %v2207 = vsub.f32 %v2171, %v2197
        %v2208 = vsub.f32 %v2174, %v2200
        %v2209 = vmul.f32 %v2201, 1.442695
        %v2210 = vpow.pop %v2209
        %v2211 = vmul.f32 %v2202, 1.442695
        %v2212 = vpow.pop %v2211
        %v2213 = vmul.f32 %v2203, 1.442695
        %v2214 = vpow.pop %v2213
        %v2215 = vmul.f32 %v2204, 1.442695
        %v2216 = vpow.pop %v2215
        %v2217 = vmul.f32 %v2205, 1.442695
        %v2218 = vpow.pop %v2217
        %v2219 = vmul.f32 %v2206, 1.442695
        %v2220 = vpow.pop %v2219
        %v2221 = vmul.f32 %v2207, 1.442695
        %v2222 = vpow.pop %v2221
        %v2223 = vmul.f32 %v2208, 1.442695
        %v2224 = vpow.pop %v2223
        %v2225 = vsel %vm1922, %v2210, 0.0
        %2226 = vadd.xlane.f32.xlu0 %v2225
        %v2227 = vpop.xlane.xlu0 %2226
        %v2228 = vsel %vm1922, %v2212, 0.0
        %2229 = vadd.xlane.f32.xlu0 %v2228
        %v2230 = vpop.xlane.xlu0 %2229
        %v2231 = vsel %vm1922, %v2214, 0.0
        %2232 = vadd.xlane.f32.xlu0 %v2231
        %v2233 = vpop.xlane.xlu0 %2232
        %v2234 = vsel %vm1922, %v2216, 0.0
        %2235 = vadd.xlane.f32.xlu0 %v2234
        %v2236 = vpop.xlane.xlu0 %2235
        %v2237 = vsel %vm1922, %v2218, 0.0
        %2238 = vadd.xlane.f32.xlu0 %v2237
        %v2239 = vpop.xlane.xlu0 %2238
        %v2240 = vsel %vm1922, %v2220, 0.0
        %2241 = vadd.xlane.f32.xlu0 %v2240
        %v2242 = vpop.xlane.xlu0 %2241
        %v2243 = vsel %vm1922, %v2222, 0.0
        %2244 = vadd.xlane.f32.xlu0 %v2243
        %v2245 = vpop.xlane.xlu0 %2244
        %v2246 = vsel %vm1922, %v2224, 0.0
        %2247 = vadd.xlane.f32.xlu0 %v2246
        %v2248 = vpop.xlane.xlu0 %2247
        %v2249 = vrcp.pop %v2227
        %v2250 = vrcp.pop %v2230
        %v2251 = vrcp.pop %v2233
        %v2252 = vrcp.pop %v2236
        %v2253 = vrcp.pop %v2239
        %v2254 = vrcp.pop %v2242
        %v2255 = vrcp.pop %v2245
        %v2256 = vrcp.pop %v2248
        %v2257 = vmul.f32 %v2210, %v2249
        %v2258 = vmul.f32 %v2212, %v2250
        %v2259 = vmul.f32 %v2214, %v2251
        %v2260 = vmul.f32 %v2216, %v2252
        %v2261 = vmul.f32 %v2218, %v2253
        %v2262 = vmul.f32 %v2220, %v2254
        %v2263 = vmul.f32 %v2222, %v2255
        %v2264 = vmul.f32 %v2224, %v2256
        %v2265 = vpack.c.bf16 %v2258, %v2257
        %v2266 = vpack.c.bf16 %v2260, %v2259
        %v2267 = vpack.c.bf16 %v2262, %v2261
        %v2268 = vpack.c.bf16 %v2264, %v2263
        %v2270 = vsel %vm1922, %v2265, 0
        %v2273 = vsel %vm1922, %v2266, 0
        %v2276 = vsel %vm1922, %v2267, 0
        %v2279 = vsel %vm1922, %v2268, 0
        %2281 = vmatprep.subr.bf16.mxu0 0
        %2282 = vmatpush1.bf16.msra.mxu0 0
        %2283 = vmatprep.subr.bf16.mxu0 0
        %2284 = vmatpush1.bf16.msra.mxu0 0
        %2285 = vmatprep.subr.bf16.mxu0 0
        %2286 = vmatpush1.bf16.msra.mxu0 0
        %2287 = vmatprep.subr.bf16.mxu0 0
        %2288 = vmatpush1.bf16.msra.mxu0 0
        %2289 = vmatprep.subr.bf16.mxu0 0
        %2290 = vmatpush1.bf16.msra.mxu0 %v2111
        %2291 = vmatprep.subr.bf16.mxu0 0
        %2292 = vmatpush1.bf16.msra.mxu0 %v2110
        %2293 = vmatprep.subr.bf16.mxu0 0
        %2294 = vmatpush1.bf16.msra.mxu0 %v2109
        %2295 = vmatprep.subr.bf16.mxu0 0
        %2296 = vmatpush1.bf16.msra.mxu0 %v2108
        %2297 = vmatprep.subr.bf16.mxu0 0
        %2298 = vmatpush2.bf16.msra.mxu0 0
        %2299 = vmatprep.subr.bf16.mxu0 0
        %2300 = vmatpush2.bf16.msra.mxu0 0
        %2301 = vmatprep.subr.bf16.mxu0 0
        %2302 = vmatpush2.bf16.msra.mxu0 0
        %2303 = vmatprep.subr.bf16.mxu0 0
        %2304 = vmatpush2.bf16.msra.mxu0 0
        %2305 = vmatprep.subr.bf16.mxu0 0
        %2306 = vmatpush2.bf16.msra.mxu0 0
        %2307 = vmatprep.subr.bf16.mxu0 0
        %2308 = vmatpush2.bf16.msra.mxu0 0
        %2309 = vmatprep.subr.bf16.mxu0 0
        %2310 = vmatpush2.bf16.msra.mxu0 0
        %2311 = vmatprep.subr.bf16.mxu0 0
        %2312 = vmatpush2.bf16.msra.mxu0 0
        %2313 = vmatprep.mubr.bf16.mxu0 0
        %2314 = vmatmul.mubr.bf16.gmra.mxu0 %v2270
        %v2315 = vpop.f32.mrf.mxu0
        %v2316 = vadd.f32 0.0, %v2315
        %v2317 = vpop.f32.mrf.mxu0
        %v2318 = vpop.f32.mrf.mxu0
        %v2319 = vadd.f32 0.0, %v2318
        %v2320 = vpop.f32.mrf.mxu0
        %2321 = vmatprep.mubr.bf16.mxu0 0
        %2322 = vmatmul.mubr.bf16.gmra.mxu0 %v2273
        %v2323 = vpop.f32.mrf.mxu0
        %v2324 = vadd.f32 0.0, %v2323
        %v2325 = vpop.f32.mrf.mxu0
        %v2326 = vpop.f32.mrf.mxu0
        %v2327 = vadd.f32 0.0, %v2326
        %v2328 = vpop.f32.mrf.mxu0
        %2329 = vmatprep.mubr.bf16.mxu0 0
        %2330 = vmatmul.mubr.bf16.gmra.mxu0 %v2276
        %v2331 = vpop.f32.mrf.mxu0
        %v2332 = vadd.f32 0.0, %v2331
        %v2333 = vpop.f32.mrf.mxu0
        %v2334 = vpop.f32.mrf.mxu0
        %v2335 = vadd.f32 0.0, %v2334
        %v2336 = vpop.f32.mrf.mxu0
        %2337 = vmatprep.mubr.bf16.mxu0 0
        %2338 = vmatmul.mubr.bf16.gmra.mxu0 %v2279
        %v2339 = vpop.f32.mrf.mxu0
        %v2340 = vadd.f32 0.0, %v2339
        %v2341 = vpop.f32.mrf.mxu0
        %v2342 = vpop.f32.mrf.mxu0
        %v2343 = vadd.f32 0.0, %v2342
        %v2344 = vpop.f32.mrf.mxu0
        %2345 = vdwg.mxu0
        %2346 = vst [vmem:[#allocation3 + $0x80] sm:$0xff] %v2316
        %2347 = vst [vmem:[#allocation3 + $0x90] sm:$0xff] %v2319
        %2348 = vst [vmem:[#allocation3 + $0xa0] sm:$0xff] %v2324
        %2349 = vst [vmem:[#allocation3 + $0xb0] sm:$0xff] %v2327
        %2350 = vst [vmem:[#allocation3 + $0xc0] sm:$0xff] %v2332
        %2351 = vst [vmem:[#allocation3 + $0xd0] sm:$0xff] %v2335
        %2352 = vst [vmem:[#allocation3 + $0xe0] sm:$0xff] %v2340
        %2353 = vst [vmem:[#allocation3 + $0xf0] sm:$0xff] %v2343
        %s2354 = scalar_lea.vmem %s3, 1
        %v2355 = vld [vmem:[%s2354] sm:$0x1]
        %s2356 = scalar_lea.vmem %s4, 1
        %v2357 = vld [vmem:[%s2356] sm:$0x1]
        %2358 = vadd.xlane.f32.xlu0 %v829
        %v2359 = vpop.xlane.xlu0 %2358
        %2360 = vadd.xlane.f32.xlu0 %v833
        %v2361 = vpop.xlane.xlu0 %2360
        %2362 = vadd.xlane.f32.xlu0 %v839
        %v2363 = vpop.xlane.xlu0 %2362
        %2364 = vadd.xlane.f32.xlu0 %v843
        %v2365 = vpop.xlane.xlu0 %2364
        %2366 = vadd.xlane.f32.xlu0 %v849
        %v2367 = vpop.xlane.xlu0 %2366
        %2368 = vadd.xlane.f32.xlu0 %v853
        %v2369 = vpop.xlane.xlu0 %2368
        %2370 = vadd.xlane.f32.xlu0 %v859
        %v2371 = vpop.xlane.xlu0 %2370
        %2372 = vadd.xlane.f32.xlu0 %v863
        %v2373 = vpop.xlane.xlu0 %2372
        %2374 = vadd.xlane.f32.xlu0 %v869
        %v2375 = vpop.xlane.xlu0 %2374
        %2376 = vadd.xlane.f32.xlu0 %v873
        %v2377 = vpop.xlane.xlu0 %2376
        %2378 = vadd.xlane.f32.xlu0 %v879
        %v2379 = vpop.xlane.xlu0 %2378
        %2380 = vadd.xlane.f32.xlu0 %v883
        %v2381 = vpop.xlane.xlu0 %2380
        %2382 = vadd.xlane.f32.xlu0 %v889
        %v2383 = vpop.xlane.xlu0 %2382
        %2384 = vadd.xlane.f32.xlu0 %v893
        %v2385 = vpop.xlane.xlu0 %2384
        %2386 = vadd.xlane.f32.xlu0 %v899
        %v2387 = vpop.xlane.xlu0 %2386
        %2388 = vadd.xlane.f32.xlu0 %v903
        %v2389 = vpop.xlane.xlu0 %2388
        %v2390 = vmul.f32 %v2359, 0.015625
        %v2391 = vmul.f32 %v2361, 0.015625
        %v2392 = vmul.f32 %v2363, 0.015625
        %v2393 = vmul.f32 %v2365, 0.015625
        %v2394 = vmul.f32 %v2367, 0.015625
        %v2395 = vmul.f32 %v2369, 0.015625
        %v2396 = vmul.f32 %v2371, 0.015625
        %v2397 = vmul.f32 %v2373, 0.015625
        %v2398 = vmul.f32 %v2375, 0.015625
        %v2399 = vmul.f32 %v2377, 0.015625
        %v2400 = vmul.f32 %v2379, 0.015625
        %v2401 = vmul.f32 %v2381, 0.015625
        %v2402 = vmul.f32 %v2383, 0.015625
        %v2403 = vmul.f32 %v2385, 0.015625
        %v2404 = vmul.f32 %v2387, 0.015625
        %v2405 = vmul.f32 %v2389, 0.015625
        %v2406 = vsub.f32 %v829, %v2390
        %v2407 = vsub.f32 %v833, %v2391
        %v2408 = vsub.f32 %v839, %v2392
        %v2409 = vsub.f32 %v843, %v2393
        %v2410 = vsub.f32 %v849, %v2394
        %v2411 = vsub.f32 %v853, %v2395
        %v2412 = vsub.f32 %v859, %v2396
        %v2413 = vsub.f32 %v863, %v2397
        %v2414 = vsub.f32 %v869, %v2398
        %v2415 = vsub.f32 %v873, %v2399
        %v2416 = vsub.f32 %v879, %v2400
        %v2417 = vsub.f32 %v883, %v2401
        %v2418 = vsub.f32 %v889, %v2402
        %v2419 = vsub.f32 %v893, %v2403
        %v2420 = vsub.f32 %v899, %v2404
        %v2421 = vsub.f32 %v903, %v2405
        %v2422 = vmul.f32 %v2406, %v604
        %v2423 = vmul.f32 %v2407, %v604
        %v2424 = vmul.f32 %v2408, %v604
        %v2425 = vmul.f32 %v2409, %v604
        %v2426 = vmul.f32 %v2410, %v604
        %v2427 = vmul.f32 %v2411, %v604
        %v2428 = vmul.f32 %v2412, %v604
        %v2429 = vmul.f32 %v2413, %v604
        %v2430 = vmul.f32 %v2414, %v604
        %v2431 = vmul.f32 %v2415, %v604
        %v2432 = vmul.f32 %v2416, %v604
        %v2433 = vmul.f32 %v2417, %v604
        %v2434 = vmul.f32 %v2418, %v604
        %v2435 = vmul.f32 %v2419, %v604
        %v2436 = vmul.f32 %v2420, %v604
        %v2437 = vmul.f32 %v2421, %v604
        %v2438 = vmul.f32 %v2422, %v2422
        %v2439 = vmul.f32 %v2423, %v2423
        %v2440 = vmul.f32 %v2424, %v2424
        %v2441 = vmul.f32 %v2425, %v2425
        %v2442 = vmul.f32 %v2426, %v2426
        %v2443 = vmul.f32 %v2427, %v2427
        %v2444 = vmul.f32 %v2428, %v2428
        %v2445 = vmul.f32 %v2429, %v2429
        %v2446 = vmul.f32 %v2430, %v2430
        %v2447 = vmul.f32 %v2431, %v2431
        %v2448 = vmul.f32 %v2432, %v2432
        %v2449 = vmul.f32 %v2433, %v2433
        %v2450 = vmul.f32 %v2434, %v2434
        %v2451 = vmul.f32 %v2435, %v2435
        %v2452 = vmul.f32 %v2436, %v2436
        %v2453 = vmul.f32 %v2437, %v2437
        %2454 = vadd.xlane.f32.xlu0 %v2438
        %v2455 = vpop.xlane.xlu0 %2454
        %2456 = vadd.xlane.f32.xlu0 %v2439
        %v2457 = vpop.xlane.xlu0 %2456
        %2458 = vadd.xlane.f32.xlu0 %v2440
        %v2459 = vpop.xlane.xlu0 %2458
        %2460 = vadd.xlane.f32.xlu0 %v2441
        %v2461 = vpop.xlane.xlu0 %2460
        %2462 = vadd.xlane.f32.xlu0 %v2442
        %v2463 = vpop.xlane.xlu0 %2462
        %2464 = vadd.xlane.f32.xlu0 %v2443
        %v2465 = vpop.xlane.xlu0 %2464
        %2466 = vadd.xlane.f32.xlu0 %v2444
        %v2467 = vpop.xlane.xlu0 %2466
        %2468 = vadd.xlane.f32.xlu0 %v2445
        %v2469 = vpop.xlane.xlu0 %2468
        %2470 = vadd.xlane.f32.xlu0 %v2446
        %v2471 = vpop.xlane.xlu0 %2470
        %2472 = vadd.xlane.f32.xlu0 %v2447
        %v2473 = vpop.xlane.xlu0 %2472
        %2474 = vadd.xlane.f32.xlu0 %v2448
        %v2475 = vpop.xlane.xlu0 %2474
        %2476 = vadd.xlane.f32.xlu0 %v2449
        %v2477 = vpop.xlane.xlu0 %2476
        %2478 = vadd.xlane.f32.xlu0 %v2450
        %v2479 = vpop.xlane.xlu0 %2478
        %2480 = vadd.xlane.f32.xlu0 %v2451
        %v2481 = vpop.xlane.xlu0 %2480
        %2482 = vadd.xlane.f32.xlu0 %v2452
        %v2483 = vpop.xlane.xlu0 %2482
        %2484 = vadd.xlane.f32.xlu0 %v2453
        %v2485 = vpop.xlane.xlu0 %2484
        %v2486 = vmul.f32 %v2455, 0.015625
        %v2487 = vmul.f32 %v2457, 0.015625
        %v2488 = vmul.f32 %v2459, 0.015625
        %v2489 = vmul.f32 %v2461, 0.015625
        %v2490 = vmul.f32 %v2463, 0.015625
        %v2491 = vmul.f32 %v2465, 0.015625
        %v2492 = vmul.f32 %v2467, 0.015625
        %v2493 = vmul.f32 %v2469, 0.015625
        %v2494 = vmul.f32 %v2471, 0.015625
        %v2495 = vmul.f32 %v2473, 0.015625
        %v2496 = vmul.f32 %v2475, 0.015625
        %v2497 = vmul.f32 %v2477, 0.015625
        %v2498 = vmul.f32 %v2479, 0.015625
        %v2499 = vmul.f32 %v2481, 0.015625
        %v2500 = vmul.f32 %v2483, 0.015625
        %v2501 = vmul.f32 %v2485, 0.015625
        %v2502 = vadd.f32 %v2486, 1e-05
        %v2503 = vadd.f32 %v2487, 1e-05
        %v2504 = vadd.f32 %v2488, 1e-05
        %v2505 = vadd.f32 %v2489, 1e-05
        %v2506 = vadd.f32 %v2490, 1e-05
        %v2507 = vadd.f32 %v2491, 1e-05
        %v2508 = vadd.f32 %v2492, 1e-05
        %v2509 = vadd.f32 %v2493, 1e-05
        %v2510 = vadd.f32 %v2494, 1e-05
        %v2511 = vadd.f32 %v2495, 1e-05
        %v2512 = vadd.f32 %v2496, 1e-05
        %v2513 = vadd.f32 %v2497, 1e-05
        %v2514 = vadd.f32 %v2498, 1e-05
        %v2515 = vadd.f32 %v2499, 1e-05
        %v2516 = vadd.f32 %v2500, 1e-05
        %v2517 = vadd.f32 %v2501, 1e-05
        %v2518 = vrsqrt.pop %v2502
        %v2519 = vrsqrt.pop %v2503
        %v2520 = vrsqrt.pop %v2504
        %v2521 = vrsqrt.pop %v2505
        %v2522 = vrsqrt.pop %v2506
        %v2523 = vrsqrt.pop %v2507
        %v2524 = vrsqrt.pop %v2508
        %v2525 = vrsqrt.pop %v2509
        %v2526 = vrsqrt.pop %v2510
        %v2527 = vrsqrt.pop %v2511
        %v2528 = vrsqrt.pop %v2512
        %v2529 = vrsqrt.pop %v2513
        %v2530 = vrsqrt.pop %v2514
        %v2531 = vrsqrt.pop %v2515
        %v2532 = vrsqrt.pop %v2516
        %v2533 = vrsqrt.pop %v2517
        %v2534 = vmul.f32 %v2422, %v2518
        %v2535 = vmul.f32 %v2423, %v2519
        %v2536 = vmul.f32 %v2424, %v2520
        %v2537 = vmul.f32 %v2425, %v2521
        %v2538 = vmul.f32 %v2426, %v2522
        %v2539 = vmul.f32 %v2427, %v2523
        %v2540 = vmul.f32 %v2428, %v2524
        %v2541 = vmul.f32 %v2429, %v2525
        %v2542 = vmul.f32 %v2430, %v2526
        %v2543 = vmul.f32 %v2431, %v2527
        %v2544 = vmul.f32 %v2432, %v2528
        %v2545 = vmul.f32 %v2433, %v2529
        %v2546 = vmul.f32 %v2434, %v2530
        %v2547 = vmul.f32 %v2435, %v2531
        %v2548 = vmul.f32 %v2436, %v2532
        %v2549 = vmul.f32 %v2437, %v2533
        %v2551 = vlaneseq
        %v2552 = vshrl.u32 %v2551, 7
        %v2553 = vsub.s32 0, %v2552
        %v2554 = vrot.slane %v2355, %v2553
        %v2556 = vmul.f32 %v2534, %v2554
        %v2557 = vmul.f32 %v2535, %v2554
        %v2558 = vmul.f32 %v2536, %v2554
        %v2559 = vmul.f32 %v2537, %v2554
        %v2560 = vmul.f32 %v2538, %v2554
        %v2561 = vmul.f32 %v2539, %v2554
        %v2562 = vmul.f32 %v2540, %v2554
        %v2563 = vmul.f32 %v2541, %v2554
        %v2564 = vmul.f32 %v2542, %v2554
        %v2565 = vmul.f32 %v2543, %v2554
        %v2566 = vmul.f32 %v2544, %v2554
        %v2567 = vmul.f32 %v2545, %v2554
        %v2568 = vmul.f32 %v2546, %v2554
        %v2569 = vmul.f32 %v2547, %v2554
        %v2570 = vmul.f32 %v2548, %v2554
        %v2571 = vmul.f32 %v2549, %v2554
        %v2573 = vlaneseq
        %v2574 = vshrl.u32 %v2573, 7
        %v2575 = vsub.s32 0, %v2574
        %v2576 = vrot.slane %v2357, %v2575
        %v2578 = vadd.f32 %v2556, %v2576
        %v2579 = vadd.f32 %v2557, %v2576
        %v2580 = vadd.f32 %v2558, %v2576
        %v2581 = vadd.f32 %v2559, %v2576
        %v2582 = vadd.f32 %v2560, %v2576
        %v2583 = vadd.f32 %v2561, %v2576
        %v2584 = vadd.f32 %v2562, %v2576
        %v2585 = vadd.f32 %v2563, %v2576
        %v2586 = vadd.f32 %v2564, %v2576
        %v2587 = vadd.f32 %v2565, %v2576
        %v2588 = vadd.f32 %v2566, %v2576
        %v2589 = vadd.f32 %v2567, %v2576
        %v2590 = vadd.f32 %v2568, %v2576
        %v2591 = vadd.f32 %v2569, %v2576
        %v2592 = vadd.f32 %v2570, %v2576
        %v2593 = vadd.f32 %v2571, %v2576
        %s2594 = scalar_lea.vmem %s5, 1
        %v2595 = vld [vmem:[%s2594] sm:$0x1]
        %s2596 = scalar_lea.vmem %s6, 1
        %v2597 = vld [vmem:[%s2596] sm:$0x1]
        %2598 = vadd.xlane.f32.xlu0 %v942
        %v2599 = vpop.xlane.xlu0 %2598
        %2600 = vadd.xlane.f32.xlu0 %v946
        %v2601 = vpop.xlane.xlu0 %2600
        %2602 = vadd.xlane.f32.xlu0 %v952
        %v2603 = vpop.xlane.xlu0 %2602
        %2604 = vadd.xlane.f32.xlu0 %v956
        %v2605 = vpop.xlane.xlu0 %2604
        %2606 = vadd.xlane.f32.xlu0 %v962
        %v2607 = vpop.xlane.xlu0 %2606
        %2608 = vadd.xlane.f32.xlu0 %v966
        %v2609 = vpop.xlane.xlu0 %2608
        %2610 = vadd.xlane.f32.xlu0 %v972
        %v2611 = vpop.xlane.xlu0 %2610
        %2612 = vadd.xlane.f32.xlu0 %v976
        %v2613 = vpop.xlane.xlu0 %2612
        %2614 = vadd.xlane.f32.xlu0 %v982
        %v2615 = vpop.xlane.xlu0 %2614
        %2616 = vadd.xlane.f32.xlu0 %v986
        %v2617 = vpop.xlane.xlu0 %2616
        %2618 = vadd.xlane.f32.xlu0 %v992
        %v2619 = vpop.xlane.xlu0 %2618
        %2620 = vadd.xlane.f32.xlu0 %v996
        %v2621 = vpop.xlane.xlu0 %2620
        %2622 = vadd.xlane.f32.xlu0 %v1002
        %v2623 = vpop.xlane.xlu0 %2622
        %2624 = vadd.xlane.f32.xlu0 %v1006
        %v2625 = vpop.xlane.xlu0 %2624
        %2626 = vadd.xlane.f32.xlu0 %v1012
        %v2627 = vpop.xlane.xlu0 %2626
        %2628 = vadd.xlane.f32.xlu0 %v1016
        %v2629 = vpop.xlane.xlu0 %2628
        %v2630 = vmul.f32 %v2599, 0.015625
        %v2631 = vmul.f32 %v2601, 0.015625
        %v2632 = vmul.f32 %v2603, 0.015625
        %v2633 = vmul.f32 %v2605, 0.015625
        %v2634 = vmul.f32 %v2607, 0.015625
        %v2635 = vmul.f32 %v2609, 0.015625
        %v2636 = vmul.f32 %v2611, 0.015625
        %v2637 = vmul.f32 %v2613, 0.015625
        %v2638 = vmul.f32 %v2615, 0.015625
        %v2639 = vmul.f32 %v2617, 0.015625
        %v2640 = vmul.f32 %v2619, 0.015625
        %v2641 = vmul.f32 %v2621, 0.015625
        %v2642 = vmul.f32 %v2623, 0.015625
        %v2643 = vmul.f32 %v2625, 0.015625
        %v2644 = vmul.f32 %v2627, 0.015625
        %v2645 = vmul.f32 %v2629, 0.015625
        %v2646 = vsub.f32 %v942, %v2630
        %v2647 = vsub.f32 %v946, %v2631
        %v2648 = vsub.f32 %v952, %v2632
        %v2649 = vsub.f32 %v956, %v2633
        %v2650 = vsub.f32 %v962, %v2634
        %v2651 = vsub.f32 %v966, %v2635
        %v2652 = vsub.f32 %v972, %v2636
        %v2653 = vsub.f32 %v976, %v2637
        %v2654 = vsub.f32 %v982, %v2638
        %v2655 = vsub.f32 %v986, %v2639
        %v2656 = vsub.f32 %v992, %v2640
        %v2657 = vsub.f32 %v996, %v2641
        %v2658 = vsub.f32 %v1002, %v2642
        %v2659 = vsub.f32 %v1006, %v2643
        %v2660 = vsub.f32 %v1012, %v2644
        %v2661 = vsub.f32 %v1016, %v2645
        %v2662 = vmul.f32 %v2646, %v604
        %v2663 = vmul.f32 %v2647, %v604
        %v2664 = vmul.f32 %v2648, %v604
        %v2665 = vmul.f32 %v2649, %v604
        %v2666 = vmul.f32 %v2650, %v604
        %v2667 = vmul.f32 %v2651, %v604
        %v2668 = vmul.f32 %v2652, %v604
        %v2669 = vmul.f32 %v2653, %v604
        %v2670 = vmul.f32 %v2654, %v604
        %v2671 = vmul.f32 %v2655, %v604
        %v2672 = vmul.f32 %v2656, %v604
        %v2673 = vmul.f32 %v2657, %v604
        %v2674 = vmul.f32 %v2658, %v604
        %v2675 = vmul.f32 %v2659, %v604
        %v2676 = vmul.f32 %v2660, %v604
        %v2677 = vmul.f32 %v2661, %v604
        %v2678 = vmul.f32 %v2662, %v2662
        %v2679 = vmul.f32 %v2663, %v2663
        %v2680 = vmul.f32 %v2664, %v2664
        %v2681 = vmul.f32 %v2665, %v2665
        %v2682 = vmul.f32 %v2666, %v2666
        %v2683 = vmul.f32 %v2667, %v2667
        %v2684 = vmul.f32 %v2668, %v2668
        %v2685 = vmul.f32 %v2669, %v2669
        %v2686 = vmul.f32 %v2670, %v2670
        %v2687 = vmul.f32 %v2671, %v2671
        %v2688 = vmul.f32 %v2672, %v2672
        %v2689 = vmul.f32 %v2673, %v2673
        %v2690 = vmul.f32 %v2674, %v2674
        %v2691 = vmul.f32 %v2675, %v2675
        %v2692 = vmul.f32 %v2676, %v2676
        %v2693 = vmul.f32 %v2677, %v2677
        %2694 = vadd.xlane.f32.xlu0 %v2678
        %v2695 = vpop.xlane.xlu0 %2694
        %2696 = vadd.xlane.f32.xlu0 %v2679
        %v2697 = vpop.xlane.xlu0 %2696
        %2698 = vadd.xlane.f32.xlu0 %v2680
        %v2699 = vpop.xlane.xlu0 %2698
        %2700 = vadd.xlane.f32.xlu0 %v2681
        %v2701 = vpop.xlane.xlu0 %2700
        %2702 = vadd.xlane.f32.xlu0 %v2682
        %v2703 = vpop.xlane.xlu0 %2702
        %2704 = vadd.xlane.f32.xlu0 %v2683
        %v2705 = vpop.xlane.xlu0 %2704
        %2706 = vadd.xlane.f32.xlu0 %v2684
        %v2707 = vpop.xlane.xlu0 %2706
        %2708 = vadd.xlane.f32.xlu0 %v2685
        %v2709 = vpop.xlane.xlu0 %2708
        %2710 = vadd.xlane.f32.xlu0 %v2686
        %v2711 = vpop.xlane.xlu0 %2710
        %2712 = vadd.xlane.f32.xlu0 %v2687
        %v2713 = vpop.xlane.xlu0 %2712
        %2714 = vadd.xlane.f32.xlu0 %v2688
        %v2715 = vpop.xlane.xlu0 %2714
        %2716 = vadd.xlane.f32.xlu0 %v2689
        %v2717 = vpop.xlane.xlu0 %2716
        %2718 = vadd.xlane.f32.xlu0 %v2690
        %v2719 = vpop.xlane.xlu0 %2718
        %2720 = vadd.xlane.f32.xlu0 %v2691
        %v2721 = vpop.xlane.xlu0 %2720
        %2722 = vadd.xlane.f32.xlu0 %v2692
        %v2723 = vpop.xlane.xlu0 %2722
        %2724 = vadd.xlane.f32.xlu0 %v2693
        %v2725 = vpop.xlane.xlu0 %2724
        %v2726 = vmul.f32 %v2695, 0.015625
        %v2727 = vmul.f32 %v2697, 0.015625
        %v2728 = vmul.f32 %v2699, 0.015625
        %v2729 = vmul.f32 %v2701, 0.015625
        %v2730 = vmul.f32 %v2703, 0.015625
        %v2731 = vmul.f32 %v2705, 0.015625
        %v2732 = vmul.f32 %v2707, 0.015625
        %v2733 = vmul.f32 %v2709, 0.015625
        %v2734 = vmul.f32 %v2711, 0.015625
        %v2735 = vmul.f32 %v2713, 0.015625
        %v2736 = vmul.f32 %v2715, 0.015625
        %v2737 = vmul.f32 %v2717, 0.015625
        %v2738 = vmul.f32 %v2719, 0.015625
        %v2739 = vmul.f32 %v2721, 0.015625
        %v2740 = vmul.f32 %v2723, 0.015625
        %v2741 = vmul.f32 %v2725, 0.015625
        %v2742 = vadd.f32 %v2726, 1e-05
        %v2743 = vadd.f32 %v2727, 1e-05
        %v2744 = vadd.f32 %v2728, 1e-05
        %v2745 = vadd.f32 %v2729, 1e-05
        %v2746 = vadd.f32 %v2730, 1e-05
        %v2747 = vadd.f32 %v2731, 1e-05
        %v2748 = vadd.f32 %v2732, 1e-05
        %v2749 = vadd.f32 %v2733, 1e-05
        %v2750 = vadd.f32 %v2734, 1e-05
        %v2751 = vadd.f32 %v2735, 1e-05
        %v2752 = vadd.f32 %v2736, 1e-05
        %v2753 = vadd.f32 %v2737, 1e-05
        %v2754 = vadd.f32 %v2738, 1e-05
        %v2755 = vadd.f32 %v2739, 1e-05
        %v2756 = vadd.f32 %v2740, 1e-05
        %v2757 = vadd.f32 %v2741, 1e-05
        %v2758 = vrsqrt.pop %v2742
        %v2759 = vrsqrt.pop %v2743
        %v2760 = vrsqrt.pop %v2744
        %v2761 = vrsqrt.pop %v2745
        %v2762 = vrsqrt.pop %v2746
        %v2763 = vrsqrt.pop %v2747
        %v2764 = vrsqrt.pop %v2748
        %v2765 = vrsqrt.pop %v2749
        %v2766 = vrsqrt.pop %v2750
        %v2767 = vrsqrt.pop %v2751
        %v2768 = vrsqrt.pop %v2752
        %v2769 = vrsqrt.pop %v2753
        %v2770 = vrsqrt.pop %v2754
        %v2771 = vrsqrt.pop %v2755
        %v2772 = vrsqrt.pop %v2756
        %v2773 = vrsqrt.pop %v2757
        %v2774 = vmul.f32 %v2662, %v2758
        %v2775 = vmul.f32 %v2663, %v2759
        %v2776 = vmul.f32 %v2664, %v2760
        %v2777 = vmul.f32 %v2665, %v2761
        %v2778 = vmul.f32 %v2666, %v2762
        %v2779 = vmul.f32 %v2667, %v2763
        %v2780 = vmul.f32 %v2668, %v2764
        %v2781 = vmul.f32 %v2669, %v2765
        %v2782 = vmul.f32 %v2670, %v2766
        %v2783 = vmul.f32 %v2671, %v2767
        %v2784 = vmul.f32 %v2672, %v2768
        %v2785 = vmul.f32 %v2673, %v2769
        %v2786 = vmul.f32 %v2674, %v2770
        %v2787 = vmul.f32 %v2675, %v2771
        %v2788 = vmul.f32 %v2676, %v2772
        %v2789 = vmul.f32 %v2677, %v2773
        %v2791 = vlaneseq
        %v2792 = vshrl.u32 %v2791, 7
        %v2793 = vsub.s32 0, %v2792
        %v2794 = vrot.slane %v2595, %v2793
        %v2796 = vmul.f32 %v2774, %v2794
        %v2797 = vmul.f32 %v2775, %v2794
        %v2798 = vmul.f32 %v2776, %v2794
        %v2799 = vmul.f32 %v2777, %v2794
        %v2800 = vmul.f32 %v2778, %v2794
        %v2801 = vmul.f32 %v2779, %v2794
        %v2802 = vmul.f32 %v2780, %v2794
        %v2803 = vmul.f32 %v2781, %v2794
        %v2804 = vmul.f32 %v2782, %v2794
        %v2805 = vmul.f32 %v2783, %v2794
        %v2806 = vmul.f32 %v2784, %v2794
        %v2807 = vmul.f32 %v2785, %v2794
        %v2808 = vmul.f32 %v2786, %v2794
        %v2809 = vmul.f32 %v2787, %v2794
        %v2810 = vmul.f32 %v2788, %v2794
        %v2811 = vmul.f32 %v2789, %v2794
        %v2813 = vlaneseq
        %v2814 = vshrl.u32 %v2813, 7
        %v2815 = vsub.s32 0, %v2814
        %v2816 = vrot.slane %v2597, %v2815
        %v2818 = vadd.f32 %v2796, %v2816
        %v2819 = vadd.f32 %v2797, %v2816
        %v2820 = vadd.f32 %v2798, %v2816
        %v2821 = vadd.f32 %v2799, %v2816
        %v2822 = vadd.f32 %v2800, %v2816
        %v2823 = vadd.f32 %v2801, %v2816
        %v2824 = vadd.f32 %v2802, %v2816
        %v2825 = vadd.f32 %v2803, %v2816
        %v2826 = vadd.f32 %v2804, %v2816
        %v2827 = vadd.f32 %v2805, %v2816
        %v2828 = vadd.f32 %v2806, %v2816
        %v2829 = vadd.f32 %v2807, %v2816
        %v2830 = vadd.f32 %v2808, %v2816
        %v2831 = vadd.f32 %v2809, %v2816
        %v2832 = vadd.f32 %v2810, %v2816
        %v2833 = vadd.f32 %v2811, %v2816
        %s2834 = scalar_lea.vmem %s7, 1
        %v2835 = vld [vmem:[%s2834] sm:$0x1]
        %s2836 = scalar_lea.vmem %s8, 1
        %v2837 = vld [vmem:[%s2836] sm:$0x1]
        %2838 = vadd.xlane.f32.xlu0 %v1055
        %v2839 = vpop.xlane.xlu0 %2838
        %2840 = vadd.xlane.f32.xlu0 %v1059
        %v2841 = vpop.xlane.xlu0 %2840
        %2842 = vadd.xlane.f32.xlu0 %v1065
        %v2843 = vpop.xlane.xlu0 %2842
        %2844 = vadd.xlane.f32.xlu0 %v1069
        %v2845 = vpop.xlane.xlu0 %2844
        %2846 = vadd.xlane.f32.xlu0 %v1075
        %v2847 = vpop.xlane.xlu0 %2846
        %2848 = vadd.xlane.f32.xlu0 %v1079
        %v2849 = vpop.xlane.xlu0 %2848
        %2850 = vadd.xlane.f32.xlu0 %v1085
        %v2851 = vpop.xlane.xlu0 %2850
        %2852 = vadd.xlane.f32.xlu0 %v1089
        %v2853 = vpop.xlane.xlu0 %2852
        %2854 = vadd.xlane.f32.xlu0 %v1095
        %v2855 = vpop.xlane.xlu0 %2854
        %2856 = vadd.xlane.f32.xlu0 %v1099
        %v2857 = vpop.xlane.xlu0 %2856
        %2858 = vadd.xlane.f32.xlu0 %v1105
        %v2859 = vpop.xlane.xlu0 %2858
        %2860 = vadd.xlane.f32.xlu0 %v1109
        %v2861 = vpop.xlane.xlu0 %2860
        %2862 = vadd.xlane.f32.xlu0 %v1115
        %v2863 = vpop.xlane.xlu0 %2862
        %2864 = vadd.xlane.f32.xlu0 %v1119
        %v2865 = vpop.xlane.xlu0 %2864
        %2866 = vadd.xlane.f32.xlu0 %v1125
        %v2867 = vpop.xlane.xlu0 %2866
        %2868 = vadd.xlane.f32.xlu0 %v1129
        %v2869 = vpop.xlane.xlu0 %2868
        %v2870 = vmul.f32 %v2839, 0.03846154
        %v2871 = vmul.f32 %v2841, 0.03846154
        %v2872 = vmul.f32 %v2843, 0.03846154
        %v2873 = vmul.f32 %v2845, 0.03846154
        %v2874 = vmul.f32 %v2847, 0.03846154
        %v2875 = vmul.f32 %v2849, 0.03846154
        %v2876 = vmul.f32 %v2851, 0.03846154
        %v2877 = vmul.f32 %v2853, 0.03846154
        %v2878 = vmul.f32 %v2855, 0.03846154
        %v2879 = vmul.f32 %v2857, 0.03846154
        %v2880 = vmul.f32 %v2859, 0.03846154
        %v2881 = vmul.f32 %v2861, 0.03846154
        %v2882 = vmul.f32 %v2863, 0.03846154
        %v2883 = vmul.f32 %v2865, 0.03846154
        %v2884 = vmul.f32 %v2867, 0.03846154
        %v2885 = vmul.f32 %v2869, 0.03846154
        %v2886 = vsub.f32 %v1055, %v2870
        %v2887 = vsub.f32 %v1059, %v2871
        %v2888 = vsub.f32 %v1065, %v2872
        %v2889 = vsub.f32 %v1069, %v2873
        %v2890 = vsub.f32 %v1075, %v2874
        %v2891 = vsub.f32 %v1079, %v2875
        %v2892 = vsub.f32 %v1085, %v2876
        %v2893 = vsub.f32 %v1089, %v2877
        %v2894 = vsub.f32 %v1095, %v2878
        %v2895 = vsub.f32 %v1099, %v2879
        %v2896 = vsub.f32 %v1105, %v2880
        %v2897 = vsub.f32 %v1109, %v2881
        %v2898 = vsub.f32 %v1115, %v2882
        %v2899 = vsub.f32 %v1119, %v2883
        %v2900 = vsub.f32 %v1125, %v2884
        %v2901 = vsub.f32 %v1129, %v2885
        %v2902 = vmul.f32 %v2886, %v607
        %v2903 = vmul.f32 %v2887, %v607
        %v2904 = vmul.f32 %v2888, %v607
        %v2905 = vmul.f32 %v2889, %v607
        %v2906 = vmul.f32 %v2890, %v607
        %v2907 = vmul.f32 %v2891, %v607
        %v2908 = vmul.f32 %v2892, %v607
        %v2909 = vmul.f32 %v2893, %v607
        %v2910 = vmul.f32 %v2894, %v607
        %v2911 = vmul.f32 %v2895, %v607
        %v2912 = vmul.f32 %v2896, %v607
        %v2913 = vmul.f32 %v2897, %v607
        %v2914 = vmul.f32 %v2898, %v607
        %v2915 = vmul.f32 %v2899, %v607
        %v2916 = vmul.f32 %v2900, %v607
        %v2917 = vmul.f32 %v2901, %v607
        %v2918 = vmul.f32 %v2902, %v2902
        %v2919 = vmul.f32 %v2903, %v2903
        %v2920 = vmul.f32 %v2904, %v2904
        %v2921 = vmul.f32 %v2905, %v2905
        %v2922 = vmul.f32 %v2906, %v2906
        %v2923 = vmul.f32 %v2907, %v2907
        %v2924 = vmul.f32 %v2908, %v2908
        %v2925 = vmul.f32 %v2909, %v2909
        %v2926 = vmul.f32 %v2910, %v2910
        %v2927 = vmul.f32 %v2911, %v2911
        %v2928 = vmul.f32 %v2912, %v2912
        %v2929 = vmul.f32 %v2913, %v2913
        %v2930 = vmul.f32 %v2914, %v2914
        %v2931 = vmul.f32 %v2915, %v2915
        %v2932 = vmul.f32 %v2916, %v2916
        %v2933 = vmul.f32 %v2917, %v2917
        %2934 = vadd.xlane.f32.xlu0 %v2918
        %v2935 = vpop.xlane.xlu0 %2934
        %2936 = vadd.xlane.f32.xlu0 %v2919
        %v2937 = vpop.xlane.xlu0 %2936
        %2938 = vadd.xlane.f32.xlu0 %v2920
        %v2939 = vpop.xlane.xlu0 %2938
        %2940 = vadd.xlane.f32.xlu0 %v2921
        %v2941 = vpop.xlane.xlu0 %2940
        %2942 = vadd.xlane.f32.xlu0 %v2922
        %v2943 = vpop.xlane.xlu0 %2942
        %2944 = vadd.xlane.f32.xlu0 %v2923
        %v2945 = vpop.xlane.xlu0 %2944
        %2946 = vadd.xlane.f32.xlu0 %v2924
        %v2947 = vpop.xlane.xlu0 %2946
        %2948 = vadd.xlane.f32.xlu0 %v2925
        %v2949 = vpop.xlane.xlu0 %2948
        %2950 = vadd.xlane.f32.xlu0 %v2926
        %v2951 = vpop.xlane.xlu0 %2950
        %2952 = vadd.xlane.f32.xlu0 %v2927
        %v2953 = vpop.xlane.xlu0 %2952
        %2954 = vadd.xlane.f32.xlu0 %v2928
        %v2955 = vpop.xlane.xlu0 %2954
        %2956 = vadd.xlane.f32.xlu0 %v2929
        %v2957 = vpop.xlane.xlu0 %2956
        %2958 = vadd.xlane.f32.xlu0 %v2930
        %v2959 = vpop.xlane.xlu0 %2958
        %2960 = vadd.xlane.f32.xlu0 %v2931
        %v2961 = vpop.xlane.xlu0 %2960
        %2962 = vadd.xlane.f32.xlu0 %v2932
        %v2963 = vpop.xlane.xlu0 %2962
        %2964 = vadd.xlane.f32.xlu0 %v2933
        %v2965 = vpop.xlane.xlu0 %2964
        %v2966 = vmul.f32 %v2935, 0.03846154
        %v2967 = vmul.f32 %v2937, 0.03846154
        %v2968 = vmul.f32 %v2939, 0.03846154
        %v2969 = vmul.f32 %v2941, 0.03846154
        %v2970 = vmul.f32 %v2943, 0.03846154
        %v2971 = vmul.f32 %v2945, 0.03846154
        %v2972 = vmul.f32 %v2947, 0.03846154
        %v2973 = vmul.f32 %v2949, 0.03846154
        %v2974 = vmul.f32 %v2951, 0.03846154
        %v2975 = vmul.f32 %v2953, 0.03846154
        %v2976 = vmul.f32 %v2955, 0.03846154
        %v2977 = vmul.f32 %v2957, 0.03846154
        %v2978 = vmul.f32 %v2959, 0.03846154
        %v2979 = vmul.f32 %v2961, 0.03846154
        %v2980 = vmul.f32 %v2963, 0.03846154
        %v2981 = vmul.f32 %v2965, 0.03846154
        %v2982 = vadd.f32 %v2966, 1e-05
        %v2983 = vadd.f32 %v2967, 1e-05
        %v2984 = vadd.f32 %v2968, 1e-05
        %v2985 = vadd.f32 %v2969, 1e-05
        %v2986 = vadd.f32 %v2970, 1e-05
        %v2987 = vadd.f32 %v2971, 1e-05
        %v2988 = vadd.f32 %v2972, 1e-05
        %v2989 = vadd.f32 %v2973, 1e-05
        %v2990 = vadd.f32 %v2974, 1e-05
        %v2991 = vadd.f32 %v2975, 1e-05
        %v2992 = vadd.f32 %v2976, 1e-05
        %v2993 = vadd.f32 %v2977, 1e-05
        %v2994 = vadd.f32 %v2978, 1e-05
        %v2995 = vadd.f32 %v2979, 1e-05
        %v2996 = vadd.f32 %v2980, 1e-05
        %v2997 = vadd.f32 %v2981, 1e-05
        %v2998 = vrsqrt.pop %v2982
        %v2999 = vrsqrt.pop %v2983
        %v3000 = vrsqrt.pop %v2984
        %v3001 = vrsqrt.pop %v2985
        %v3002 = vrsqrt.pop %v2986
        %v3003 = vrsqrt.pop %v2987
        %v3004 = vrsqrt.pop %v2988
        %v3005 = vrsqrt.pop %v2989
        %v3006 = vrsqrt.pop %v2990
        %v3007 = vrsqrt.pop %v2991
        %v3008 = vrsqrt.pop %v2992
        %v3009 = vrsqrt.pop %v2993
        %v3010 = vrsqrt.pop %v2994
        %v3011 = vrsqrt.pop %v2995
        %v3012 = vrsqrt.pop %v2996
        %v3013 = vrsqrt.pop %v2997
        %v3014 = vmul.f32 %v2902, %v2998
        %v3015 = vmul.f32 %v2903, %v2999
        %v3016 = vmul.f32 %v2904, %v3000
        %v3017 = vmul.f32 %v2905, %v3001
        %v3018 = vmul.f32 %v2906, %v3002
        %v3019 = vmul.f32 %v2907, %v3003
        %v3020 = vmul.f32 %v2908, %v3004
        %v3021 = vmul.f32 %v2909, %v3005
        %v3022 = vmul.f32 %v2910, %v3006
        %v3023 = vmul.f32 %v2911, %v3007
        %v3024 = vmul.f32 %v2912, %v3008
        %v3025 = vmul.f32 %v2913, %v3009
        %v3026 = vmul.f32 %v2914, %v3010
        %v3027 = vmul.f32 %v2915, %v3011
        %v3028 = vmul.f32 %v2916, %v3012
        %v3029 = vmul.f32 %v2917, %v3013
        %v3031 = vlaneseq
        %v3032 = vshrl.u32 %v3031, 7
        %v3033 = vsub.s32 0, %v3032
        %v3034 = vrot.slane %v2835, %v3033
        %v3036 = vmul.f32 %v3014, %v3034
        %v3037 = vmul.f32 %v3015, %v3034
        %v3038 = vmul.f32 %v3016, %v3034
        %v3039 = vmul.f32 %v3017, %v3034
        %v3040 = vmul.f32 %v3018, %v3034
        %v3041 = vmul.f32 %v3019, %v3034
        %v3042 = vmul.f32 %v3020, %v3034
        %v3043 = vmul.f32 %v3021, %v3034
        %v3044 = vmul.f32 %v3022, %v3034
        %v3045 = vmul.f32 %v3023, %v3034
        %v3046 = vmul.f32 %v3024, %v3034
        %v3047 = vmul.f32 %v3025, %v3034
        %v3048 = vmul.f32 %v3026, %v3034
        %v3049 = vmul.f32 %v3027, %v3034
        %v3050 = vmul.f32 %v3028, %v3034
        %v3051 = vmul.f32 %v3029, %v3034
        %v3053 = vlaneseq
        %v3054 = vshrl.u32 %v3053, 7
        %v3055 = vsub.s32 0, %v3054
        %v3056 = vrot.slane %v2837, %v3055
        %v3058 = vadd.f32 %v3036, %v3056
        %v3059 = vadd.f32 %v3037, %v3056
        %v3060 = vadd.f32 %v3038, %v3056
        %v3061 = vadd.f32 %v3039, %v3056
        %v3062 = vadd.f32 %v3040, %v3056
        %v3063 = vadd.f32 %v3041, %v3056
        %v3064 = vadd.f32 %v3042, %v3056
        %v3065 = vadd.f32 %v3043, %v3056
        %v3066 = vadd.f32 %v3044, %v3056
        %v3067 = vadd.f32 %v3045, %v3056
        %v3068 = vadd.f32 %v3046, %v3056
        %v3069 = vadd.f32 %v3047, %v3056
        %v3070 = vadd.f32 %v3048, %v3056
        %v3071 = vadd.f32 %v3049, %v3056
        %v3072 = vadd.f32 %v3050, %v3056
        %v3073 = vadd.f32 %v3051, %v3056
        %v3074 = vpack.c.bf16 %v2579, %v2578
        %v3075 = vpack.c.bf16 %v2581, %v2580
        %v3076 = vpack.c.bf16 %v2583, %v2582
        %v3077 = vpack.c.bf16 %v2585, %v2584
        %v3078 = vpack.c.bf16 %v2819, %v2818
        %v3079 = vpack.c.bf16 %v2821, %v2820
        %v3080 = vpack.c.bf16 %v2823, %v2822
        %v3081 = vpack.c.bf16 %v2825, %v2824
        %v3082 = vpack.c.bf16 %v3059, %v3058
        %v3083 = vpack.c.bf16 %v3061, %v3060
        %v3084 = vpack.c.bf16 %v3063, %v3062
        %v3085 = vpack.c.bf16 %v3065, %v3064
        %3086 = vmatprep.subr.bf16.mxu0 0
        %3087 = vmatpush1.bf16.xpose.msra.mxu0 0
        %3088 = vmatprep.subr.bf16.mxu0 0
        %3089 = vmatpush1.bf16.xpose.msra.mxu0 0
        %3090 = vmatprep.subr.bf16.mxu0 0
        %3091 = vmatpush1.bf16.xpose.msra.mxu0 0
        %3092 = vmatprep.subr.bf16.mxu0 0
        %3093 = vmatpush1.bf16.xpose.msra.mxu0 0
        %3094 = vmatprep.subr.bf16.mxu0 0
        %3095 = vmatpush1.bf16.xpose.msra.mxu0 %v3081
        %3096 = vmatprep.subr.bf16.mxu0 0
        %3097 = vmatpush1.bf16.xpose.msra.mxu0 %v3080
        %3098 = vmatprep.subr.bf16.mxu0 0
        %3099 = vmatpush1.bf16.xpose.msra.mxu0 %v3079
        %3100 = vmatprep.subr.bf16.mxu0 0
        %3101 = vmatpush1.bf16.xpose.msra.mxu0 %v3078
        %3102 = vmatprep.subr.bf16.mxu0 0
        %3103 = vmatpush2.bf16.xpose.msra.mxu0 0
        %3104 = vmatprep.subr.bf16.mxu0 0
        %3105 = vmatpush2.bf16.xpose.msra.mxu0 0
        %3106 = vmatprep.subr.bf16.mxu0 0
        %3107 = vmatpush2.bf16.xpose.msra.mxu0 0
        %3108 = vmatprep.subr.bf16.mxu0 0
        %3109 = vmatpush2.bf16.xpose.msra.mxu0 0
        %3110 = vmatprep.subr.bf16.mxu0 0
        %3111 = vmatpush2.bf16.xpose.msra.mxu0 0
        %3112 = vmatprep.subr.bf16.mxu0 0
        %3113 = vmatpush2.bf16.xpose.msra.mxu0 0
        %3114 = vmatprep.subr.bf16.mxu0 0
        %3115 = vmatpush2.bf16.xpose.msra.mxu0 0
        %3116 = vmatprep.subr.bf16.mxu0 0
        %3117 = vmatpush2.bf16.xpose.msra.mxu0 0
        %3118 = vmatprep.mubr.bf16.mxu0 0
        %3119 = vmatmul.mubr.bf16.gmra.mxu0 %v3074
        %v3120 = vpop.f32.mrf.mxu0
        %v3121 = vadd.f32 0.0, %v3120
        %v3122 = vpop.f32.mrf.mxu0
        %v3123 = vpop.f32.mrf.mxu0
        %v3124 = vadd.f32 0.0, %v3123
        %v3125 = vpop.f32.mrf.mxu0
        %3126 = vmatprep.mubr.bf16.mxu0 0
        %3127 = vmatmul.mubr.bf16.gmra.mxu0 %v3075
        %v3128 = vpop.f32.mrf.mxu0
        %v3129 = vadd.f32 0.0, %v3128
        %v3130 = vpop.f32.mrf.mxu0
        %v3131 = vpop.f32.mrf.mxu0
        %v3132 = vadd.f32 0.0, %v3131
        %v3133 = vpop.f32.mrf.mxu0
        %3134 = vmatprep.mubr.bf16.mxu0 0
        %3135 = vmatmul.mubr.bf16.gmra.mxu0 %v3076
        %v3136 = vpop.f32.mrf.mxu0
        %v3137 = vadd.f32 0.0, %v3136
        %v3138 = vpop.f32.mrf.mxu0
        %v3139 = vpop.f32.mrf.mxu0
        %v3140 = vadd.f32 0.0, %v3139
        %v3141 = vpop.f32.mrf.mxu0
        %3142 = vmatprep.mubr.bf16.mxu0 0
        %3143 = vmatmul.mubr.bf16.gmra.mxu0 %v3077
        %v3144 = vpop.f32.mrf.mxu0
        %v3145 = vadd.f32 0.0, %v3144
        %v3146 = vpop.f32.mrf.mxu0
        %v3147 = vpop.f32.mrf.mxu0
        %v3148 = vadd.f32 0.0, %v3147
        %v3149 = vpop.f32.mrf.mxu0
        %3150 = vdwg.mxu0
        %v3151 = vsel %vm1922, %v3121, -inf
        %3152 = vmax.xlane.f32.xlu0 %v3151
        %v3153 = vpop.xlane.xlu0 %3152
        %v3154 = vsel %vm1922, %v3124, -inf
        %3155 = vmax.xlane.f32.xlu0 %v3154
        %v3156 = vpop.xlane.xlu0 %3155
        %v3157 = vsel %vm1922, %v3129, -inf
        %3158 = vmax.xlane.f32.xlu0 %v3157
        %v3159 = vpop.xlane.xlu0 %3158
        %v3160 = vsel %vm1922, %v3132, -inf
        %3161 = vmax.xlane.f32.xlu0 %v3160
        %v3162 = vpop.xlane.xlu0 %3161
        %v3163 = vsel %vm1922, %v3137, -inf
        %3164 = vmax.xlane.f32.xlu0 %v3163
        %v3165 = vpop.xlane.xlu0 %3164
        %v3166 = vsel %vm1922, %v3140, -inf
        %3167 = vmax.xlane.f32.xlu0 %v3166
        %v3168 = vpop.xlane.xlu0 %3167
        %v3169 = vsel %vm1922, %v3145, -inf
        %3170 = vmax.xlane.f32.xlu0 %v3169
        %v3171 = vpop.xlane.xlu0 %3170
        %v3172 = vsel %vm1922, %v3148, -inf
        %3173 = vmax.xlane.f32.xlu0 %v3172
        %v3174 = vpop.xlane.xlu0 %3173
        %v3175 = vsub.f32 %v3121, %v3153
        %v3176 = vsub.f32 %v3124, %v3156
        %v3177 = vsub.f32 %v3129, %v3159
        %v3178 = vsub.f32 %v3132, %v3162
        %v3179 = vsub.f32 %v3137, %v3165
        %v3180 = vsub.f32 %v3140, %v3168
        %v3181 = vsub.f32 %v3145, %v3171
        %v3182 = vsub.f32 %v3148, %v3174
        %v3183 = vmul.f32 %v3175, 1.442695
        %v3184 = vpow.pop %v3183
        %v3185 = vmul.f32 %v3176, 1.442695
        %v3186 = vpow.pop %v3185
        %v3187 = vmul.f32 %v3177, 1.442695
        %v3188 = vpow.pop %v3187
        %v3189 = vmul.f32 %v3178, 1.442695
        %v3190 = vpow.pop %v3189
        %v3191 = vmul.f32 %v3179, 1.442695
        %v3192 = vpow.pop %v3191
        %v3193 = vmul.f32 %v3180, 1.442695
        %v3194 = vpow.pop %v3193
        %v3195 = vmul.f32 %v3181, 1.442695
        %v3196 = vpow.pop %v3195
        %v3197 = vmul.f32 %v3182, 1.442695
        %v3198 = vpow.pop %v3197
        %v3199 = vsel %vm1922, %v3184, 0.0
        %3200 = vadd.xlane.f32.xlu0 %v3199
        %v3201 = vpop.xlane.xlu0 %3200
        %v3202 = vsel %vm1922, %v3186, 0.0
        %3203 = vadd.xlane.f32.xlu0 %v3202
        %v3204 = vpop.xlane.xlu0 %3203
        %v3205 = vsel %vm1922, %v3188, 0.0
        %3206 = vadd.xlane.f32.xlu0 %v3205
        %v3207 = vpop.xlane.xlu0 %3206
        %v3208 = vsel %vm1922, %v3190, 0.0
        %3209 = vadd.xlane.f32.xlu0 %v3208
        %v3210 = vpop.xlane.xlu0 %3209
        %v3211 = vsel %vm1922, %v3192, 0.0
        %3212 = vadd.xlane.f32.xlu0 %v3211
        %v3213 = vpop.xlane.xlu0 %3212
        %v3214 = vsel %vm1922, %v3194, 0.0
        %3215 = vadd.xlane.f32.xlu0 %v3214
        %v3216 = vpop.xlane.xlu0 %3215
        %v3217 = vsel %vm1922, %v3196, 0.0
        %3218 = vadd.xlane.f32.xlu0 %v3217
        %v3219 = vpop.xlane.xlu0 %3218
        %v3220 = vsel %vm1922, %v3198, 0.0
        %3221 = vadd.xlane.f32.xlu0 %v3220
        %v3222 = vpop.xlane.xlu0 %3221
        %v3223 = vrcp.pop %v3201
        %v3224 = vrcp.pop %v3204
        %v3225 = vrcp.pop %v3207
        %v3226 = vrcp.pop %v3210
        %v3227 = vrcp.pop %v3213
        %v3228 = vrcp.pop %v3216
        %v3229 = vrcp.pop %v3219
        %v3230 = vrcp.pop %v3222
        %v3231 = vmul.f32 %v3184, %v3223
        %v3232 = vmul.f32 %v3186, %v3224
        %v3233 = vmul.f32 %v3188, %v3225
        %v3234 = vmul.f32 %v3190, %v3226
        %v3235 = vmul.f32 %v3192, %v3227
        %v3236 = vmul.f32 %v3194, %v3228
        %v3237 = vmul.f32 %v3196, %v3229
        %v3238 = vmul.f32 %v3198, %v3230
        %v3239 = vpack.c.bf16 %v3232, %v3231
        %v3240 = vpack.c.bf16 %v3234, %v3233
        %v3241 = vpack.c.bf16 %v3236, %v3235
        %v3242 = vpack.c.bf16 %v3238, %v3237
        %v3244 = vsel %vm1922, %v3239, 0
        %v3247 = vsel %vm1922, %v3240, 0
        %v3250 = vsel %vm1922, %v3241, 0
        %v3253 = vsel %vm1922, %v3242, 0
        %3255 = vmatprep.subr.bf16.mxu0 0
        %3256 = vmatpush1.bf16.msra.mxu0 0
        %3257 = vmatprep.subr.bf16.mxu0 0
        %3258 = vmatpush1.bf16.msra.mxu0 0
        %3259 = vmatprep.subr.bf16.mxu0 0
        %3260 = vmatpush1.bf16.msra.mxu0 0
        %3261 = vmatprep.subr.bf16.mxu0 0
        %3262 = vmatpush1.bf16.msra.mxu0 0
        %3263 = vmatprep.subr.bf16.mxu0 0
        %3264 = vmatpush1.bf16.msra.mxu0 %v3085
        %3265 = vmatprep.subr.bf16.mxu0 0
        %3266 = vmatpush1.bf16.msra.mxu0 %v3084
        %3267 = vmatprep.subr.bf16.mxu0 0
        %3268 = vmatpush1.bf16.msra.mxu0 %v3083
        %3269 = vmatprep.subr.bf16.mxu0 0
        %3270 = vmatpush1.bf16.msra.mxu0 %v3082
        %3271 = vmatprep.subr.bf16.mxu0 0
        %3272 = vmatpush2.bf16.msra.mxu0 0
        %3273 = vmatprep.subr.bf16.mxu0 0
        %3274 = vmatpush2.bf16.msra.mxu0 0
        %3275 = vmatprep.subr.bf16.mxu0 0
        %3276 = vmatpush2.bf16.msra.mxu0 0
        %3277 = vmatprep.subr.bf16.mxu0 0
        %3278 = vmatpush2.bf16.msra.mxu0 0
        %3279 = vmatprep.subr.bf16.mxu0 0
        %3280 = vmatpush2.bf16.msra.mxu0 0
        %3281 = vmatprep.subr.bf16.mxu0 0
        %3282 = vmatpush2.bf16.msra.mxu0 0
        %3283 = vmatprep.subr.bf16.mxu0 0
        %3284 = vmatpush2.bf16.msra.mxu0 0
        %3285 = vmatprep.subr.bf16.mxu0 0
        %3286 = vmatpush2.bf16.msra.mxu0 0
        %3287 = vmatprep.mubr.bf16.mxu0 0
        %3288 = vmatmul.mubr.bf16.gmra.mxu0 %v3244
        %v3289 = vpop.f32.mrf.mxu0
        %v3290 = vadd.f32 0.0, %v3289
        %v3291 = vpop.f32.mrf.mxu0
        %v3292 = vpop.f32.mrf.mxu0
        %v3293 = vadd.f32 0.0, %v3292
        %v3294 = vpop.f32.mrf.mxu0
        %3295 = vmatprep.mubr.bf16.mxu0 0
        %3296 = vmatmul.mubr.bf16.gmra.mxu0 %v3247
        %v3297 = vpop.f32.mrf.mxu0
        %v3298 = vadd.f32 0.0, %v3297
        %v3299 = vpop.f32.mrf.mxu0
        %v3300 = vpop.f32.mrf.mxu0
        %v3301 = vadd.f32 0.0, %v3300
        %v3302 = vpop.f32.mrf.mxu0
        %3303 = vmatprep.mubr.bf16.mxu0 0
        %3304 = vmatmul.mubr.bf16.gmra.mxu0 %v3250
        %v3305 = vpop.f32.mrf.mxu0
        %v3306 = vadd.f32 0.0, %v3305
        %v3307 = vpop.f32.mrf.mxu0
        %v3308 = vpop.f32.mrf.mxu0
        %v3309 = vadd.f32 0.0, %v3308
        %v3310 = vpop.f32.mrf.mxu0
        %3311 = vmatprep.mubr.bf16.mxu0 0
        %3312 = vmatmul.mubr.bf16.gmra.mxu0 %v3253
        %v3313 = vpop.f32.mrf.mxu0
        %v3314 = vadd.f32 0.0, %v3313
        %v3315 = vpop.f32.mrf.mxu0
        %v3316 = vpop.f32.mrf.mxu0
        %v3317 = vadd.f32 0.0, %v3316
        %v3318 = vpop.f32.mrf.mxu0
        %3319 = vdwg.mxu0
        %3320 = vst [vmem:[#allocation3 + $0x8] sm:$0xff] %v3290
        %3321 = vst [vmem:[#allocation3 + $0x18] sm:$0xff] %v3293
        %3322 = vst [vmem:[#allocation3 + $0x28] sm:$0xff] %v3298
        %3323 = vst [vmem:[#allocation3 + $0x38] sm:$0xff] %v3301
        %3324 = vst [vmem:[#allocation3 + $0x48] sm:$0xff] %v3306
        %3325 = vst [vmem:[#allocation3 + $0x58] sm:$0xff] %v3309
        %3326 = vst [vmem:[#allocation3 + $0x68] sm:$0xff] %v3314
        %3327 = vst [vmem:[#allocation3 + $0x78] sm:$0xff] %v3317
        %v3328 = vpack.c.bf16 %v2587, %v2586
        %v3329 = vpack.c.bf16 %v2589, %v2588
        %v3330 = vpack.c.bf16 %v2591, %v2590
        %v3331 = vpack.c.bf16 %v2593, %v2592
        %v3332 = vpack.c.bf16 %v2827, %v2826
        %v3333 = vpack.c.bf16 %v2829, %v2828
        %v3334 = vpack.c.bf16 %v2831, %v2830
        %v3335 = vpack.c.bf16 %v2833, %v2832
        %v3336 = vpack.c.bf16 %v3067, %v3066
        %v3337 = vpack.c.bf16 %v3069, %v3068
        %v3338 = vpack.c.bf16 %v3071, %v3070
        %v3339 = vpack.c.bf16 %v3073, %v3072
        %3340 = vmatprep.subr.bf16.mxu0 0
        %3341 = vmatpush1.bf16.xpose.msra.mxu0 0
        %3342 = vmatprep.subr.bf16.mxu0 0
        %3343 = vmatpush1.bf16.xpose.msra.mxu0 0
        %3344 = vmatprep.subr.bf16.mxu0 0
        %3345 = vmatpush1.bf16.xpose.msra.mxu0 0
        %3346 = vmatprep.subr.bf16.mxu0 0
        %3347 = vmatpush1.bf16.xpose.msra.mxu0 0
        %3348 = vmatprep.subr.bf16.mxu0 0
        %3349 = vmatpush1.bf16.xpose.msra.mxu0 %v3335
        %3350 = vmatprep.subr.bf16.mxu0 0
        %3351 = vmatpush1.bf16.xpose.msra.mxu0 %v3334
        %3352 = vmatprep.subr.bf16.mxu0 0
        %3353 = vmatpush1.bf16.xpose.msra.mxu0 %v3333
        %3354 = vmatprep.subr.bf16.mxu0 0
        %3355 = vmatpush1.bf16.xpose.msra.mxu0 %v3332
        %3356 = vmatprep.subr.bf16.mxu0 0
        %3357 = vmatpush2.bf16.xpose.msra.mxu0 0
        %3358 = vmatprep.subr.bf16.mxu0 0
        %3359 = vmatpush2.bf16.xpose.msra.mxu0 0
        %3360 = vmatprep.subr.bf16.mxu0 0
        %3361 = vmatpush2.bf16.xpose.msra.mxu0 0
        %3362 = vmatprep.subr.bf16.mxu0 0
        %3363 = vmatpush2.bf16.xpose.msra.mxu0 0
        %3364 = vmatprep.subr.bf16.mxu0 0
        %3365 = vmatpush2.bf16.xpose.msra.mxu0 0
        %3366 = vmatprep.subr.bf16.mxu0 0
        %3367 = vmatpush2.bf16.xpose.msra.mxu0 0
        %3368 = vmatprep.subr.bf16.mxu0 0
        %3369 = vmatpush2.bf16.xpose.msra.mxu0 0
        %3370 = vmatprep.subr.bf16.mxu0 0
        %3371 = vmatpush2.bf16.xpose.msra.mxu0 0
        %3372 = vmatprep.mubr.bf16.mxu0 0
        %3373 = vmatmul.mubr.bf16.gmra.mxu0 %v3328
        %v3374 = vpop.f32.mrf.mxu0
        %v3375 = vadd.f32 0.0, %v3374
        %v3376 = vpop.f32.mrf.mxu0
        %v3377 = vpop.f32.mrf.mxu0
        %v3378 = vadd.f32 0.0, %v3377
        %v3379 = vpop.f32.mrf.mxu0
        %3380 = vmatprep.mubr.bf16.mxu0 0
        %3381 = vmatmul.mubr.bf16.gmra.mxu0 %v3329
        %v3382 = vpop.f32.mrf.mxu0
        %v3383 = vadd.f32 0.0, %v3382
        %v3384 = vpop.f32.mrf.mxu0
        %v3385 = vpop.f32.mrf.mxu0
        %v3386 = vadd.f32 0.0, %v3385
        %v3387 = vpop.f32.mrf.mxu0
        %3388 = vmatprep.mubr.bf16.mxu0 0
        %3389 = vmatmul.mubr.bf16.gmra.mxu0 %v3330
        %v3390 = vpop.f32.mrf.mxu0
        %v3391 = vadd.f32 0.0, %v3390
        %v3392 = vpop.f32.mrf.mxu0
        %v3393 = vpop.f32.mrf.mxu0
        %v3394 = vadd.f32 0.0, %v3393
        %v3395 = vpop.f32.mrf.mxu0
        %3396 = vmatprep.mubr.bf16.mxu0 0
        %3397 = vmatmul.mubr.bf16.gmra.mxu0 %v3331
        %v3398 = vpop.f32.mrf.mxu0
        %v3399 = vadd.f32 0.0, %v3398
        %v3400 = vpop.f32.mrf.mxu0
        %v3401 = vpop.f32.mrf.mxu0
        %v3402 = vadd.f32 0.0, %v3401
        %v3403 = vpop.f32.mrf.mxu0
        %3404 = vdwg.mxu0
        %v3405 = vsel %vm1922, %v3375, -inf
        %3406 = vmax.xlane.f32.xlu0 %v3405
        %v3407 = vpop.xlane.xlu0 %3406
        %v3408 = vsel %vm1922, %v3378, -inf
        %3409 = vmax.xlane.f32.xlu0 %v3408
        %v3410 = vpop.xlane.xlu0 %3409
        %v3411 = vsel %vm1922, %v3383, -inf
        %3412 = vmax.xlane.f32.xlu0 %v3411
        %v3413 = vpop.xlane.xlu0 %3412
        %v3414 = vsel %vm1922, %v3386, -inf
        %3415 = vmax.xlane.f32.xlu0 %v3414
        %v3416 = vpop.xlane.xlu0 %3415
        %v3417 = vsel %vm1922, %v3391, -inf
        %3418 = vmax.xlane.f32.xlu0 %v3417
        %v3419 = vpop.xlane.xlu0 %3418
        %v3420 = vsel %vm1922, %v3394, -inf
        %3421 = vmax.xlane.f32.xlu0 %v3420
        %v3422 = vpop.xlane.xlu0 %3421
        %v3423 = vsel %vm1922, %v3399, -inf
        %3424 = vmax.xlane.f32.xlu0 %v3423
        %v3425 = vpop.xlane.xlu0 %3424
        %v3426 = vsel %vm1922, %v3402, -inf
        %3427 = vmax.xlane.f32.xlu0 %v3426
        %v3428 = vpop.xlane.xlu0 %3427
        %v3429 = vsub.f32 %v3375, %v3407
        %v3430 = vsub.f32 %v3378, %v3410
        %v3431 = vsub.f32 %v3383, %v3413
        %v3432 = vsub.f32 %v3386, %v3416
        %v3433 = vsub.f32 %v3391, %v3419
        %v3434 = vsub.f32 %v3394, %v3422
        %v3435 = vsub.f32 %v3399, %v3425
        %v3436 = vsub.f32 %v3402, %v3428
        %v3437 = vmul.f32 %v3429, 1.442695
        %v3438 = vpow.pop %v3437
        %v3439 = vmul.f32 %v3430, 1.442695
        %v3440 = vpow.pop %v3439
        %v3441 = vmul.f32 %v3431, 1.442695
        %v3442 = vpow.pop %v3441
        %v3443 = vmul.f32 %v3432, 1.442695
        %v3444 = vpow.pop %v3443
        %v3445 = vmul.f32 %v3433, 1.442695
        %v3446 = vpow.pop %v3445
        %v3447 = vmul.f32 %v3434, 1.442695
        %v3448 = vpow.pop %v3447
        %v3449 = vmul.f32 %v3435, 1.442695
        %v3450 = vpow.pop %v3449
        %v3451 = vmul.f32 %v3436, 1.442695
        %v3452 = vpow.pop %v3451
        %v3453 = vsel %vm1922, %v3438, 0.0
        %3454 = vadd.xlane.f32.xlu0 %v3453
        %v3455 = vpop.xlane.xlu0 %3454
        %v3456 = vsel %vm1922, %v3440, 0.0
        %3457 = vadd.xlane.f32.xlu0 %v3456
        %v3458 = vpop.xlane.xlu0 %3457
        %v3459 = vsel %vm1922, %v3442, 0.0
        %3460 = vadd.xlane.f32.xlu0 %v3459
        %v3461 = vpop.xlane.xlu0 %3460
        %v3462 = vsel %vm1922, %v3444, 0.0
        %3463 = vadd.xlane.f32.xlu0 %v3462
        %v3464 = vpop.xlane.xlu0 %3463
        %v3465 = vsel %vm1922, %v3446, 0.0
        %3466 = vadd.xlane.f32.xlu0 %v3465
        %v3467 = vpop.xlane.xlu0 %3466
        %v3468 = vsel %vm1922, %v3448, 0.0
        %3469 = vadd.xlane.f32.xlu0 %v3468
        %v3470 = vpop.xlane.xlu0 %3469
        %v3471 = vsel %vm1922, %v3450, 0.0
        %3472 = vadd.xlane.f32.xlu0 %v3471
        %v3473 = vpop.xlane.xlu0 %3472
        %v3474 = vsel %vm1922, %v3452, 0.0
        %3475 = vadd.xlane.f32.xlu0 %v3474
        %v3476 = vpop.xlane.xlu0 %3475
        %v3477 = vrcp.pop %v3455
        %v3478 = vrcp.pop %v3458
        %v3479 = vrcp.pop %v3461
        %v3480 = vrcp.pop %v3464
        %v3481 = vrcp.pop %v3467
        %v3482 = vrcp.pop %v3470
        %v3483 = vrcp.pop %v3473
        %v3484 = vrcp.pop %v3476
        %v3485 = vmul.f32 %v3438, %v3477
        %v3486 = vmul.f32 %v3440, %v3478
        %v3487 = vmul.f32 %v3442, %v3479
        %v3488 = vmul.f32 %v3444, %v3480
        %v3489 = vmul.f32 %v3446, %v3481
        %v3490 = vmul.f32 %v3448, %v3482
        %v3491 = vmul.f32 %v3450, %v3483
        %v3492 = vmul.f32 %v3452, %v3484
        %v3493 = vpack.c.bf16 %v3486, %v3485
        %v3494 = vpack.c.bf16 %v3488, %v3487
        %v3495 = vpack.c.bf16 %v3490, %v3489
        %v3496 = vpack.c.bf16 %v3492, %v3491
        %v3498 = vsel %vm1922, %v3493, 0
        %v3501 = vsel %vm1922, %v3494, 0
        %v3504 = vsel %vm1922, %v3495, 0
        %v3507 = vsel %vm1922, %v3496, 0
        %3509 = vmatprep.subr.bf16.mxu0 0
        %3510 = vmatpush1.bf16.msra.mxu0 0
        %3511 = vmatprep.subr.bf16.mxu0 0
        %3512 = vmatpush1.bf16.msra.mxu0 0
        %3513 = vmatprep.subr.bf16.mxu0 0
        %3514 = vmatpush1.bf16.msra.mxu0 0
        %3515 = vmatprep.subr.bf16.mxu0 0
        %3516 = vmatpush1.bf16.msra.mxu0 0
        %3517 = vmatprep.subr.bf16.mxu0 0
        %3518 = vmatpush1.bf16.msra.mxu0 %v3339
        %3519 = vmatprep.subr.bf16.mxu0 0
        %3520 = vmatpush1.bf16.msra.mxu0 %v3338
        %3521 = vmatprep.subr.bf16.mxu0 0
        %3522 = vmatpush1.bf16.msra.mxu0 %v3337
        %3523 = vmatprep.subr.bf16.mxu0 0
        %3524 = vmatpush1.bf16.msra.mxu0 %v3336
        %3525 = vmatprep.subr.bf16.mxu0 0
        %3526 = vmatpush2.bf16.msra.mxu0 0
        %3527 = vmatprep.subr.bf16.mxu0 0
        %3528 = vmatpush2.bf16.msra.mxu0 0
        %3529 = vmatprep.subr.bf16.mxu0 0
        %3530 = vmatpush2.bf16.msra.mxu0 0
        %3531 = vmatprep.subr.bf16.mxu0 0
        %3532 = vmatpush2.bf16.msra.mxu0 0
        %3533 = vmatprep.subr.bf16.mxu0 0
        %3534 = vmatpush2.bf16.msra.mxu0 0
        %3535 = vmatprep.subr.bf16.mxu0 0
        %3536 = vmatpush2.bf16.msra.mxu0 0
        %3537 = vmatprep.subr.bf16.mxu0 0
        %3538 = vmatpush2.bf16.msra.mxu0 0
        %3539 = vmatprep.subr.bf16.mxu0 0
        %3540 = vmatpush2.bf16.msra.mxu0 0
        %3541 = vmatprep.mubr.bf16.mxu0 0
        %3542 = vmatmul.mubr.bf16.gmra.mxu0 %v3498
        %v3543 = vpop.f32.mrf.mxu0
        %v3544 = vadd.f32 0.0, %v3543
        %v3545 = vpop.f32.mrf.mxu0
        %v3546 = vpop.f32.mrf.mxu0
        %v3547 = vadd.f32 0.0, %v3546
        %v3548 = vpop.f32.mrf.mxu0
        %3549 = vmatprep.mubr.bf16.mxu0 0
        %3550 = vmatmul.mubr.bf16.gmra.mxu0 %v3501
        %v3551 = vpop.f32.mrf.mxu0
        %v3552 = vadd.f32 0.0, %v3551
        %v3553 = vpop.f32.mrf.mxu0
        %v3554 = vpop.f32.mrf.mxu0
        %v3555 = vadd.f32 0.0, %v3554
        %v3556 = vpop.f32.mrf.mxu0
        %3557 = vmatprep.mubr.bf16.mxu0 0
        %3558 = vmatmul.mubr.bf16.gmra.mxu0 %v3504
        %v3559 = vpop.f32.mrf.mxu0
        %v3560 = vadd.f32 0.0, %v3559
        %v3561 = vpop.f32.mrf.mxu0
        %v3562 = vpop.f32.mrf.mxu0
        %v3563 = vadd.f32 0.0, %v3562
        %v3564 = vpop.f32.mrf.mxu0
        %3565 = vmatprep.mubr.bf16.mxu0 0
        %3566 = vmatmul.mubr.bf16.gmra.mxu0 %v3507
        %v3567 = vpop.f32.mrf.mxu0
        %v3568 = vadd.f32 0.0, %v3567
        %v3569 = vpop.f32.mrf.mxu0
        %v3570 = vpop.f32.mrf.mxu0
        %v3571 = vadd.f32 0.0, %v3570
        %v3572 = vpop.f32.mrf.mxu0
        %3573 = vdwg.mxu0
        %3574 = vst [vmem:[#allocation3 + $0x88] sm:$0xff] %v3544
        %3575 = vst [vmem:[#allocation3 + $0x98] sm:$0xff] %v3547
        %3576 = vst [vmem:[#allocation3 + $0xa8] sm:$0xff] %v3552
        %3577 = vst [vmem:[#allocation3 + $0xb8] sm:$0xff] %v3555
        %3578 = vst [vmem:[#allocation3 + $0xc8] sm:$0xff] %v3560
        %3579 = vst [vmem:[#allocation3 + $0xd8] sm:$0xff] %v3563
        %3580 = vst [vmem:[#allocation3 + $0xe8] sm:$0xff] %v3568
        %3581 = vst [vmem:[#allocation3 + $0xf8] sm:$0xff] %v3571
        %v3582 = vld [vmem:[#allocation3] sm:$0xff]
        %v3583 = vld [vmem:[#allocation3 + $0x8] sm:$0xff]
        %v3584 = vld [vmem:[#allocation3 + $0x10] sm:$0xff]
        %v3585 = vld [vmem:[#allocation3 + $0x18] sm:$0xff]
        %v3586 = vld [vmem:[#allocation3 + $0x20] sm:$0xff]
        %v3587 = vld [vmem:[#allocation3 + $0x28] sm:$0xff]
        %v3588 = vld [vmem:[#allocation3 + $0x30] sm:$0xff]
        %v3589 = vld [vmem:[#allocation3 + $0x38] sm:$0xff]
        %v3590 = vld [vmem:[#allocation3 + $0x40] sm:$0xff]
        %v3591 = vld [vmem:[#allocation3 + $0x48] sm:$0xff]
        %v3592 = vld [vmem:[#allocation3 + $0x50] sm:$0xff]
        %v3593 = vld [vmem:[#allocation3 + $0x58] sm:$0xff]
        %v3594 = vld [vmem:[#allocation3 + $0x60] sm:$0xff]
        %v3595 = vld [vmem:[#allocation3 + $0x68] sm:$0xff]
        %v3596 = vld [vmem:[#allocation3 + $0x70] sm:$0xff]
        %v3597 = vld [vmem:[#allocation3 + $0x78] sm:$0xff]
        %v3598 = vld [vmem:[#allocation3 + $0x80] sm:$0xff]
        %v3599 = vld [vmem:[#allocation3 + $0x88] sm:$0xff]
        %v3600 = vld [vmem:[#allocation3 + $0x90] sm:$0xff]
        %v3601 = vld [vmem:[#allocation3 + $0x98] sm:$0xff]
        %v3602 = vld [vmem:[#allocation3 + $0xa0] sm:$0xff]
        %v3603 = vld [vmem:[#allocation3 + $0xa8] sm:$0xff]
        %v3604 = vld [vmem:[#allocation3 + $0xb0] sm:$0xff]
        %v3605 = vld [vmem:[#allocation3 + $0xb8] sm:$0xff]
        %v3606 = vld [vmem:[#allocation3 + $0xc0] sm:$0xff]
        %v3607 = vld [vmem:[#allocation3 + $0xc8] sm:$0xff]
        %v3608 = vld [vmem:[#allocation3 + $0xd0] sm:$0xff]
        %v3609 = vld [vmem:[#allocation3 + $0xd8] sm:$0xff]
        %v3610 = vld [vmem:[#allocation3 + $0xe0] sm:$0xff]
        %v3611 = vld [vmem:[#allocation3 + $0xe8] sm:$0xff]
        %v3612 = vld [vmem:[#allocation3 + $0xf0] sm:$0xff]
        %v3613 = vld [vmem:[#allocation3 + $0xf8] sm:$0xff]
        %v3614 = vpack.c.bf16 %v3584, %v3582
        %v3615 = vpack.c.bf16 %v3585, %v3583
        %v3616 = vpack.c.bf16 %v3588, %v3586
        %v3617 = vpack.c.bf16 %v3589, %v3587
        %v3618 = vpack.c.bf16 %v3592, %v3590
        %v3619 = vpack.c.bf16 %v3593, %v3591
        %v3620 = vpack.c.bf16 %v3596, %v3594
        %v3621 = vpack.c.bf16 %v3597, %v3595
        %v3622 = vpack.c.bf16 %v3600, %v3598
        %v3623 = vpack.c.bf16 %v3601, %v3599
        %v3624 = vpack.c.bf16 %v3604, %v3602
        %v3625 = vpack.c.bf16 %v3605, %v3603
        %v3626 = vpack.c.bf16 %v3608, %v3606
        %v3627 = vpack.c.bf16 %v3609, %v3607
        %v3628 = vpack.c.bf16 %v3612, %v3610
        %v3629 = vpack.c.bf16 %v3613, %v3611
        %v3630 = vld [vmem:[%s9] sm:$0xff]
        %v3631 = vld [vmem:[%s9 + $0x8] sm:$0xff]
        %v3632 = vld [vmem:[%s9 + $0x10] sm:$0xff]
        %v3633 = vld [vmem:[%s9 + $0x18] sm:$0xff]
        %v3634 = vld [vmem:[%s9 + $0x20] sm:$0xff]
        %v3635 = vld [vmem:[%s9 + $0x28] sm:$0xff]
        %v3636 = vld [vmem:[%s9 + $0x30] sm:$0xff]
        %v3637 = vld [vmem:[%s9 + $0x38] sm:$0xff]
        %v3638 = vld [vmem:[%s9 + $0x40] sm:$0xff]
        %v3639 = vld [vmem:[%s9 + $0x48] sm:$0xff]
        %v3640 = vld [vmem:[%s9 + $0x50] sm:$0xff]
        %v3641 = vld [vmem:[%s9 + $0x58] sm:$0xff]
        %v3642 = vld [vmem:[%s9 + $0x60] sm:$0xff]
        %v3643 = vld [vmem:[%s9 + $0x68] sm:$0xff]
        %v3644 = vld [vmem:[%s9 + $0x70] sm:$0xff]
        %v3645 = vld [vmem:[%s9 + $0x78] sm:$0xff]
        %v3646 = vld [vmem:[%s9 + $0x80] sm:$0xff]
        %v3647 = vld [vmem:[%s9 + $0x88] sm:$0xff]
        %v3648 = vld [vmem:[%s9 + $0x90] sm:$0xff]
        %v3649 = vld [vmem:[%s9 + $0x98] sm:$0xff]
        %v3650 = vld [vmem:[%s9 + $0xa0] sm:$0xff]
        %v3651 = vld [vmem:[%s9 + $0xa8] sm:$0xff]
        %v3652 = vld [vmem:[%s9 + $0xb0] sm:$0xff]
        %v3653 = vld [vmem:[%s9 + $0xb8] sm:$0xff]
        %v3654 = vld [vmem:[%s9 + $0xc0] sm:$0xff]
        %v3655 = vld [vmem:[%s9 + $0xc8] sm:$0xff]
        %v3656 = vld [vmem:[%s9 + $0xd0] sm:$0xff]
        %v3657 = vld [vmem:[%s9 + $0xd8] sm:$0xff]
        %v3658 = vld [vmem:[%s9 + $0xe0] sm:$0xff]
        %v3659 = vld [vmem:[%s9 + $0xe8] sm:$0xff]
        %v3660 = vld [vmem:[%s9 + $0xf0] sm:$0xff]
        %v3661 = vld [vmem:[%s9 + $0xf8] sm:$0xff]
        %v3662 = vpack.c.bf16 %v3631, %v3630
        %v3663 = vpack.c.bf16 %v3633, %v3632
        %v3664 = vpack.c.bf16 %v3635, %v3634
        %v3665 = vpack.c.bf16 %v3637, %v3636
        %v3666 = vpack.c.bf16 %v3639, %v3638
        %v3667 = vpack.c.bf16 %v3641, %v3640
        %v3668 = vpack.c.bf16 %v3643, %v3642
        %v3669 = vpack.c.bf16 %v3645, %v3644
        %v3670 = vpack.c.bf16 %v3647, %v3646
        %v3671 = vpack.c.bf16 %v3649, %v3648
        %v3672 = vpack.c.bf16 %v3651, %v3650
        %v3673 = vpack.c.bf16 %v3653, %v3652
        %v3674 = vpack.c.bf16 %v3655, %v3654
        %v3675 = vpack.c.bf16 %v3657, %v3656
        %v3676 = vpack.c.bf16 %v3659, %v3658
        %v3677 = vpack.c.bf16 %v3661, %v3660
        %v3678 = vld [vmem:[%s10] sm:$0x1]
        %v3680 = vlaneseq
        %v3681 = vshrl.u32 %v3680, 7
        %v3682 = vsub.s32 0, %v3681
        %v3683 = vrot.slane %v3678, %v3682
        %3685 = vmatprep.subr.bf16.mxu0 0
        %3686 = vmatpush1.bf16.msra.mxu0 %v3669
        %3687 = vmatprep.subr.bf16.mxu0 0
        %3688 = vmatpush1.bf16.msra.mxu0 %v3668
        %3689 = vmatprep.subr.bf16.mxu0 0
        %3690 = vmatpush1.bf16.msra.mxu0 %v3667
        %3691 = vmatprep.subr.bf16.mxu0 0
        %3692 = vmatpush1.bf16.msra.mxu0 %v3666
        %3693 = vmatprep.subr.bf16.mxu0 0
        %3694 = vmatpush1.bf16.msra.mxu0 %v3665
        %3695 = vmatprep.subr.bf16.mxu0 0
        %3696 = vmatpush1.bf16.msra.mxu0 %v3664
        %3697 = vmatprep.subr.bf16.mxu0 0
        %3698 = vmatpush1.bf16.msra.mxu0 %v3663
        %3699 = vmatprep.subr.bf16.mxu0 0
        %3700 = vmatpush1.bf16.msra.mxu0 %v3662
        %3701 = vmatprep.subr.bf16.mxu0 0
        %3702 = vmatpush2.bf16.msra.mxu0 %v3677
        %3703 = vmatprep.subr.bf16.mxu0 0
        %3704 = vmatpush2.bf16.msra.mxu0 %v3676
        %3705 = vmatprep.subr.bf16.mxu0 0
        %3706 = vmatpush2.bf16.msra.mxu0 %v3675
        %3707 = vmatprep.subr.bf16.mxu0 0
        %3708 = vmatpush2.bf16.msra.mxu0 %v3674
        %3709 = vmatprep.subr.bf16.mxu0 0
        %3710 = vmatpush2.bf16.msra.mxu0 %v3673
        %3711 = vmatprep.subr.bf16.mxu0 0
        %3712 = vmatpush2.bf16.msra.mxu0 %v3672
        %3713 = vmatprep.subr.bf16.mxu0 0
        %3714 = vmatpush2.bf16.msra.mxu0 %v3671
        %3715 = vmatprep.subr.bf16.mxu0 0
        %3716 = vmatpush2.bf16.msra.mxu0 %v3670
        %3717 = vmatprep.mubr.bf16.mxu0 %v3615
        %3718 = vmatmul.mubr.bf16.gmra.mxu0 %v3614
        %v3719 = vpop.f32.mrf.mxu0
        %v3720 = vadd.f32 %v3683, %v3719
        %v3721 = vpop.f32.mrf.mxu0
        %v3722 = vpop.f32.mrf.mxu0
        %v3723 = vadd.f32 %v3683, %v3722
        %v3724 = vpop.f32.mrf.mxu0
        %3725 = vmatprep.mubr.bf16.mxu0 %v3617
        %3726 = vmatmul.mubr.bf16.gmra.mxu0 %v3616
        %v3727 = vpop.f32.mrf.mxu0
        %v3728 = vadd.f32 %v3683, %v3727
        %v3729 = vpop.f32.mrf.mxu0
        %v3730 = vpop.f32.mrf.mxu0
        %v3731 = vadd.f32 %v3683, %v3730
        %v3732 = vpop.f32.mrf.mxu0
        %3733 = vmatprep.mubr.bf16.mxu0 %v3619
        %3734 = vmatmul.mubr.bf16.gmra.mxu0 %v3618
        %v3735 = vpop.f32.mrf.mxu0
        %v3736 = vadd.f32 %v3683, %v3735
        %v3737 = vpop.f32.mrf.mxu0
        %v3738 = vpop.f32.mrf.mxu0
        %v3739 = vadd.f32 %v3683, %v3738
        %v3740 = vpop.f32.mrf.mxu0
        %3741 = vmatprep.mubr.bf16.mxu0 %v3621
        %3742 = vmatmul.mubr.bf16.gmra.mxu0 %v3620
        %v3743 = vpop.f32.mrf.mxu0
        %v3744 = vadd.f32 %v3683, %v3743
        %v3745 = vpop.f32.mrf.mxu0
        %v3746 = vpop.f32.mrf.mxu0
        %v3747 = vadd.f32 %v3683, %v3746
        %v3748 = vpop.f32.mrf.mxu0
        %3749 = vmatprep.mubr.bf16.mxu0 %v3623
        %3750 = vmatmul.mubr.bf16.gmra.mxu0 %v3622
        %v3751 = vpop.f32.mrf.mxu0
        %v3752 = vadd.f32 %v3683, %v3751
        %v3753 = vpop.f32.mrf.mxu0
        %v3754 = vpop.f32.mrf.mxu0
        %v3755 = vadd.f32 %v3683, %v3754
        %v3756 = vpop.f32.mrf.mxu0
        %3757 = vmatprep.mubr.bf16.mxu0 %v3625
        %3758 = vmatmul.mubr.bf16.gmra.mxu0 %v3624
        %v3759 = vpop.f32.mrf.mxu0
        %v3760 = vadd.f32 %v3683, %v3759
        %v3761 = vpop.f32.mrf.mxu0
        %v3762 = vpop.f32.mrf.mxu0
        %v3763 = vadd.f32 %v3683, %v3762
        %v3764 = vpop.f32.mrf.mxu0
        %3765 = vmatprep.mubr.bf16.mxu0 %v3627
        %3766 = vmatmul.mubr.bf16.gmra.mxu0 %v3626
        %v3767 = vpop.f32.mrf.mxu0
        %v3768 = vadd.f32 %v3683, %v3767
        %v3769 = vpop.f32.mrf.mxu0
        %v3770 = vpop.f32.mrf.mxu0
        %v3771 = vadd.f32 %v3683, %v3770
        %v3772 = vpop.f32.mrf.mxu0
        %3773 = vmatprep.mubr.bf16.mxu0 %v3629
        %3774 = vmatmul.mubr.bf16.gmra.mxu0 %v3628
        %v3775 = vpop.f32.mrf.mxu0
        %v3776 = vadd.f32 %v3683, %v3775
        %v3777 = vpop.f32.mrf.mxu0
        %v3778 = vpop.f32.mrf.mxu0
        %v3779 = vadd.f32 %v3683, %v3778
        %v3780 = vpop.f32.mrf.mxu0
        %3781 = vdwg.mxu0
        %v3782 = vmax.f32 %v3720, 0.0
        %v3783 = vmax.f32 %v3723, 0.0
        %v3784 = vmax.f32 %v3728, 0.0
        %v3785 = vmax.f32 %v3731, 0.0
        %v3786 = vmax.f32 %v3736, 0.0
        %v3787 = vmax.f32 %v3739, 0.0
        %v3788 = vmax.f32 %v3744, 0.0
        %v3789 = vmax.f32 %v3747, 0.0
        %v3790 = vmax.f32 %v3752, 0.0
        %v3791 = vmax.f32 %v3755, 0.0
        %v3792 = vmax.f32 %v3760, 0.0
        %v3793 = vmax.f32 %v3763, 0.0
        %v3794 = vmax.f32 %v3768, 0.0
        %v3795 = vmax.f32 %v3771, 0.0
        %v3796 = vmax.f32 %v3776, 0.0
        %v3797 = vmax.f32 %v3779, 0.0
        %v3798 = vpack.c.bf16 %v3783, %v3782
        %v3799 = vpack.c.bf16 %v3785, %v3784
        %v3800 = vpack.c.bf16 %v3787, %v3786
        %v3801 = vpack.c.bf16 %v3789, %v3788
        %v3802 = vpack.c.bf16 %v3791, %v3790
        %v3803 = vpack.c.bf16 %v3793, %v3792
        %v3804 = vpack.c.bf16 %v3795, %v3794
        %v3805 = vpack.c.bf16 %v3797, %v3796
        %v3806 = vld [vmem:[#allocation6] sm:$0xff]
        %v3807 = vld [vmem:[#allocation6 + $0x8] sm:$0xff]
        %v3808 = vld [vmem:[#allocation6 + $0x10] sm:$0xff]
        %v3809 = vld [vmem:[#allocation6 + $0x18] sm:$0xff]
        %v3810 = vld [vmem:[#allocation6 + $0x20] sm:$0xff]
        %v3811 = vld [vmem:[#allocation6 + $0x28] sm:$0xff]
        %v3812 = vld [vmem:[#allocation6 + $0x30] sm:$0xff]
        %v3813 = vld [vmem:[#allocation6 + $0x38] sm:$0xff]
        %v3814 = vld [vmem:[#allocation6 + $0x40] sm:$0xff]
        %v3815 = vld [vmem:[#allocation6 + $0x48] sm:$0xff]
        %v3816 = vld [vmem:[#allocation6 + $0x50] sm:$0xff]
        %v3817 = vld [vmem:[#allocation6 + $0x58] sm:$0xff]
        %v3818 = vld [vmem:[#allocation6 + $0x60] sm:$0xff]
        %v3819 = vld [vmem:[#allocation6 + $0x68] sm:$0xff]
        %v3820 = vld [vmem:[#allocation6 + $0x70] sm:$0xff]
        %v3821 = vld [vmem:[#allocation6 + $0x78] sm:$0xff]
        %v3822 = vpack.c.bf16 %v3807, %v3806
        %v3823 = vpack.c.bf16 %v3809, %v3808
        %v3824 = vpack.c.bf16 %v3811, %v3810
        %v3825 = vpack.c.bf16 %v3813, %v3812
        %v3826 = vpack.c.bf16 %v3815, %v3814
        %v3827 = vpack.c.bf16 %v3817, %v3816
        %v3828 = vpack.c.bf16 %v3819, %v3818
        %v3829 = vpack.c.bf16 %v3821, %v3820
        %v3830 = vld [vmem:[%s12] sm:$0x1]
        %v3832 = vlaneseq
        %v3833 = vshrl.u32 %v3832, 7
        %v3834 = vsub.s32 0, %v3833
        %v3835 = vrot.slane %v3830, %v3834
        %3837 = vmatprep.subr.bf16.mxu0 0
        %3838 = vmatpush1.bf16.msra.mxu0 %v3829
        %3839 = vmatprep.subr.bf16.mxu0 0
        %3840 = vmatpush1.bf16.msra.mxu0 %v3828
        %3841 = vmatprep.subr.bf16.mxu0 0
        %3842 = vmatpush1.bf16.msra.mxu0 %v3827
        %3843 = vmatprep.subr.bf16.mxu0 0
        %3844 = vmatpush1.bf16.msra.mxu0 %v3826
        %3845 = vmatprep.subr.bf16.mxu0 0
        %3846 = vmatpush1.bf16.msra.mxu0 %v3825
        %3847 = vmatprep.subr.bf16.mxu0 0
        %3848 = vmatpush1.bf16.msra.mxu0 %v3824
        %3849 = vmatprep.subr.bf16.mxu0 0
        %3850 = vmatpush1.bf16.msra.mxu0 %v3823
        %3851 = vmatprep.subr.bf16.mxu0 0
        %3852 = vmatpush1.bf16.msra.mxu0 %v3822
        %3853 = vmatprep.subr.bf16.mxu0 0
        %3854 = vmatpush2.bf16.msra.mxu0 0
        %3855 = vmatprep.subr.bf16.mxu0 0
        %3856 = vmatpush2.bf16.msra.mxu0 0
        %3857 = vmatprep.subr.bf16.mxu0 0
        %3858 = vmatpush2.bf16.msra.mxu0 0
        %3859 = vmatprep.subr.bf16.mxu0 0
        %3860 = vmatpush2.bf16.msra.mxu0 0
        %3861 = vmatprep.subr.bf16.mxu0 0
        %3862 = vmatpush2.bf16.msra.mxu0 0
        %3863 = vmatprep.subr.bf16.mxu0 0
        %3864 = vmatpush2.bf16.msra.mxu0 0
        %3865 = vmatprep.subr.bf16.mxu0 0
        %3866 = vmatpush2.bf16.msra.mxu0 0
        %3867 = vmatprep.subr.bf16.mxu0 0
        %3868 = vmatpush2.bf16.msra.mxu0 0
        %3869 = vmatprep.mubr.bf16.mxu0 0
        %3870 = vmatmul.mubr.bf16.gmra.mxu0 %v3798
        %v3871 = vpop.f32.mrf.mxu0
        %v3872 = vadd.f32 %v3835, %v3871
        %v3873 = vpop.f32.mrf.mxu0
        %v3874 = vpop.f32.mrf.mxu0
        %v3875 = vadd.f32 %v3835, %v3874
        %v3876 = vpop.f32.mrf.mxu0
        %3877 = vmatprep.mubr.bf16.mxu0 0
        %3878 = vmatmul.mubr.bf16.gmra.mxu0 %v3799
        %v3879 = vpop.f32.mrf.mxu0
        %v3880 = vadd.f32 %v3835, %v3879
        %v3881 = vpop.f32.mrf.mxu0
        %v3882 = vpop.f32.mrf.mxu0
        %v3883 = vadd.f32 %v3835, %v3882
        %v3884 = vpop.f32.mrf.mxu0
        %3885 = vmatprep.mubr.bf16.mxu0 0
        %3886 = vmatmul.mubr.bf16.gmra.mxu0 %v3800
        %v3887 = vpop.f32.mrf.mxu0
        %v3888 = vadd.f32 %v3835, %v3887
        %v3889 = vpop.f32.mrf.mxu0
        %v3890 = vpop.f32.mrf.mxu0
        %v3891 = vadd.f32 %v3835, %v3890
        %v3892 = vpop.f32.mrf.mxu0
        %3893 = vmatprep.mubr.bf16.mxu0 0
        %3894 = vmatmul.mubr.bf16.gmra.mxu0 %v3801
        %v3895 = vpop.f32.mrf.mxu0
        %v3896 = vadd.f32 %v3835, %v3895
        %v3897 = vpop.f32.mrf.mxu0
        %v3898 = vpop.f32.mrf.mxu0
        %v3899 = vadd.f32 %v3835, %v3898
        %v3900 = vpop.f32.mrf.mxu0
        %3901 = vmatprep.mubr.bf16.mxu0 0
        %3902 = vmatmul.mubr.bf16.gmra.mxu0 %v3802
        %v3903 = vpop.f32.mrf.mxu0
        %v3904 = vadd.f32 %v3835, %v3903
        %v3905 = vpop.f32.mrf.mxu0
        %v3906 = vpop.f32.mrf.mxu0
        %v3907 = vadd.f32 %v3835, %v3906
        %v3908 = vpop.f32.mrf.mxu0
        %3909 = vmatprep.mubr.bf16.mxu0 0
        %3910 = vmatmul.mubr.bf16.gmra.mxu0 %v3803
        %v3911 = vpop.f32.mrf.mxu0
        %v3912 = vadd.f32 %v3835, %v3911
        %v3913 = vpop.f32.mrf.mxu0
        %v3914 = vpop.f32.mrf.mxu0
        %v3915 = vadd.f32 %v3835, %v3914
        %v3916 = vpop.f32.mrf.mxu0
        %3917 = vmatprep.mubr.bf16.mxu0 0
        %3918 = vmatmul.mubr.bf16.gmra.mxu0 %v3804
        %v3919 = vpop.f32.mrf.mxu0
        %v3920 = vadd.f32 %v3835, %v3919
        %v3921 = vpop.f32.mrf.mxu0
        %v3922 = vpop.f32.mrf.mxu0
        %v3923 = vadd.f32 %v3835, %v3922
        %v3924 = vpop.f32.mrf.mxu0
        %3925 = vmatprep.mubr.bf16.mxu0 0
        %3926 = vmatmul.mubr.bf16.gmra.mxu0 %v3805
        %v3927 = vpop.f32.mrf.mxu0
        %v3928 = vadd.f32 %v3835, %v3927
        %v3929 = vpop.f32.mrf.mxu0
        %v3930 = vpop.f32.mrf.mxu0
        %v3931 = vadd.f32 %v3835, %v3930
        %v3932 = vpop.f32.mrf.mxu0
        %3933 = vdwg.mxu0
        %v3934 = vmax.f32 %v3872, 0.0
        %v3935 = vmax.f32 %v3875, 0.0
        %v3936 = vmax.f32 %v3880, 0.0
        %v3937 = vmax.f32 %v3883, 0.0
        %v3938 = vmax.f32 %v3888, 0.0
        %v3939 = vmax.f32 %v3891, 0.0
        %v3940 = vmax.f32 %v3896, 0.0
        %v3941 = vmax.f32 %v3899, 0.0
        %v3942 = vmax.f32 %v3904, 0.0
        %v3943 = vmax.f32 %v3907, 0.0
        %v3944 = vmax.f32 %v3912, 0.0
        %v3945 = vmax.f32 %v3915, 0.0
        %v3946 = vmax.f32 %v3920, 0.0
        %v3947 = vmax.f32 %v3923, 0.0
        %v3948 = vmax.f32 %v3928, 0.0
        %v3949 = vmax.f32 %v3931, 0.0
        %v3950 = vadd.f32 %v584, %v3934
        %v3951 = vadd.f32 %v585, %v3935
        %v3952 = vadd.f32 %v586, %v3936
        %v3953 = vadd.f32 %v587, %v3937
        %v3954 = vadd.f32 %v588, %v3938
        %v3955 = vadd.f32 %v589, %v3939
        %v3956 = vadd.f32 %v590, %v3940
        %v3957 = vadd.f32 %v591, %v3941
        %v3958 = vadd.f32 %v592, %v3942
        %v3959 = vadd.f32 %v593, %v3943
        %v3960 = vadd.f32 %v594, %v3944
        %v3961 = vadd.f32 %v595, %v3945
        %v3962 = vadd.f32 %v596, %v3946
        %v3963 = vadd.f32 %v597, %v3947
        %v3964 = vadd.f32 %v598, %v3948
        %v3965 = vadd.f32 %v599, %v3949
        %v3966 = vld [vmem:[%s13] sm:$0x1]
        %v3967 = vld [vmem:[%s14] sm:$0x1]
        %3968 = vadd.xlane.f32.xlu0 %v3950
        %v3969 = vpop.xlane.xlu0 %3968
        %3970 = vadd.xlane.f32.xlu0 %v3951
        %v3971 = vpop.xlane.xlu0 %3970
        %3972 = vadd.xlane.f32.xlu0 %v3952
        %v3973 = vpop.xlane.xlu0 %3972
        %3974 = vadd.xlane.f32.xlu0 %v3953
        %v3975 = vpop.xlane.xlu0 %3974
        %3976 = vadd.xlane.f32.xlu0 %v3954
        %v3977 = vpop.xlane.xlu0 %3976
        %3978 = vadd.xlane.f32.xlu0 %v3955
        %v3979 = vpop.xlane.xlu0 %3978
        %3980 = vadd.xlane.f32.xlu0 %v3956
        %v3981 = vpop.xlane.xlu0 %3980
        %3982 = vadd.xlane.f32.xlu0 %v3957
        %v3983 = vpop.xlane.xlu0 %3982
        %3984 = vadd.xlane.f32.xlu0 %v3958
        %v3985 = vpop.xlane.xlu0 %3984
        %3986 = vadd.xlane.f32.xlu0 %v3959
        %v3987 = vpop.xlane.xlu0 %3986
        %3988 = vadd.xlane.f32.xlu0 %v3960
        %v3989 = vpop.xlane.xlu0 %3988
        %3990 = vadd.xlane.f32.xlu0 %v3961
        %v3991 = vpop.xlane.xlu0 %3990
        %3992 = vadd.xlane.f32.xlu0 %v3962
        %v3993 = vpop.xlane.xlu0 %3992
        %3994 = vadd.xlane.f32.xlu0 %v3963
        %v3995 = vpop.xlane.xlu0 %3994
        %3996 = vadd.xlane.f32.xlu0 %v3964
        %v3997 = vpop.xlane.xlu0 %3996
        %3998 = vadd.xlane.f32.xlu0 %v3965
        %v3999 = vpop.xlane.xlu0 %3998
        %v4000 = vmul.f32 %v3969, 0.03846154
        %v4001 = vmul.f32 %v3971, 0.03846154
        %v4002 = vmul.f32 %v3973, 0.03846154
        %v4003 = vmul.f32 %v3975, 0.03846154
        %v4004 = vmul.f32 %v3977, 0.03846154
        %v4005 = vmul.f32 %v3979, 0.03846154
        %v4006 = vmul.f32 %v3981, 0.03846154
        %v4007 = vmul.f32 %v3983, 0.03846154
        %v4008 = vmul.f32 %v3985, 0.03846154
        %v4009 = vmul.f32 %v3987, 0.03846154
        %v4010 = vmul.f32 %v3989, 0.03846154
        %v4011 = vmul.f32 %v3991, 0.03846154
        %v4012 = vmul.f32 %v3993, 0.03846154
        %v4013 = vmul.f32 %v3995, 0.03846154
        %v4014 = vmul.f32 %v3997, 0.03846154
        %v4015 = vmul.f32 %v3999, 0.03846154
        %v4016 = vsub.f32 %v3950, %v4000
        %v4017 = vsub.f32 %v3951, %v4001
        %v4018 = vsub.f32 %v3952, %v4002
        %v4019 = vsub.f32 %v3953, %v4003
        %v4020 = vsub.f32 %v3954, %v4004
        %v4021 = vsub.f32 %v3955, %v4005
        %v4022 = vsub.f32 %v3956, %v4006
        %v4023 = vsub.f32 %v3957, %v4007
        %v4024 = vsub.f32 %v3958, %v4008
        %v4025 = vsub.f32 %v3959, %v4009
        %v4026 = vsub.f32 %v3960, %v4010
        %v4027 = vsub.f32 %v3961, %v4011
        %v4028 = vsub.f32 %v3962, %v4012
        %v4029 = vsub.f32 %v3963, %v4013
        %v4030 = vsub.f32 %v3964, %v4014
        %v4031 = vsub.f32 %v3965, %v4015
        %v4032 = vmul.f32 %v4016, %v607
        %v4033 = vmul.f32 %v4017, %v607
        %v4034 = vmul.f32 %v4018, %v607
        %v4035 = vmul.f32 %v4019, %v607
        %v4036 = vmul.f32 %v4020, %v607
        %v4037 = vmul.f32 %v4021, %v607
        %v4038 = vmul.f32 %v4022, %v607
        %v4039 = vmul.f32 %v4023, %v607
        %v4040 = vmul.f32 %v4024, %v607
        %v4041 = vmul.f32 %v4025, %v607
        %v4042 = vmul.f32 %v4026, %v607
        %v4043 = vmul.f32 %v4027, %v607
        %v4044 = vmul.f32 %v4028, %v607
        %v4045 = vmul.f32 %v4029, %v607
        %v4046 = vmul.f32 %v4030, %v607
        %v4047 = vmul.f32 %v4031, %v607
        %v4048 = vmul.f32 %v4032, %v4032
        %v4049 = vmul.f32 %v4033, %v4033
        %v4050 = vmul.f32 %v4034, %v4034
        %v4051 = vmul.f32 %v4035, %v4035
        %v4052 = vmul.f32 %v4036, %v4036
        %v4053 = vmul.f32 %v4037, %v4037
        %v4054 = vmul.f32 %v4038, %v4038
        %v4055 = vmul.f32 %v4039, %v4039
        %v4056 = vmul.f32 %v4040, %v4040
        %v4057 = vmul.f32 %v4041, %v4041
        %v4058 = vmul.f32 %v4042, %v4042
        %v4059 = vmul.f32 %v4043, %v4043
        %v4060 = vmul.f32 %v4044, %v4044
        %v4061 = vmul.f32 %v4045, %v4045
        %v4062 = vmul.f32 %v4046, %v4046
        %v4063 = vmul.f32 %v4047, %v4047
        %4064 = vadd.xlane.f32.xlu0 %v4048
        %v4065 = vpop.xlane.xlu0 %4064
        %4066 = vadd.xlane.f32.xlu0 %v4049
        %v4067 = vpop.xlane.xlu0 %4066
        %4068 = vadd.xlane.f32.xlu0 %v4050
        %v4069 = vpop.xlane.xlu0 %4068
        %4070 = vadd.xlane.f32.xlu0 %v4051
        %v4071 = vpop.xlane.xlu0 %4070
        %4072 = vadd.xlane.f32.xlu0 %v4052
        %v4073 = vpop.xlane.xlu0 %4072
        %4074 = vadd.xlane.f32.xlu0 %v4053
        %v4075 = vpop.xlane.xlu0 %4074
        %4076 = vadd.xlane.f32.xlu0 %v4054
        %v4077 = vpop.xlane.xlu0 %4076
        %4078 = vadd.xlane.f32.xlu0 %v4055
        %v4079 = vpop.xlane.xlu0 %4078
        %4080 = vadd.xlane.f32.xlu0 %v4056
        %v4081 = vpop.xlane.xlu0 %4080
        %4082 = vadd.xlane.f32.xlu0 %v4057
        %v4083 = vpop.xlane.xlu0 %4082
        %4084 = vadd.xlane.f32.xlu0 %v4058
        %v4085 = vpop.xlane.xlu0 %4084
        %4086 = vadd.xlane.f32.xlu0 %v4059
        %v4087 = vpop.xlane.xlu0 %4086
        %4088 = vadd.xlane.f32.xlu0 %v4060
        %v4089 = vpop.xlane.xlu0 %4088
        %4090 = vadd.xlane.f32.xlu0 %v4061
        %v4091 = vpop.xlane.xlu0 %4090
        %4092 = vadd.xlane.f32.xlu0 %v4062
        %v4093 = vpop.xlane.xlu0 %4092
        %4094 = vadd.xlane.f32.xlu0 %v4063
        %v4095 = vpop.xlane.xlu0 %4094
        %v4096 = vmul.f32 %v4065, 0.03846154
        %v4097 = vmul.f32 %v4067, 0.03846154
        %v4098 = vmul.f32 %v4069, 0.03846154
        %v4099 = vmul.f32 %v4071, 0.03846154
        %v4100 = vmul.f32 %v4073, 0.03846154
        %v4101 = vmul.f32 %v4075, 0.03846154
        %v4102 = vmul.f32 %v4077, 0.03846154
        %v4103 = vmul.f32 %v4079, 0.03846154
        %v4104 = vmul.f32 %v4081, 0.03846154
        %v4105 = vmul.f32 %v4083, 0.03846154
        %v4106 = vmul.f32 %v4085, 0.03846154
        %v4107 = vmul.f32 %v4087, 0.03846154
        %v4108 = vmul.f32 %v4089, 0.03846154
        %v4109 = vmul.f32 %v4091, 0.03846154
        %v4110 = vmul.f32 %v4093, 0.03846154
        %v4111 = vmul.f32 %v4095, 0.03846154
        %v4112 = vadd.f32 %v4096, 1e-05
        %v4113 = vadd.f32 %v4097, 1e-05
        %v4114 = vadd.f32 %v4098, 1e-05
        %v4115 = vadd.f32 %v4099, 1e-05
        %v4116 = vadd.f32 %v4100, 1e-05
        %v4117 = vadd.f32 %v4101, 1e-05
        %v4118 = vadd.f32 %v4102, 1e-05
        %v4119 = vadd.f32 %v4103, 1e-05
        %v4120 = vadd.f32 %v4104, 1e-05
        %v4121 = vadd.f32 %v4105, 1e-05
        %v4122 = vadd.f32 %v4106, 1e-05
        %v4123 = vadd.f32 %v4107, 1e-05
        %v4124 = vadd.f32 %v4108, 1e-05
        %v4125 = vadd.f32 %v4109, 1e-05
        %v4126 = vadd.f32 %v4110, 1e-05
        %v4127 = vadd.f32 %v4111, 1e-05
        %v4128 = vrsqrt.pop %v4112
        %v4129 = vrsqrt.pop %v4113
        %v4130 = vrsqrt.pop %v4114
        %v4131 = vrsqrt.pop %v4115
        %v4132 = vrsqrt.pop %v4116
        %v4133 = vrsqrt.pop %v4117
        %v4134 = vrsqrt.pop %v4118
        %v4135 = vrsqrt.pop %v4119
        %v4136 = vrsqrt.pop %v4120
        %v4137 = vrsqrt.pop %v4121
        %v4138 = vrsqrt.pop %v4122
        %v4139 = vrsqrt.pop %v4123
        %v4140 = vrsqrt.pop %v4124
        %v4141 = vrsqrt.pop %v4125
        %v4142 = vrsqrt.pop %v4126
        %v4143 = vrsqrt.pop %v4127
        %v4144 = vmul.f32 %v4032, %v4128
        %v4145 = vmul.f32 %v4033, %v4129
        %v4146 = vmul.f32 %v4034, %v4130
        %v4147 = vmul.f32 %v4035, %v4131
        %v4148 = vmul.f32 %v4036, %v4132
        %v4149 = vmul.f32 %v4037, %v4133
        %v4150 = vmul.f32 %v4038, %v4134
        %v4151 = vmul.f32 %v4039, %v4135
        %v4152 = vmul.f32 %v4040, %v4136
        %v4153 = vmul.f32 %v4041, %v4137
        %v4154 = vmul.f32 %v4042, %v4138
        %v4155 = vmul.f32 %v4043, %v4139
        %v4156 = vmul.f32 %v4044, %v4140
        %v4157 = vmul.f32 %v4045, %v4141
        %v4158 = vmul.f32 %v4046, %v4142
        %v4159 = vmul.f32 %v4047, %v4143
        %v4161 = vlaneseq
        %v4162 = vshrl.u32 %v4161, 7
        %v4163 = vsub.s32 0, %v4162
        %v4164 = vrot.slane %v3966, %v4163
        %v4166 = vmul.f32 %v4144, %v4164
        %v4167 = vmul.f32 %v4145, %v4164
        %v4168 = vmul.f32 %v4146, %v4164
        %v4169 = vmul.f32 %v4147, %v4164
        %v4170 = vmul.f32 %v4148, %v4164
        %v4171 = vmul.f32 %v4149, %v4164
        %v4172 = vmul.f32 %v4150, %v4164
        %v4173 = vmul.f32 %v4151, %v4164
        %v4174 = vmul.f32 %v4152, %v4164
        %v4175 = vmul.f32 %v4153, %v4164
        %v4176 = vmul.f32 %v4154, %v4164
        %v4177 = vmul.f32 %v4155, %v4164
        %v4178 = vmul.f32 %v4156, %v4164
        %v4179 = vmul.f32 %v4157, %v4164
        %v4180 = vmul.f32 %v4158, %v4164
        %v4181 = vmul.f32 %v4159, %v4164
        %v4183 = vlaneseq
        %v4184 = vshrl.u32 %v4183, 7
        %v4185 = vsub.s32 0, %v4184
        %v4186 = vrot.slane %v3967, %v4185
        %v4188 = vadd.f32 %v4166, %v4186
        %v4189 = vadd.f32 %v4167, %v4186
        %v4190 = vadd.f32 %v4168, %v4186
        %v4191 = vadd.f32 %v4169, %v4186
        %v4192 = vadd.f32 %v4170, %v4186
        %v4193 = vadd.f32 %v4171, %v4186
        %v4194 = vadd.f32 %v4172, %v4186
        %v4195 = vadd.f32 %v4173, %v4186
        %v4196 = vadd.f32 %v4174, %v4186
        %v4197 = vadd.f32 %v4175, %v4186
        %v4198 = vadd.f32 %v4176, %v4186
        %v4199 = vadd.f32 %v4177, %v4186
        %v4200 = vadd.f32 %v4178, %v4186
        %v4201 = vadd.f32 %v4179, %v4186
        %v4202 = vadd.f32 %v4180, %v4186
        %v4203 = vadd.f32 %v4181, %v4186
        %4204 = vst.msk [vmem:[%s531] sm:$0xff] %vm558, %v4188
        %4205 = vst.msk [vmem:[%s531 + $0x8] sm:$0xff] %vm558, %v4189
        %4206 = vst.msk [vmem:[%s531 + $0x10] sm:$0xff] %vm558, %v4190
        %4207 = vst.msk [vmem:[%s531 + $0x18] sm:$0xff] %vm558, %v4191
        %4208 = vst.msk [vmem:[%s531 + $0x20] sm:$0xff] %vm558, %v4192
        %4209 = vst.msk [vmem:[%s531 + $0x28] sm:$0xff] %vm558, %v4193
        %4210 = vst.msk [vmem:[%s531 + $0x30] sm:$0xff] %vm558, %v4194
        %4211 = vst.msk [vmem:[%s531 + $0x38] sm:$0xff] %vm558, %v4195
        %s4212 = scalar_lea.vmem %s531, 64
        %4213 = vst.msk [vmem:[%s4212] sm:$0xff] %vm558, %v4196
        %4214 = vst.msk [vmem:[%s4212 + $0x8] sm:$0xff] %vm558, %v4197
        %4215 = vst.msk [vmem:[%s4212 + $0x10] sm:$0xff] %vm558, %v4198
        %4216 = vst.msk [vmem:[%s4212 + $0x18] sm:$0xff] %vm558, %v4199
        %4217 = vst.msk [vmem:[%s4212 + $0x20] sm:$0xff] %vm558, %v4200
        %4218 = vst.msk [vmem:[%s4212 + $0x28] sm:$0xff] %vm558, %v4201
        %4219 = vst.msk [vmem:[%s4212 + $0x30] sm:$0xff] %vm558, %v4202
        %4220 = vst.msk [vmem:[%s4212 + $0x38] sm:$0xff] %vm558, %v4203
        %s4221 = smul.u32 2, %s28
        %p4222 = scmp.lt.s32.totalorder %s4221, 3
        %s4223 = scalar_select %p4222, %s4221, 3
        %s4224 = smul.addr %s4223, 8
        %s4225 = smul.addr %s4224, 8
        %s4226 = scalar_lea.vmem %s15, %s4225
        // Predicated region
        $region89: #{attention_module_forward.1} parent=79 // pred_check
          %p4227 = pneg %p366
        $region90: #{attention_module_forward.1} parent=79 // pred_check_branch
          %4229 = sbr.rel (%p4227) target = $region92
        $region91: #{attention_module_forward.1} parent=79 // pred_region
          %s4230 = smul.u32 2, %s28
        $region92: #{attention_module_forward.1} parent=79 // pred_fallthru
          _
      $region80: #{attention_module_forward.1} parent=5 // pred_fallthru
        _
      %p4231 = scmp.le.s32.totalorder 2, %s23
      // Predicated region
      $region93: #{attention_module_forward.1} parent=5 // pred_check
        %p4232 = pneg %p4231
      $region94: #{attention_module_forward.1} parent=5 // pred_check_branch
        %4234 = sbr.rel (%p4232) target = $region96
      $region95: #{attention_module_forward.1} parent=5 // pred_region
        %s4235 = ssub.s32 %s23, 2
        // Predicated region
        $region97: #{attention_module_forward.1} parent=95 // pred_check
          %p4236 = pneg %p372
        $region98: #{attention_module_forward.1} parent=95 // pred_check_branch
          %4238 = sbr.rel (%p4236) target = $region100
        $region99: #{attention_module_forward.1} parent=95 // pred_region
          %s4239 = smul.u32 2, %s29
          %p4240 = scmp.lt.s32.totalorder %s4239, 3
          %s4241 = scalar_select %p4240, %s4239, 3
          %s4242 = smul.addr %s4241, 8
          %s4243 = smul.addr %s4242, 8
          %s4244 = scalar_lea.vmem %s15, %s4243
        $region100: #{attention_module_forward.1} parent=95 // pred_fallthru
          _
      $region96: #{attention_module_forward.1} parent=5 // pred_fallthru
        _
    $region6: #{attention_module_forward.1} parent=1 // loop_footer
      %s27 = sadd.s32 1, %s23
    $region7: #{attention_module_forward.1} parent=1 // loop_footer_branch
      %22 = sbr.rel target = $region3
    $region8: #{attention_module_forward.1} parent=1 // loop_exit
      _
    %4245 = vsyncpa [#allocation5], 1
    %s4246 = scalar_lea.sflag [#allocation5], 1
    %4247 = vsyncpa %s4246, 1
    %4248 = vsyncpa [#allocation7], 1

</llo_original>
